<compile_context>
chip_gen: v7x
topology: tpu7x:2x2x1
jax: 0.10.0
libtpu: 0.0.40
codegen_flags: <defaults>
</compile_context>

<pallas_src>
import math

import jax
import jax.numpy as jnp
from jax.experimental import pallas as pl
from jax.experimental.pallas import tpu as pltpu

# ---- module-level constants (globals `types`, `atoms`, `n_types` in the original) ----
TYPES = ["1JHC", "2JHC", "3JHC", "1JHN"]      # len(types) = 4
ATOMS = ["H", "C", "N", "O", "F"]             # len(atoms) = 5
N_TYPES = len(TYPES)

# ---- small, consistent configuration ----
N_LAYERS = 2
N_HEADS = 4
D_MODEL = 32
D_HEAD = D_MODEL // N_HEADS
HD = N_HEADS * D_HEAD                          # 32
D_INNER = 64
BS = 2
N_PTS = 8
LN_EPS = 1e-5
HEAD_SLAB = 16                                 # 4 (scalar) + 9 (magnetic) + 3 pad

N_ATOM_EMB = D_MODEL // 2                      # 16
N_TYPE_EMB = D_MODEL - N_ATOM_EMB - 3          # 13


# ----------------------------------------------------------------------------------------
# Fused Pallas kernel
# ----------------------------------------------------------------------------------------
def _layer_norm(x, g, b):
    mu = jnp.mean(x, axis=-1, keepdims=True)
    var = jnp.mean((x - mu) ** 2, axis=-1, keepdims=True)
    return (x - mu) * jax.lax.rsqrt(var + LN_EPS) * g + b


def fused_forward_kernel(x_ref, mask_ref, t1h_ref,
                         wqkv_ref, bqkv_ref, wout_ref, bout_ref, ln_ref,
                         wff1_ref, bff1_ref, wff2_ref, bff2_ref,
                         whx_ref, wht_ref, bh_ref, wdp_ref, bdp_ref,
                         slab_ref, dp_ref):
    """Entire AtomTransformer forward: x stays resident in VMEM/vregs throughout."""
    xf = x_ref[...].astype(jnp.float32)            # (BS*S, D)  batch folded into M
    mask_add = mask_ref[...]                        # (BS, S, S) additive mask (-1e9 where masked)
    inv_sqrt = jnp.float32(1.0 / math.sqrt(D_HEAD))

    for l in range(N_LAYERS):                       # static unroll, N_LAYERS = 2
        # --- MultiHeadAttention: fused QKV projection (single nn.Linear) ------------
        qkv = jnp.dot(xf, wqkv_ref[l], preferred_element_type=jnp.float32) + bqkv_ref[l]
        q3 = qkv[:, 0 * HD:1 * HD].reshape(BS, N_PTS, HD)
        k3 = qkv[:, 1 * HD:2 * HD].reshape(BS, N_PTS, HD)
        v3 = qkv[:, 2 * HD:3 * HD].reshape(BS, N_PTS, HD)

        ctx_parts = []
        for h in range(N_HEADS):                    # static; only scores/softmax per head
            lo, hi = h * D_HEAD, (h + 1) * D_HEAD
            s = jnp.einsum('bqd,bkd->bqk', q3[:, :, lo:hi], k3[:, :, lo:hi],
                           preferred_element_type=jnp.float32)
            s = s * inv_sqrt + mask_add             # masked_fill(-1e9) as an add
            s = s - jnp.max(s, axis=-1, keepdims=True)
            e = jnp.exp(s)
            p = e * pl.reciprocal(jnp.sum(e, axis=-1, keepdims=True), approx=True)
            ctx_parts.append(jnp.einsum('bqk,bkd->bqd', p, v3[:, :, lo:hi],
                                        preferred_element_type=jnp.float32))
        ctx = jnp.concatenate(ctx_parts, axis=-1).reshape(BS * N_PTS, HD)

        attn = jnp.dot(ctx, wout_ref[l], preferred_element_type=jnp.float32) + bout_ref[l]
        ln = ln_ref[l]                              # (4, D): rows [g1, b1, g2, b2]
        y = _layer_norm(xf + attn, ln[0:1, :], ln[1:2, :])

        # --- feed_forward: Linear -> ReLU -> Linear -> add(residual) -> LayerNorm ---
        h1 = jnp.maximum(jnp.dot(y, wff1_ref[l], preferred_element_type=jnp.float32)
                         + bff1_ref[l], 0.0)
        h2 = jnp.dot(h1, wff2_ref[l], preferred_element_type=jnp.float32) + bff2_ref[l]
        xf = _layer_norm(y + h2, ln[2:3, :], ln[3:4, :])

    # --- heads: one lane-packed slab = [scalar(4) | magnetic(9) | pad(3)] -----------
    slab = (jnp.dot(xf, whx_ref[...], preferred_element_type=jnp.float32)
            + jnp.dot(t1h_ref[...], wht_ref[...], preferred_element_type=jnp.float32)
            + bh_ref[...])
    slab_ref[...] = slab.astype(slab_ref.dtype)

    # AdaptiveAvgPool1d(1) over atoms, then dipole(3) / potential(1) packed as (BS, 4)
    px = jnp.mean(xf.reshape(BS, N_PTS, D_MODEL), axis=1)
    dp_ref[...] = (jnp.dot(px, wdp_ref[...], preferred_element_type=jnp.float32)
                   + bdp_ref[...]).astype(dp_ref.dtype)


# ----------------------------------------------------------------------------------------
# pallas_call wrapper
# ----------------------------------------------------------------------------------------
def _full_spec(shape):
    return pl.BlockSpec(shape, lambda *_: (0,) * len(shape))


def fused_forward(x_flat, mask_add, t1h, packed):
    # Single fused call, grid=(1,): total live data is < 200 KB so one TensorCore
    # handles the whole forward with everything resident in VMEM.
    # TODO(synk): on v7x a batch-parallel grid=(BS,) over the 2 TensorCores could be
    # benchmarked against this fully fused single-step version.
    args = (x_flat, mask_add, t1h) + tuple(packed)
    out_shapes = (
        jax.ShapeDtypeStruct((BS * N_PTS, HEAD_SLAB), jnp.float32),  # scalar|magnetic slab
        jax.ShapeDtypeStruct((BS, 4), jnp.float32),                  # dipole|potential
    )
    return pl.pallas_call(
        fused_forward_kernel,
        out_shape=out_shapes,
        grid=(1,),
        in_specs=[_full_spec(a.shape) for a in args],
        out_specs=tuple(_full_spec(o.shape) for o in out_shapes),
        compiler_params=pltpu.CompilerParams(dimension_semantics=("arbitrary",)),
    )(*args)


# ----------------------------------------------------------------------------------------
# Full AtomTransformer forward
# ----------------------------------------------------------------------------------------
def atom_transformer_forward(params, xyz, type_, ext, atom, mulliken, coulomb,
                             mask_atoms, n_atoms):
    del mulliken, mask_atoms, n_atoms   # unused by the PyTorch forward as well
    bs, _, n_pts = xyz.shape

    t_idx = jnp.squeeze(type_ + 1, axis=1)                          # (bs, n_pts)
    a_idx = jnp.squeeze(atom + 1, axis=1)                           # (bs, n_pts)
    t_emb = jnp.take(params["type_embedding"], t_idx, axis=0)       # (bs, n_pts, 13)
    a_emb = jnp.take(params["atom_embedding"], a_idx, axis=0)       # (bs, n_pts, 16)

    x = jnp.concatenate([jnp.transpose(xyz, (0, 2, 1)), t_emb, a_emb], axis=-1)
    x_flat = (x * math.sqrt(D_MODEL)).reshape(bs * n_pts, D_MODEL)  # batch folded into M

    # additive attention mask: -1e9 where coulomb == 0 (masked_fill equivalent)
    mask_add = jnp.where(coulomb == 0, jnp.float32(-1e9), jnp.float32(0.0))
    # scatter_ one-hot of (type + 1)
    t1h = jax.nn.one_hot(t_idx, N_TYPES + 1, dtype=jnp.float32).reshape(
        bs * n_pts, N_TYPES + 1)

    slab, dp = fused_forward(x_flat, mask_add, t1h, params["packed"])

    slab = slab.reshape(bs, n_pts, HEAD_SLAB)
    scalar = jnp.transpose(slab[..., 0:4], (0, 2, 1))               # (bs, 4, n_pts) NCL
    magnetic = jnp.transpose(slab[..., 4:13], (0, 2, 1))            # (bs, 9, n_pts) NCL
    dipole = dp[:, 0:3]
    potential = dp[:, 3:4]
    return type_, ext, scalar, magnetic, dipole, potential


# ----------------------------------------------------------------------------------------
# Deterministic parameter init (synthetic; shapes follow the module __init__) + packing
# ----------------------------------------------------------------------------------------
def init_params(key):
    keys = iter(jax.random.split(key, 64))

    def nrm(shape, scale=0.05):
        return jax.random.normal(next(keys), shape, jnp.float32) * scale

    layers = []
    for _ in range(N_LAYERS):
        layers.append(dict(
            w_qkv=nrm((D_MODEL, 3 * HD)),            # nn.Linear(d_model, 3*n_heads*d_head)
            b_qkv=nrm((3 * HD,)),
            w_out=nrm((HD, D_MODEL)),                # nn.Linear(n_heads*d_head, d_model)
            b_out=nrm((D_MODEL,)),
            ln1_g=jnp.ones((D_MODEL,), jnp.float32),
            ln1_b=jnp.zeros((D_MODEL,), jnp.float32),
            w_ff1=nrm((D_MODEL, D_INNER)),
            b_ff1=nrm((D_INNER,)),
            w_ff2=nrm((D_INNER, D_MODEL)),
            b_ff2=nrm((D_MODEL,)),
            ln2_g=jnp.ones((D_MODEL,), jnp.float32),
            ln2_b=jnp.zeros((D_MODEL,), jnp.float32),
        ))

    heads = dict(
        w_scalar=nrm((D_MODEL + N_TYPES + 1, 4)),    # Conv1d(d_model + n_types + 1, 4, 1)
        b_scalar=nrm((4,)),
        w_magnetic=nrm((D_MODEL, 9)),                # Conv1d(d_model, 9, 1)
        b_magnetic=nrm((9,)),
        w_dipole=nrm((D_MODEL, 3)),                  # Linear(d_model, 3)
        b_dipole=nrm((3,)),
        w_potential=nrm((D_MODEL, 1)),               # Linear(d_model, 1)
        b_potential=nrm((1,)),
    )

    return dict(
        layers=layers, heads=heads,
        type_embedding=nrm((len(TYPES) + 1, N_TYPE_EMB), 1.0),
        atom_embedding=nrm((len(ATOMS) + 1, N_ATOM_EMB), 1.0),
    )


def pack_params(params):
    """Stack per-layer params into (N_LAYERS, ...) arrays + lane-pack head weights."""
    layers = params["layers"]
    st = lambda k: jnp.stack([lp[k] for lp in layers])

    w_qkv = st("w_qkv")                              # (L, 32, 96)
    b_qkv = st("b_qkv")[:, None, :]                  # (L, 1, 96)
    w_out = st("w_out")                              # (L, 32, 32)
    b_out = st("b_out")[:, None, :]                  # (L, 1, 32)
    ln = jnp.stack([jnp.stack([lp["ln1_g"], lp["ln1_b"], lp["ln2_g"], lp["ln2_b"]])
                    for lp in layers])               # (L, 4, 32)
    w_ff1 = st("w_ff1")                              # (L, 32, 64)
    b_ff1 = st("b_ff1")[:, None, :]                  # (L, 1, 64)
    w_ff2 = st("w_ff2")                              # (L, 64, 32)
    b_ff2 = st("b_ff2")[:, None, :]                  # (L, 1, 32)

    h = params["heads"]
    # scalar conv sees cat([x, t_one_hot], dim=1): rows 0:32 -> x channels, 32:37 -> one-hot.
    w_head_x = jnp.concatenate(
        [h["w_scalar"][:D_MODEL], h["w_magnetic"],
         jnp.zeros((D_MODEL, HEAD_SLAB - 13), jnp.float32)], axis=1)          # (32, 16)
    w_head_t = jnp.concatenate(
        [h["w_scalar"][D_MODEL:],
         jnp.zeros((N_TYPES + 1, HEAD_SLAB - 4), jnp.float32)], axis=1)       # (5, 16)
    b_head = jnp.concatenate(
        [h["b_scalar"], h["b_magnetic"],
         jnp.zeros((HEAD_SLAB - 13,), jnp.float32)])[None, :]                 # (1, 16)
    w_dp = jnp.concatenate([h["w_dipole"], h["w_potential"]], axis=1)         # (32, 4)
    b_dp = jnp.concatenate([h["b_dipole"], h["b_potential"]])[None, :]        # (1, 4)

    return (w_qkv, b_qkv, w_out, b_out, ln, w_ff1, b_ff1, w_ff2, b_ff2,
            w_head_x, w_head_t, b_head, w_dp, b_dp)


# ----------------------------------------------------------------------------------------
# Pure-JAX reference (for a correctness sanity check only)
# ----------------------------------------------------------------------------------------
def reference_forward(params, xyz, type_, ext, atom, coulomb):
    del ext
    hp = jax.lax.Precision.HIGHEST
    t_idx = jnp.squeeze(type_ + 1, axis=1)
    a_idx = jnp.squeeze(atom + 1, axis=1)
    t_emb = jnp.take(params["type_embedding"], t_idx, axis=0)
    a_emb = jnp.take(params["atom_embedding"], a_idx, axis=0)
    x = jnp.concatenate([jnp.transpose(xyz, (0, 2, 1)), t_emb, a_emb], axis=-1)
    x = x * math.sqrt(D_MODEL)
    mask = (coulomb == 0)[:, None, :, :]

    def heads(t):
        return t.reshape(BS, N_PTS, N_HEADS, D_HEAD).transpose(0, 2, 1, 3)

    for lp in params["layers"]:
        qkv = jnp.einsum('bsd,de->bse', x, lp["w_qkv"], precision=hp) + lp["b_qkv"]
        q, k, v = jnp.split(qkv, 3, axis=-1)
        q, k, v = heads(q), heads(k), heads(v)
        s = jnp.einsum('bhqd,bhkd->bhqk', q, k, precision=hp) / math.sqrt(D_HEAD)
        s = jnp.where(mask, jnp.float32(-1e9), s)
        p = jax.nn.softmax(s, axis=-1)
        ctx = jnp.einsum('bhqk,bhkd->bhqd', p, v, precision=hp)
        ctx = ctx.transpose(0, 2, 1, 3).reshape(BS, N_PTS, HD)
        attn = jnp.einsum('bsd,de->bse', ctx, lp["w_out"], precision=hp) + lp["b_out"]
        y = _layer_norm(x + attn, lp["ln1_g"], lp["ln1_b"])
        h1 = jax.nn.relu(jnp.einsum('bsd,df->bsf', y, lp["w_ff1"], precision=hp) + lp["b_ff1"])
        h2 = jnp.einsum('bsf,fd->bsd', h1, lp["w_ff2"], precision=hp) + lp["b_ff2"]
        x = _layer_norm(y + h2, lp["ln2_g"], lp["ln2_b"])

    hd = params["heads"]
    t1h = jax.nn.one_hot(t_idx, N_TYPES + 1, dtype=jnp.float32)
    xs = jnp.concatenate([x, t1h], axis=-1)
    scalar = jnp.einsum('bsc,co->bos', xs, hd["w_scalar"], precision=hp) \
        + hd["b_scalar"][None, :, None]
    magnetic = jnp.einsum('bsd,do->bos', x, hd["w_magnetic"], precision=hp) \
        + hd["b_magnetic"][None, :, None]
    px = jnp.mean(x, axis=1)
    dipole = px @ hd["w_dipole"] + hd["b_dipole"]
    potential = px @ hd["w_potential"] + hd["b_potential"]
    return scalar, magnetic, dipole, potential


def _check(name, got, want, tol=5e-2):
    err = float(jnp.max(jnp.abs(got - want)))
    assert err < tol, f"{name} mismatch: max abs err {err}"


# ----------------------------------------------------------------------------------------
if __name__ == "__main__":
    key = jax.random.PRNGKey(0)
    kp, kx, kt, ke, ka, km, kc, kz = jax.random.split(key, 8)
    params = init_params(kp)
    params["packed"] = pack_params(params)

    xyz = jax.random.normal(kx, (BS, 3, N_PTS), jnp.float32)
    type_ = jax.random.randint(kt, (BS, 1, N_PTS), -1, N_TYPES)       # in [-1, n_types-1]
    ext = jax.random.normal(ke, (BS, 1, N_PTS), jnp.float32)
    atom = jax.random.randint(ka, (BS, 1, N_PTS), -1, len(ATOMS))     # in [-1, len(atoms)-1]
    mulliken = jax.random.normal(km, (BS, 1, N_PTS), jnp.float32)
    coulomb = jax.random.normal(kc, (BS, N_PTS, N_PTS), jnp.float32)
    coulomb = jnp.where(jax.random.uniform(kz, (BS, N_PTS, N_PTS)) < 0.3, 0.0, coulomb)
    mask_atoms = jnp.ones((BS, N_PTS), jnp.bool_)
    n_atoms = jnp.full((BS,), N_PTS, jnp.int32)

    fwd = jax.jit(atom_transformer_forward)
    outs = fwd(params, xyz, type_, ext, atom, mulliken, coulomb, mask_atoms, n_atoms)
    outs = jax.tree_util.tree_map(jax.block_until_ready, outs)

    # shapes match the PyTorch forward's return conventions
    assert outs[2].shape == (BS, 4, N_PTS)
    assert outs[3].shape == (BS, 9, N_PTS)
    assert outs[4].shape == (BS, 3)
    assert outs[5].shape == (BS, 1)

    # numerical sanity vs. a pure-JAX reference of the same module
    ref_scalar, ref_magnetic, ref_dipole, ref_potential = reference_forward(
        params, xyz, type_, ext, atom, coulomb)
    _check("scalar", outs[2], ref_scalar)
    _check("magnetic", outs[3], ref_magnetic)
    _check("dipole", outs[4], ref_dipole)
    _check("potential", outs[5], ref_potential)

    print("KERNEL_OK")
</pallas_src>

<mosaic_0001>
module attributes {stable_mosaic.version = 11 : i64} {
  func.func @fused_forward_kernel(%arg0: i32, %arg1: memref<16x32xf32, #tpu.memory_space<vmem>>, %arg2: memref<2x8x8xf32, #tpu.memory_space<vmem>>, %arg3: memref<16x5xf32, #tpu.memory_space<vmem>>, %arg4: memref<2x32x96xf32, #tpu.memory_space<vmem>>, %arg5: memref<2x1x96xf32, #tpu.memory_space<vmem>>, %arg6: memref<2x32x32xf32, #tpu.memory_space<vmem>>, %arg7: memref<2x1x32xf32, #tpu.memory_space<vmem>>, %arg8: memref<2x4x32xf32, #tpu.memory_space<vmem>>, %arg9: memref<2x32x64xf32, #tpu.memory_space<vmem>>, %arg10: memref<2x1x64xf32, #tpu.memory_space<vmem>>, %arg11: memref<2x64x32xf32, #tpu.memory_space<vmem>>, %arg12: memref<2x1x32xf32, #tpu.memory_space<vmem>>, %arg13: memref<32x16xf32, #tpu.memory_space<vmem>>, %arg14: memref<5x16xf32, #tpu.memory_space<vmem>>, %arg15: memref<1x16xf32, #tpu.memory_space<vmem>>, %arg16: memref<32x4xf32, #tpu.memory_space<vmem>>, %arg17: memref<1x4xf32, #tpu.memory_space<vmem>>, %arg18: memref<16x16xf32, #tpu.memory_space<vmem>>, %arg19: memref<2x4xf32, #tpu.memory_space<vmem>>) attributes {dimension_semantics = [#tpu.dimension_semantics<arbitrary>], iteration_bounds = array<i64: 1>, scalar_prefetch = 0 : i64, scratch_operands = 0 : i64, tpu.core_type = #tpu.core_type<tc>, window_params = [{pipeline_mode = #tpu.pipeline_mode<synchronous>, transform_indices = @transform_0, window_bounds = array<i64: 16, 32>}, {pipeline_mode = #tpu.pipeline_mode<synchronous>, transform_indices = @transform_1, window_bounds = array<i64: 2, 8, 8>}, {pipeline_mode = #tpu.pipeline_mode<synchronous>, transform_indices = @transform_2, window_bounds = array<i64: 16, 5>}, {pipeline_mode = #tpu.pipeline_mode<synchronous>, transform_indices = @transform_3, window_bounds = array<i64: 2, 32, 96>}, {pipeline_mode = #tpu.pipeline_mode<synchronous>, transform_indices = @transform_4, window_bounds = array<i64: 2, 1, 96>}, {pipeline_mode = #tpu.pipeline_mode<synchronous>, transform_indices = @transform_5, window_bounds = array<i64: 2, 32, 32>}, {pipeline_mode = #tpu.pipeline_mode<synchronous>, transform_indices = @transform_6, window_bounds = array<i64: 2, 1, 32>}, {pipeline_mode = #tpu.pipeline_mode<synchronous>, transform_indices = @transform_7, window_bounds = array<i64: 2, 4, 32>}, {pipeline_mode = #tpu.pipeline_mode<synchronous>, transform_indices = @transform_8, window_bounds = array<i64: 2, 32, 64>}, {pipeline_mode = #tpu.pipeline_mode<synchronous>, transform_indices = @transform_9, window_bounds = array<i64: 2, 1, 64>}, {pipeline_mode = #tpu.pipeline_mode<synchronous>, transform_indices = @transform_10, window_bounds = array<i64: 2, 64, 32>}, {pipeline_mode = #tpu.pipeline_mode<synchronous>, transform_indices = @transform_11, window_bounds = array<i64: 2, 1, 32>}, {pipeline_mode = #tpu.pipeline_mode<synchronous>, transform_indices = @transform_12, window_bounds = array<i64: 32, 16>}, {pipeline_mode = #tpu.pipeline_mode<synchronous>, transform_indices = @transform_13, window_bounds = array<i64: 5, 16>}, {pipeline_mode = #tpu.pipeline_mode<synchronous>, transform_indices = @transform_14, window_bounds = array<i64: 1, 16>}, {pipeline_mode = #tpu.pipeline_mode<synchronous>, transform_indices = @transform_15, window_bounds = array<i64: 32, 4>}, {pipeline_mode = #tpu.pipeline_mode<synchronous>, transform_indices = @transform_16, window_bounds = array<i64: 1, 4>}, {pipeline_mode = #tpu.pipeline_mode<synchronous>, transform_indices = @transform_17, window_bounds = array<i64: 16, 16>}, {pipeline_mode = #tpu.pipeline_mode<synchronous>, transform_indices = @transform_18, window_bounds = array<i64: 2, 4>}]} {
    %c0 = arith.constant 0 : index
    %c0_0 = arith.constant 0 : index
    %0 = vector.load %arg1[%c0, %c0_0] : memref<16x32xf32, #tpu.memory_space<vmem>>, vector<16x32xf32>
    %c0_1 = arith.constant 0 : index
    %c0_2 = arith.constant 0 : index
    %c0_3 = arith.constant 0 : index
    %1 = vector.load %arg2[%c0_1, %c0_2, %c0_3] : memref<2x8x8xf32, #tpu.memory_space<vmem>>, vector<2x8x8xf32>
    %c0_4 = arith.constant 0 : index
    %c0_5 = arith.constant 0 : index
    %c0_6 = arith.constant 0 : index
    %2 = vector.load %arg4[%c0_4, %c0_5, %c0_6] : memref<2x32x96xf32, #tpu.memory_space<vmem>>, vector<1x32x96xf32>
    %3 = vector.shape_cast %2 : vector<1x32x96xf32> to vector<32x96xf32>
    %cst = arith.constant dense<0.000000e+00> : vector<16x96xf32>
    %4 = tpu.matmul %0, %3, %cst {dimension_numbers = #tpu.dot_dimension_numbers<[1], [0], [0], [1], [0, 0, 1, 1], [], []>} : vector<16x32xf32>, vector<32x96xf32>, vector<16x96xf32> -> vector<16x96xf32>
    %c0_7 = arith.constant 0 : index
    %c0_8 = arith.constant 0 : index
    %c0_9 = arith.constant 0 : index
    %5 = vector.load %arg5[%c0_7, %c0_8, %c0_9] : memref<2x1x96xf32, #tpu.memory_space<vmem>>, vector<1x1x96xf32>
    %6 = vector.shape_cast %5 : vector<1x1x96xf32> to vector<1x96xf32>
    %7 = vector.broadcast %6 : vector<1x96xf32> to vector<16x96xf32>
    %8 = arith.addf %4, %7 : vector<16x96xf32>
    %9 = vector.extract_strided_slice %8 {offsets = [0, 0], sizes = [16, 32], strides = [1, 1]} : vector<16x96xf32> to vector<16x32xf32>
    %10 = vector.shape_cast %9 : vector<16x32xf32> to vector<2x8x32xf32>
    %11 = vector.extract_strided_slice %8 {offsets = [0, 32], sizes = [16, 32], strides = [1, 1]} : vector<16x96xf32> to vector<16x32xf32>
    %12 = vector.shape_cast %11 : vector<16x32xf32> to vector<2x8x32xf32>
    %13 = vector.extract_strided_slice %8 {offsets = [0, 64], sizes = [16, 32], strides = [1, 1]} : vector<16x96xf32> to vector<16x32xf32>
    %14 = vector.shape_cast %13 : vector<16x32xf32> to vector<2x8x32xf32>
    %15 = vector.extract_strided_slice %10 {offsets = [0, 0, 0], sizes = [2, 8, 8], strides = [1, 1, 1]} : vector<2x8x32xf32> to vector<2x8x8xf32>
    %16 = vector.extract_strided_slice %12 {offsets = [0, 0, 0], sizes = [2, 8, 8], strides = [1, 1, 1]} : vector<2x8x32xf32> to vector<2x8x8xf32>
    "tpu.trace_start"() <{level = 10 : i32, message = "bqd,bkd->bqk"}> : () -> ()
    %cst_10 = arith.constant dense<0.000000e+00> : vector<2x8x8xf32>
    %17 = tpu.matmul %15, %16, %cst_10 {dimension_numbers = #tpu.dot_dimension_numbers<[2], [2], [1], [1], [0, 0, 0, 1, 1, 1], [0], [0]>} : vector<2x8x8xf32>, vector<2x8x8xf32>, vector<2x8x8xf32> -> vector<2x8x8xf32>
    "tpu.trace_stop"() : () -> ()
    %cst_11 = arith.constant 0.353553385 : f32
    %18 = vector.broadcast %cst_11 : f32 to vector<2x8x8xf32>
    %19 = arith.mulf %17, %18 : vector<2x8x8xf32>
    %20 = arith.addf %19, %1 : vector<2x8x8xf32>
    %cst_12 = arith.constant dense<0xFF800000> : vector<2x8xf32>
    %21 = vector.multi_reduction <maximumf>, %20, %cst_12 [2] : vector<2x8x8xf32> to vector<2x8xf32>
    %22 = vector.shape_cast %21 : vector<2x8xf32> to vector<2x8x1xf32>
    %23 = vector.broadcast %22 : vector<2x8x1xf32> to vector<2x8x8xf32>
    %24 = arith.subf %20, %23 : vector<2x8x8xf32>
    %25 = math.exp %24 : vector<2x8x8xf32>
    %cst_13 = arith.constant dense<0.000000e+00> : vector<2x8xf32>
    %26 = vector.multi_reduction <add>, %25, %cst_13 [2] : vector<2x8x8xf32> to vector<2x8xf32>
    %27 = vector.shape_cast %26 : vector<2x8xf32> to vector<2x8x1xf32>
    %28 = tpu.reciprocal %27 {approx = true} : vector<2x8x1xf32> -> vector<2x8x1xf32>
    %29 = vector.broadcast %28 : vector<2x8x1xf32> to vector<2x8x8xf32>
    %30 = arith.mulf %25, %29 : vector<2x8x8xf32>
    %31 = vector.extract_strided_slice %14 {offsets = [0, 0, 0], sizes = [2, 8, 8], strides = [1, 1, 1]} : vector<2x8x32xf32> to vector<2x8x8xf32>
    "tpu.trace_start"() <{level = 10 : i32, message = "bqk,bkd->bqd"}> : () -> ()
    %cst_14 = arith.constant dense<0.000000e+00> : vector<2x8x8xf32>
    %32 = tpu.matmul %30, %31, %cst_14 {dimension_numbers = #tpu.dot_dimension_numbers<[2], [1], [1], [2], [0, 0, 0, 1, 1, 2], [0], [0]>} : vector<2x8x8xf32>, vector<2x8x8xf32>, vector<2x8x8xf32> -> vector<2x8x8xf32>
    "tpu.trace_stop"() : () -> ()
    %33 = vector.extract_strided_slice %10 {offsets = [0, 0, 8], sizes = [2, 8, 8], strides = [1, 1, 1]} : vector<2x8x32xf32> to vector<2x8x8xf32>
    %34 = vector.extract_strided_slice %12 {offsets = [0, 0, 8], sizes = [2, 8, 8], strides = [1, 1, 1]} : vector<2x8x32xf32> to vector<2x8x8xf32>
    "tpu.trace_start"() <{level = 10 : i32, message = "bqd,bkd->bqk"}> : () -> ()
    %cst_15 = arith.constant dense<0.000000e+00> : vector<2x8x8xf32>
    %35 = tpu.matmul %33, %34, %cst_15 {dimension_numbers = #tpu.dot_dimension_numbers<[2], [2], [1], [1], [0, 0, 0, 1, 1, 1], [0], [0]>} : vector<2x8x8xf32>, vector<2x8x8xf32>, vector<2x8x8xf32> -> vector<2x8x8xf32>
    "tpu.trace_stop"() : () -> ()
    %cst_16 = arith.constant 0.353553385 : f32
    %36 = vector.broadcast %cst_16 : f32 to vector<2x8x8xf32>
    %37 = arith.mulf %35, %36 : vector<2x8x8xf32>
    %38 = arith.addf %37, %1 : vector<2x8x8xf32>
    %cst_17 = arith.constant dense<0xFF800000> : vector<2x8xf32>
    %39 = vector.multi_reduction <maximumf>, %38, %cst_17 [2] : vector<2x8x8xf32> to vector<2x8xf32>
    %40 = vector.shape_cast %39 : vector<2x8xf32> to vector<2x8x1xf32>
    %41 = vector.broadcast %40 : vector<2x8x1xf32> to vector<2x8x8xf32>
    %42 = arith.subf %38, %41 : vector<2x8x8xf32>
    %43 = math.exp %42 : vector<2x8x8xf32>
    %cst_18 = arith.constant dense<0.000000e+00> : vector<2x8xf32>
    %44 = vector.multi_reduction <add>, %43, %cst_18 [2] : vector<2x8x8xf32> to vector<2x8xf32>
    %45 = vector.shape_cast %44 : vector<2x8xf32> to vector<2x8x1xf32>
    %46 = tpu.reciprocal %45 {approx = true} : vector<2x8x1xf32> -> vector<2x8x1xf32>
    %47 = vector.broadcast %46 : vector<2x8x1xf32> to vector<2x8x8xf32>
    %48 = arith.mulf %43, %47 : vector<2x8x8xf32>
    %49 = vector.extract_strided_slice %14 {offsets = [0, 0, 8], sizes = [2, 8, 8], strides = [1, 1, 1]} : vector<2x8x32xf32> to vector<2x8x8xf32>
    "tpu.trace_start"() <{level = 10 : i32, message = "bqk,bkd->bqd"}> : () -> ()
    %cst_19 = arith.constant dense<0.000000e+00> : vector<2x8x8xf32>
    %50 = tpu.matmul %48, %49, %cst_19 {dimension_numbers = #tpu.dot_dimension_numbers<[2], [1], [1], [2], [0, 0, 0, 1, 1, 2], [0], [0]>} : vector<2x8x8xf32>, vector<2x8x8xf32>, vector<2x8x8xf32> -> vector<2x8x8xf32>
    "tpu.trace_stop"() : () -> ()
    %51 = vector.extract_strided_slice %10 {offsets = [0, 0, 16], sizes = [2, 8, 8], strides = [1, 1, 1]} : vector<2x8x32xf32> to vector<2x8x8xf32>
    %52 = vector.extract_strided_slice %12 {offsets = [0, 0, 16], sizes = [2, 8, 8], strides = [1, 1, 1]} : vector<2x8x32xf32> to vector<2x8x8xf32>
    "tpu.trace_start"() <{level = 10 : i32, message = "bqd,bkd->bqk"}> : () -> ()
    %cst_20 = arith.constant dense<0.000000e+00> : vector<2x8x8xf32>
    %53 = tpu.matmul %51, %52, %cst_20 {dimension_numbers = #tpu.dot_dimension_numbers<[2], [2], [1], [1], [0, 0, 0, 1, 1, 1], [0], [0]>} : vector<2x8x8xf32>, vector<2x8x8xf32>, vector<2x8x8xf32> -> vector<2x8x8xf32>
    "tpu.trace_stop"() : () -> ()
    %cst_21 = arith.constant 0.353553385 : f32
    %54 = vector.broadcast %cst_21 : f32 to vector<2x8x8xf32>
    %55 = arith.mulf %53, %54 : vector<2x8x8xf32>
    %56 = arith.addf %55, %1 : vector<2x8x8xf32>
    %cst_22 = arith.constant dense<0xFF800000> : vector<2x8xf32>
    %57 = vector.multi_reduction <maximumf>, %56, %cst_22 [2] : vector<2x8x8xf32> to vector<2x8xf32>
    %58 = vector.shape_cast %57 : vector<2x8xf32> to vector<2x8x1xf32>
    %59 = vector.broadcast %58 : vector<2x8x1xf32> to vector<2x8x8xf32>
    %60 = arith.subf %56, %59 : vector<2x8x8xf32>
    %61 = math.exp %60 : vector<2x8x8xf32>
    %cst_23 = arith.constant dense<0.000000e+00> : vector<2x8xf32>
    %62 = vector.multi_reduction <add>, %61, %cst_23 [2] : vector<2x8x8xf32> to vector<2x8xf32>
    %63 = vector.shape_cast %62 : vector<2x8xf32> to vector<2x8x1xf32>
    %64 = tpu.reciprocal %63 {approx = true} : vector<2x8x1xf32> -> vector<2x8x1xf32>
    %65 = vector.broadcast %64 : vector<2x8x1xf32> to vector<2x8x8xf32>
    %66 = arith.mulf %61, %65 : vector<2x8x8xf32>
    %67 = vector.extract_strided_slice %14 {offsets = [0, 0, 16], sizes = [2, 8, 8], strides = [1, 1, 1]} : vector<2x8x32xf32> to vector<2x8x8xf32>
    "tpu.trace_start"() <{level = 10 : i32, message = "bqk,bkd->bqd"}> : () -> ()
    %cst_24 = arith.constant dense<0.000000e+00> : vector<2x8x8xf32>
    %68 = tpu.matmul %66, %67, %cst_24 {dimension_numbers = #tpu.dot_dimension_numbers<[2], [1], [1], [2], [0, 0, 0, 1, 1, 2], [0], [0]>} : vector<2x8x8xf32>, vector<2x8x8xf32>, vector<2x8x8xf32> -> vector<2x8x8xf32>
    "tpu.trace_stop"() : () -> ()
    %69 = vector.extract_strided_slice %10 {offsets = [0, 0, 24], sizes = [2, 8, 8], strides = [1, 1, 1]} : vector<2x8x32xf32> to vector<2x8x8xf32>
    %70 = vector.extract_strided_slice %12 {offsets = [0, 0, 24], sizes = [2, 8, 8], strides = [1, 1, 1]} : vector<2x8x32xf32> to vector<2x8x8xf32>
    "tpu.trace_start"() <{level = 10 : i32, message = "bqd,bkd->bqk"}> : () -> ()
    %cst_25 = arith.constant dense<0.000000e+00> : vector<2x8x8xf32>
    %71 = tpu.matmul %69, %70, %cst_25 {dimension_numbers = #tpu.dot_dimension_numbers<[2], [2], [1], [1], [0, 0, 0, 1, 1, 1], [0], [0]>} : vector<2x8x8xf32>, vector<2x8x8xf32>, vector<2x8x8xf32> -> vector<2x8x8xf32>
    "tpu.trace_stop"() : () -> ()
    %cst_26 = arith.constant 0.353553385 : f32
    %72 = vector.broadcast %cst_26 : f32 to vector<2x8x8xf32>
    %73 = arith.mulf %71, %72 : vector<2x8x8xf32>
    %74 = arith.addf %73, %1 : vector<2x8x8xf32>
    %cst_27 = arith.constant dense<0xFF800000> : vector<2x8xf32>
    %75 = vector.multi_reduction <maximumf>, %74, %cst_27 [2] : vector<2x8x8xf32> to vector<2x8xf32>
    %76 = vector.shape_cast %75 : vector<2x8xf32> to vector<2x8x1xf32>
    %77 = vector.broadcast %76 : vector<2x8x1xf32> to vector<2x8x8xf32>
    %78 = arith.subf %74, %77 : vector<2x8x8xf32>
    %79 = math.exp %78 : vector<2x8x8xf32>
    %cst_28 = arith.constant dense<0.000000e+00> : vector<2x8xf32>
    %80 = vector.multi_reduction <add>, %79, %cst_28 [2] : vector<2x8x8xf32> to vector<2x8xf32>
    %81 = vector.shape_cast %80 : vector<2x8xf32> to vector<2x8x1xf32>
    %82 = tpu.reciprocal %81 {approx = true} : vector<2x8x1xf32> -> vector<2x8x1xf32>
    %83 = vector.broadcast %82 : vector<2x8x1xf32> to vector<2x8x8xf32>
    %84 = arith.mulf %79, %83 : vector<2x8x8xf32>
    %85 = vector.extract_strided_slice %14 {offsets = [0, 0, 24], sizes = [2, 8, 8], strides = [1, 1, 1]} : vector<2x8x32xf32> to vector<2x8x8xf32>
    "tpu.trace_start"() <{level = 10 : i32, message = "bqk,bkd->bqd"}> : () -> ()
    %cst_29 = arith.constant dense<0.000000e+00> : vector<2x8x8xf32>
    %86 = tpu.matmul %84, %85, %cst_29 {dimension_numbers = #tpu.dot_dimension_numbers<[2], [1], [1], [2], [0, 0, 0, 1, 1, 2], [0], [0]>} : vector<2x8x8xf32>, vector<2x8x8xf32>, vector<2x8x8xf32> -> vector<2x8x8xf32>
    "tpu.trace_stop"() : () -> ()
    %87 = tpu.concatenate %32, %50, %68, %86 in 2 : vector<2x8x8xf32>, vector<2x8x8xf32>, vector<2x8x8xf32>, vector<2x8x8xf32> -> vector<2x8x32xf32>
    %88 = vector.shape_cast %87 : vector<2x8x32xf32> to vector<16x32xf32>
    %c0_30 = arith.constant 0 : index
    %c0_31 = arith.constant 0 : index
    %c0_32 = arith.constant 0 : index
    %89 = vector.load %arg6[%c0_30, %c0_31, %c0_32] : memref<2x32x32xf32, #tpu.memory_space<vmem>>, vector<1x32x32xf32>
    %90 = vector.shape_cast %89 : vector<1x32x32xf32> to vector<32x32xf32>
    %cst_33 = arith.constant dense<0.000000e+00> : vector<16x32xf32>
    %91 = tpu.matmul %88, %90, %cst_33 {dimension_numbers = #tpu.dot_dimension_numbers<[1], [0], [0], [1], [0, 0, 1, 1], [], []>} : vector<16x32xf32>, vector<32x32xf32>, vector<16x32xf32> -> vector<16x32xf32>
    %c0_34 = arith.constant 0 : index
    %c0_35 = arith.constant 0 : index
    %c0_36 = arith.constant 0 : index
    %92 = vector.load %arg7[%c0_34, %c0_35, %c0_36] : memref<2x1x32xf32, #tpu.memory_space<vmem>>, vector<1x1x32xf32>
    %93 = vector.shape_cast %92 : vector<1x1x32xf32> to vector<1x32xf32>
    %94 = vector.broadcast %93 : vector<1x32xf32> to vector<16x32xf32>
    %95 = arith.addf %91, %94 : vector<16x32xf32>
    %c0_37 = arith.constant 0 : index
    %c0_38 = arith.constant 0 : index
    %c0_39 = arith.constant 0 : index
    %96 = vector.load %arg8[%c0_37, %c0_38, %c0_39] : memref<2x4x32xf32, #tpu.memory_space<vmem>>, vector<1x4x32xf32>
    %97 = vector.shape_cast %96 : vector<1x4x32xf32> to vector<4x32xf32>
    %98 = arith.addf %0, %95 : vector<16x32xf32>
    %99 = vector.extract_strided_slice %97 {offsets = [0, 0], sizes = [1, 32], strides = [1, 1]} : vector<4x32xf32> to vector<1x32xf32>
    %100 = vector.extract_strided_slice %97 {offsets = [1, 0], sizes = [1, 32], strides = [1, 1]} : vector<4x32xf32> to vector<1x32xf32>
    %cst_40 = arith.constant dense<0.000000e+00> : vector<16xf32>
    %101 = vector.multi_reduction <add>, %98, %cst_40 [1] : vector<16x32xf32> to vector<16xf32>
    %102 = vector.shape_cast %101 : vector<16xf32> to vector<16x1xf32>
    %cst_41 = arith.constant 3.200000e+01 : f32
    %103 = vector.broadcast %cst_41 : f32 to vector<16x1xf32>
    %104 = arith.divf %102, %103 : vector<16x1xf32>
    %105 = vector.broadcast %104 : vector<16x1xf32> to vector<16x32xf32>
    %106 = arith.subf %98, %105 : vector<16x32xf32>
    %107 = arith.mulf %106, %106 : vector<16x32xf32>
    %cst_42 = arith.constant dense<0.000000e+00> : vector<16xf32>
    %108 = vector.multi_reduction <add>, %107, %cst_42 [1] : vector<16x32xf32> to vector<16xf32>
    %109 = vector.shape_cast %108 : vector<16xf32> to vector<16x1xf32>
    %cst_43 = arith.constant 3.200000e+01 : f32
    %110 = vector.broadcast %cst_43 : f32 to vector<16x1xf32>
    %111 = arith.divf %109, %110 : vector<16x1xf32>
    %112 = vector.broadcast %104 : vector<16x1xf32> to vector<16x32xf32>
    %113 = arith.subf %98, %112 : vector<16x32xf32>
    %cst_44 = arith.constant 9.99999974E-6 : f32
    %114 = vector.broadcast %cst_44 : f32 to vector<16x1xf32>
    %115 = arith.addf %111, %114 : vector<16x1xf32>
    %116 = math.rsqrt %115 : vector<16x1xf32>
    %117 = vector.broadcast %116 : vector<16x1xf32> to vector<16x32xf32>
    %118 = arith.mulf %113, %117 : vector<16x32xf32>
    %119 = vector.broadcast %99 : vector<1x32xf32> to vector<16x32xf32>
    %120 = arith.mulf %118, %119 : vector<16x32xf32>
    %121 = vector.broadcast %100 : vector<1x32xf32> to vector<16x32xf32>
    %122 = arith.addf %120, %121 : vector<16x32xf32>
    %c0_45 = arith.constant 0 : index
    %c0_46 = arith.constant 0 : index
    %c0_47 = arith.constant 0 : index
    %123 = vector.load %arg9[%c0_45, %c0_46, %c0_47] : memref<2x32x64xf32, #tpu.memory_space<vmem>>, vector<1x32x64xf32>
    %124 = vector.shape_cast %123 : vector<1x32x64xf32> to vector<32x64xf32>
    %cst_48 = arith.constant dense<0.000000e+00> : vector<16x64xf32>
    %125 = tpu.matmul %122, %124, %cst_48 {dimension_numbers = #tpu.dot_dimension_numbers<[1], [0], [0], [1], [0, 0, 1, 1], [], []>} : vector<16x32xf32>, vector<32x64xf32>, vector<16x64xf32> -> vector<16x64xf32>
    %c0_49 = arith.constant 0 : index
    %c0_50 = arith.constant 0 : index
    %c0_51 = arith.constant 0 : index
    %126 = vector.load %arg10[%c0_49, %c0_50, %c0_51] : memref<2x1x64xf32, #tpu.memory_space<vmem>>, vector<1x1x64xf32>
    %127 = vector.shape_cast %126 : vector<1x1x64xf32> to vector<1x64xf32>
    %128 = vector.broadcast %127 : vector<1x64xf32> to vector<16x64xf32>
    %129 = arith.addf %125, %128 : vector<16x64xf32>
    %cst_52 = arith.constant 0.000000e+00 : f32
    %130 = vector.broadcast %cst_52 : f32 to vector<16x64xf32>
    %131 = arith.maximumf %129, %130 : vector<16x64xf32>
    %c0_53 = arith.constant 0 : index
    %c0_54 = arith.constant 0 : index
    %c0_55 = arith.constant 0 : index
    %132 = vector.load %arg11[%c0_53, %c0_54, %c0_55] : memref<2x64x32xf32, #tpu.memory_space<vmem>>, vector<1x64x32xf32>
    %133 = vector.shape_cast %132 : vector<1x64x32xf32> to vector<64x32xf32>
    %cst_56 = arith.constant dense<0.000000e+00> : vector<16x32xf32>
    %134 = tpu.matmul %131, %133, %cst_56 {dimension_numbers = #tpu.dot_dimension_numbers<[1], [0], [0], [1], [0, 0, 1, 1], [], []>} : vector<16x64xf32>, vector<64x32xf32>, vector<16x32xf32> -> vector<16x32xf32>
    %c0_57 = arith.constant 0 : index
    %c0_58 = arith.constant 0 : index
    %c0_59 = arith.constant 0 : index
    %135 = vector.load %arg12[%c0_57, %c0_58, %c0_59] : memref<2x1x32xf32, #tpu.memory_space<vmem>>, vector<1x1x32xf32>
    %136 = vector.shape_cast %135 : vector<1x1x32xf32> to vector<1x32xf32>
    %137 = vector.broadcast %136 : vector<1x32xf32> to vector<16x32xf32>
    %138 = arith.addf %134, %137 : vector<16x32xf32>
    %139 = arith.addf %122, %138 : vector<16x32xf32>
    %140 = vector.extract_strided_slice %97 {offsets = [2, 0], sizes = [1, 32], strides = [1, 1]} : vector<4x32xf32> to vector<1x32xf32>
    %141 = vector.extract_strided_slice %97 {offsets = [3, 0], sizes = [1, 32], strides = [1, 1]} : vector<4x32xf32> to vector<1x32xf32>
    %cst_60 = arith.constant dense<0.000000e+00> : vector<16xf32>
    %142 = vector.multi_reduction <add>, %139, %cst_60 [1] : vector<16x32xf32> to vector<16xf32>
    %143 = vector.shape_cast %142 : vector<16xf32> to vector<16x1xf32>
    %cst_61 = arith.constant 3.200000e+01 : f32
    %144 = vector.broadcast %cst_61 : f32 to vector<16x1xf32>
    %145 = arith.divf %143, %144 : vector<16x1xf32>
    %146 = vector.broadcast %145 : vector<16x1xf32> to vector<16x32xf32>
    %147 = arith.subf %139, %146 : vector<16x32xf32>
    %148 = arith.mulf %147, %147 : vector<16x32xf32>
    %cst_62 = arith.constant dense<0.000000e+00> : vector<16xf32>
    %149 = vector.multi_reduction <add>, %148, %cst_62 [1] : vector<16x32xf32> to vector<16xf32>
    %150 = vector.shape_cast %149 : vector<16xf32> to vector<16x1xf32>
    %cst_63 = arith.constant 3.200000e+01 : f32
    %151 = vector.broadcast %cst_63 : f32 to vector<16x1xf32>
    %152 = arith.divf %150, %151 : vector<16x1xf32>
    %153 = vector.broadcast %145 : vector<16x1xf32> to vector<16x32xf32>
    %154 = arith.subf %139, %153 : vector<16x32xf32>
    %cst_64 = arith.constant 9.99999974E-6 : f32
    %155 = vector.broadcast %cst_64 : f32 to vector<16x1xf32>
    %156 = arith.addf %152, %155 : vector<16x1xf32>
    %157 = math.rsqrt %156 : vector<16x1xf32>
    %158 = vector.broadcast %157 : vector<16x1xf32> to vector<16x32xf32>
    %159 = arith.mulf %154, %158 : vector<16x32xf32>
    %160 = vector.broadcast %140 : vector<1x32xf32> to vector<16x32xf32>
    %161 = arith.mulf %159, %160 : vector<16x32xf32>
    %162 = vector.broadcast %141 : vector<1x32xf32> to vector<16x32xf32>
    %163 = arith.addf %161, %162 : vector<16x32xf32>
    %c1 = arith.constant 1 : index
    %c0_65 = arith.constant 0 : index
    %c0_66 = arith.constant 0 : index
    %164 = vector.load %arg4[%c1, %c0_65, %c0_66] : memref<2x32x96xf32, #tpu.memory_space<vmem>>, vector<1x32x96xf32>
    %165 = vector.shape_cast %164 : vector<1x32x96xf32> to vector<32x96xf32>
    %cst_67 = arith.constant dense<0.000000e+00> : vector<16x96xf32>
    %166 = tpu.matmul %163, %165, %cst_67 {dimension_numbers = #tpu.dot_dimension_numbers<[1], [0], [0], [1], [0, 0, 1, 1], [], []>} : vector<16x32xf32>, vector<32x96xf32>, vector<16x96xf32> -> vector<16x96xf32>
    %c1_68 = arith.constant 1 : index
    %c0_69 = arith.constant 0 : index
    %c0_70 = arith.constant 0 : index
    %167 = vector.load %arg5[%c1_68, %c0_69, %c0_70] : memref<2x1x96xf32, #tpu.memory_space<vmem>>, vector<1x1x96xf32>
    %168 = vector.shape_cast %167 : vector<1x1x96xf32> to vector<1x96xf32>
    %169 = vector.broadcast %168 : vector<1x96xf32> to vector<16x96xf32>
    %170 = arith.addf %166, %169 : vector<16x96xf32>
    %171 = vector.extract_strided_slice %170 {offsets = [0, 0], sizes = [16, 32], strides = [1, 1]} : vector<16x96xf32> to vector<16x32xf32>
    %172 = vector.shape_cast %171 : vector<16x32xf32> to vector<2x8x32xf32>
    %173 = vector.extract_strided_slice %170 {offsets = [0, 32], sizes = [16, 32], strides = [1, 1]} : vector<16x96xf32> to vector<16x32xf32>
    %174 = vector.shape_cast %173 : vector<16x32xf32> to vector<2x8x32xf32>
    %175 = vector.extract_strided_slice %170 {offsets = [0, 64], sizes = [16, 32], strides = [1, 1]} : vector<16x96xf32> to vector<16x32xf32>
    %176 = vector.shape_cast %175 : vector<16x32xf32> to vector<2x8x32xf32>
    %177 = vector.extract_strided_slice %172 {offsets = [0, 0, 0], sizes = [2, 8, 8], strides = [1, 1, 1]} : vector<2x8x32xf32> to vector<2x8x8xf32>
    %178 = vector.extract_strided_slice %174 {offsets = [0, 0, 0], sizes = [2, 8, 8], strides = [1, 1, 1]} : vector<2x8x32xf32> to vector<2x8x8xf32>
    "tpu.trace_start"() <{level = 10 : i32, message = "bqd,bkd->bqk"}> : () -> ()
    %cst_71 = arith.constant dense<0.000000e+00> : vector<2x8x8xf32>
    %179 = tpu.matmul %177, %178, %cst_71 {dimension_numbers = #tpu.dot_dimension_numbers<[2], [2], [1], [1], [0, 0, 0, 1, 1, 1], [0], [0]>} : vector<2x8x8xf32>, vector<2x8x8xf32>, vector<2x8x8xf32> -> vector<2x8x8xf32>
    "tpu.trace_stop"() : () -> ()
    %cst_72 = arith.constant 0.353553385 : f32
    %180 = vector.broadcast %cst_72 : f32 to vector<2x8x8xf32>
    %181 = arith.mulf %179, %180 : vector<2x8x8xf32>
    %182 = arith.addf %181, %1 : vector<2x8x8xf32>
    %cst_73 = arith.constant dense<0xFF800000> : vector<2x8xf32>
    %183 = vector.multi_reduction <maximumf>, %182, %cst_73 [2] : vector<2x8x8xf32> to vector<2x8xf32>
    %184 = vector.shape_cast %183 : vector<2x8xf32> to vector<2x8x1xf32>
    %185 = vector.broadcast %184 : vector<2x8x1xf32> to vector<2x8x8xf32>
    %186 = arith.subf %182, %185 : vector<2x8x8xf32>
    %187 = math.exp %186 : vector<2x8x8xf32>
    %cst_74 = arith.constant dense<0.000000e+00> : vector<2x8xf32>
    %188 = vector.multi_reduction <add>, %187, %cst_74 [2] : vector<2x8x8xf32> to vector<2x8xf32>
    %189 = vector.shape_cast %188 : vector<2x8xf32> to vector<2x8x1xf32>
    %190 = tpu.reciprocal %189 {approx = true} : vector<2x8x1xf32> -> vector<2x8x1xf32>
    %191 = vector.broadcast %190 : vector<2x8x1xf32> to vector<2x8x8xf32>
    %192 = arith.mulf %187, %191 : vector<2x8x8xf32>
    %193 = vector.extract_strided_slice %176 {offsets = [0, 0, 0], sizes = [2, 8, 8], strides = [1, 1, 1]} : vector<2x8x32xf32> to vector<2x8x8xf32>
    "tpu.trace_start"() <{level = 10 : i32, message = "bqk,bkd->bqd"}> : () -> ()
    %cst_75 = arith.constant dense<0.000000e+00> : vector<2x8x8xf32>
    %194 = tpu.matmul %192, %193, %cst_75 {dimension_numbers = #tpu.dot_dimension_numbers<[2], [1], [1], [2], [0, 0, 0, 1, 1, 2], [0], [0]>} : vector<2x8x8xf32>, vector<2x8x8xf32>, vector<2x8x8xf32> -> vector<2x8x8xf32>
    "tpu.trace_stop"() : () -> ()
    %195 = vector.extract_strided_slice %172 {offsets = [0, 0, 8], sizes = [2, 8, 8], strides = [1, 1, 1]} : vector<2x8x32xf32> to vector<2x8x8xf32>
    %196 = vector.extract_strided_slice %174 {offsets = [0, 0, 8], sizes = [2, 8, 8], strides = [1, 1, 1]} : vector<2x8x32xf32> to vector<2x8x8xf32>
    "tpu.trace_start"() <{level = 10 : i32, message = "bqd,bkd->bqk"}> : () -> ()
    %cst_76 = arith.constant dense<0.000000e+00> : vector<2x8x8xf32>
    %197 = tpu.matmul %195, %196, %cst_76 {dimension_numbers = #tpu.dot_dimension_numbers<[2], [2], [1], [1], [0, 0, 0, 1, 1, 1], [0], [0]>} : vector<2x8x8xf32>, vector<2x8x8xf32>, vector<2x8x8xf32> -> vector<2x8x8xf32>
    "tpu.trace_stop"() : () -> ()
    %cst_77 = arith.constant 0.353553385 : f32
    %198 = vector.broadcast %cst_77 : f32 to vector<2x8x8xf32>
    %199 = arith.mulf %197, %198 : vector<2x8x8xf32>
    %200 = arith.addf %199, %1 : vector<2x8x8xf32>
    %cst_78 = arith.constant dense<0xFF800000> : vector<2x8xf32>
    %201 = vector.multi_reduction <maximumf>, %200, %cst_78 [2] : vector<2x8x8xf32> to vector<2x8xf32>
    %202 = vector.shape_cast %201 : vector<2x8xf32> to vector<2x8x1xf32>
    %203 = vector.broadcast %202 : vector<2x8x1xf32> to vector<2x8x8xf32>
    %204 = arith.subf %200, %203 : vector<2x8x8xf32>
    %205 = math.exp %204 : vector<2x8x8xf32>
    %cst_79 = arith.constant dense<0.000000e+00> : vector<2x8xf32>
    %206 = vector.multi_reduction <add>, %205, %cst_79 [2] : vector<2x8x8xf32> to vector<2x8xf32>
    %207 = vector.shape_cast %206 : vector<2x8xf32> to vector<2x8x1xf32>
    %208 = tpu.reciprocal %207 {approx = true} : vector<2x8x1xf32> -> vector<2x8x1xf32>
    %209 = vector.broadcast %208 : vector<2x8x1xf32> to vector<2x8x8xf32>
    %210 = arith.mulf %205, %209 : vector<2x8x8xf32>
    %211 = vector.extract_strided_slice %176 {offsets = [0, 0, 8], sizes = [2, 8, 8], strides = [1, 1, 1]} : vector<2x8x32xf32> to vector<2x8x8xf32>
    "tpu.trace_start"() <{level = 10 : i32, message = "bqk,bkd->bqd"}> : () -> ()
    %cst_80 = arith.constant dense<0.000000e+00> : vector<2x8x8xf32>
    %212 = tpu.matmul %210, %211, %cst_80 {dimension_numbers = #tpu.dot_dimension_numbers<[2], [1], [1], [2], [0, 0, 0, 1, 1, 2], [0], [0]>} : vector<2x8x8xf32>, vector<2x8x8xf32>, vector<2x8x8xf32> -> vector<2x8x8xf32>
    "tpu.trace_stop"() : () -> ()
    %213 = vector.extract_strided_slice %172 {offsets = [0, 0, 16], sizes = [2, 8, 8], strides = [1, 1, 1]} : vector<2x8x32xf32> to vector<2x8x8xf32>
    %214 = vector.extract_strided_slice %174 {offsets = [0, 0, 16], sizes = [2, 8, 8], strides = [1, 1, 1]} : vector<2x8x32xf32> to vector<2x8x8xf32>
    "tpu.trace_start"() <{level = 10 : i32, message = "bqd,bkd->bqk"}> : () -> ()
    %cst_81 = arith.constant dense<0.000000e+00> : vector<2x8x8xf32>
    %215 = tpu.matmul %213, %214, %cst_81 {dimension_numbers = #tpu.dot_dimension_numbers<[2], [2], [1], [1], [0, 0, 0, 1, 1, 1], [0], [0]>} : vector<2x8x8xf32>, vector<2x8x8xf32>, vector<2x8x8xf32> -> vector<2x8x8xf32>
    "tpu.trace_stop"() : () -> ()
    %cst_82 = arith.constant 0.353553385 : f32
    %216 = vector.broadcast %cst_82 : f32 to vector<2x8x8xf32>
    %217 = arith.mulf %215, %216 : vector<2x8x8xf32>
    %218 = arith.addf %217, %1 : vector<2x8x8xf32>
    %cst_83 = arith.constant dense<0xFF800000> : vector<2x8xf32>
    %219 = vector.multi_reduction <maximumf>, %218, %cst_83 [2] : vector<2x8x8xf32> to vector<2x8xf32>
    %220 = vector.shape_cast %219 : vector<2x8xf32> to vector<2x8x1xf32>
    %221 = vector.broadcast %220 : vector<2x8x1xf32> to vector<2x8x8xf32>
    %222 = arith.subf %218, %221 : vector<2x8x8xf32>
    %223 = math.exp %222 : vector<2x8x8xf32>
    %cst_84 = arith.constant dense<0.000000e+00> : vector<2x8xf32>
    %224 = vector.multi_reduction <add>, %223, %cst_84 [2] : vector<2x8x8xf32> to vector<2x8xf32>
    %225 = vector.shape_cast %224 : vector<2x8xf32> to vector<2x8x1xf32>
    %226 = tpu.reciprocal %225 {approx = true} : vector<2x8x1xf32> -> vector<2x8x1xf32>
    %227 = vector.broadcast %226 : vector<2x8x1xf32> to vector<2x8x8xf32>
    %228 = arith.mulf %223, %227 : vector<2x8x8xf32>
    %229 = vector.extract_strided_slice %176 {offsets = [0, 0, 16], sizes = [2, 8, 8], strides = [1, 1, 1]} : vector<2x8x32xf32> to vector<2x8x8xf32>
    "tpu.trace_start"() <{level = 10 : i32, message = "bqk,bkd->bqd"}> : () -> ()
    %cst_85 = arith.constant dense<0.000000e+00> : vector<2x8x8xf32>
    %230 = tpu.matmul %228, %229, %cst_85 {dimension_numbers = #tpu.dot_dimension_numbers<[2], [1], [1], [2], [0, 0, 0, 1, 1, 2], [0], [0]>} : vector<2x8x8xf32>, vector<2x8x8xf32>, vector<2x8x8xf32> -> vector<2x8x8xf32>
    "tpu.trace_stop"() : () -> ()
    %231 = vector.extract_strided_slice %172 {offsets = [0, 0, 24], sizes = [2, 8, 8], strides = [1, 1, 1]} : vector<2x8x32xf32> to vector<2x8x8xf32>
    %232 = vector.extract_strided_slice %174 {offsets = [0, 0, 24], sizes = [2, 8, 8], strides = [1, 1, 1]} : vector<2x8x32xf32> to vector<2x8x8xf32>
    "tpu.trace_start"() <{level = 10 : i32, message = "bqd,bkd->bqk"}> : () -> ()
    %cst_86 = arith.constant dense<0.000000e+00> : vector<2x8x8xf32>
    %233 = tpu.matmul %231, %232, %cst_86 {dimension_numbers = #tpu.dot_dimension_numbers<[2], [2], [1], [1], [0, 0, 0, 1, 1, 1], [0], [0]>} : vector<2x8x8xf32>, vector<2x8x8xf32>, vector<2x8x8xf32> -> vector<2x8x8xf32>
    "tpu.trace_stop"() : () -> ()
    %cst_87 = arith.constant 0.353553385 : f32
    %234 = vector.broadcast %cst_87 : f32 to vector<2x8x8xf32>
    %235 = arith.mulf %233, %234 : vector<2x8x8xf32>
    %236 = arith.addf %235, %1 : vector<2x8x8xf32>
    %cst_88 = arith.constant dense<0xFF800000> : vector<2x8xf32>
    %237 = vector.multi_reduction <maximumf>, %236, %cst_88 [2] : vector<2x8x8xf32> to vector<2x8xf32>
    %238 = vector.shape_cast %237 : vector<2x8xf32> to vector<2x8x1xf32>
    %239 = vector.broadcast %238 : vector<2x8x1xf32> to vector<2x8x8xf32>
    %240 = arith.subf %236, %239 : vector<2x8x8xf32>
    %241 = math.exp %240 : vector<2x8x8xf32>
    %cst_89 = arith.constant dense<0.000000e+00> : vector<2x8xf32>
    %242 = vector.multi_reduction <add>, %241, %cst_89 [2] : vector<2x8x8xf32> to vector<2x8xf32>
    %243 = vector.shape_cast %242 : vector<2x8xf32> to vector<2x8x1xf32>
    %244 = tpu.reciprocal %243 {approx = true} : vector<2x8x1xf32> -> vector<2x8x1xf32>
    %245 = vector.broadcast %244 : vector<2x8x1xf32> to vector<2x8x8xf32>
    %246 = arith.mulf %241, %245 : vector<2x8x8xf32>
    %247 = vector.extract_strided_slice %176 {offsets = [0, 0, 24], sizes = [2, 8, 8], strides = [1, 1, 1]} : vector<2x8x32xf32> to vector<2x8x8xf32>
    "tpu.trace_start"() <{level = 10 : i32, message = "bqk,bkd->bqd"}> : () -> ()
    %cst_90 = arith.constant dense<0.000000e+00> : vector<2x8x8xf32>
    %248 = tpu.matmul %246, %247, %cst_90 {dimension_numbers = #tpu.dot_dimension_numbers<[2], [1], [1], [2], [0, 0, 0, 1, 1, 2], [0], [0]>} : vector<2x8x8xf32>, vector<2x8x8xf32>, vector<2x8x8xf32> -> vector<2x8x8xf32>
    "tpu.trace_stop"() : () -> ()
    %249 = tpu.concatenate %194, %212, %230, %248 in 2 : vector<2x8x8xf32>, vector<2x8x8xf32>, vector<2x8x8xf32>, vector<2x8x8xf32> -> vector<2x8x32xf32>
    %250 = vector.shape_cast %249 : vector<2x8x32xf32> to vector<16x32xf32>
    %c1_91 = arith.constant 1 : index
    %c0_92 = arith.constant 0 : index
    %c0_93 = arith.constant 0 : index
    %251 = vector.load %arg6[%c1_91, %c0_92, %c0_93] : memref<2x32x32xf32, #tpu.memory_space<vmem>>, vector<1x32x32xf32>
    %252 = vector.shape_cast %251 : vector<1x32x32xf32> to vector<32x32xf32>
    %cst_94 = arith.constant dense<0.000000e+00> : vector<16x32xf32>
    %253 = tpu.matmul %250, %252, %cst_94 {dimension_numbers = #tpu.dot_dimension_numbers<[1], [0], [0], [1], [0, 0, 1, 1], [], []>} : vector<16x32xf32>, vector<32x32xf32>, vector<16x32xf32> -> vector<16x32xf32>
    %c1_95 = arith.constant 1 : index
    %c0_96 = arith.constant 0 : index
    %c0_97 = arith.constant 0 : index
    %254 = vector.load %arg7[%c1_95, %c0_96, %c0_97] : memref<2x1x32xf32, #tpu.memory_space<vmem>>, vector<1x1x32xf32>
    %255 = vector.shape_cast %254 : vector<1x1x32xf32> to vector<1x32xf32>
    %256 = vector.broadcast %255 : vector<1x32xf32> to vector<16x32xf32>
    %257 = arith.addf %253, %256 : vector<16x32xf32>
    %c1_98 = arith.constant 1 : index
    %c0_99 = arith.constant 0 : index
    %c0_100 = arith.constant 0 : index
    %258 = vector.load %arg8[%c1_98, %c0_99, %c0_100] : memref<2x4x32xf32, #tpu.memory_space<vmem>>, vector<1x4x32xf32>
    %259 = vector.shape_cast %258 : vector<1x4x32xf32> to vector<4x32xf32>
    %260 = arith.addf %163, %257 : vector<16x32xf32>
    %261 = vector.extract_strided_slice %259 {offsets = [0, 0], sizes = [1, 32], strides = [1, 1]} : vector<4x32xf32> to vector<1x32xf32>
    %262 = vector.extract_strided_slice %259 {offsets = [1, 0], sizes = [1, 32], strides = [1, 1]} : vector<4x32xf32> to vector<1x32xf32>
    %cst_101 = arith.constant dense<0.000000e+00> : vector<16xf32>
    %263 = vector.multi_reduction <add>, %260, %cst_101 [1] : vector<16x32xf32> to vector<16xf32>
    %264 = vector.shape_cast %263 : vector<16xf32> to vector<16x1xf32>
    %cst_102 = arith.constant 3.200000e+01 : f32
    %265 = vector.broadcast %cst_102 : f32 to vector<16x1xf32>
    %266 = arith.divf %264, %265 : vector<16x1xf32>
    %267 = vector.broadcast %266 : vector<16x1xf32> to vector<16x32xf32>
    %268 = arith.subf %260, %267 : vector<16x32xf32>
    %269 = arith.mulf %268, %268 : vector<16x32xf32>
    %cst_103 = arith.constant dense<0.000000e+00> : vector<16xf32>
    %270 = vector.multi_reduction <add>, %269, %cst_103 [1] : vector<16x32xf32> to vector<16xf32>
    %271 = vector.shape_cast %270 : vector<16xf32> to vector<16x1xf32>
    %cst_104 = arith.constant 3.200000e+01 : f32
    %272 = vector.broadcast %cst_104 : f32 to vector<16x1xf32>
    %273 = arith.divf %271, %272 : vector<16x1xf32>
    %274 = vector.broadcast %266 : vector<16x1xf32> to vector<16x32xf32>
    %275 = arith.subf %260, %274 : vector<16x32xf32>
    %cst_105 = arith.constant 9.99999974E-6 : f32
    %276 = vector.broadcast %cst_105 : f32 to vector<16x1xf32>
    %277 = arith.addf %273, %276 : vector<16x1xf32>
    %278 = math.rsqrt %277 : vector<16x1xf32>
    %279 = vector.broadcast %278 : vector<16x1xf32> to vector<16x32xf32>
    %280 = arith.mulf %275, %279 : vector<16x32xf32>
    %281 = vector.broadcast %261 : vector<1x32xf32> to vector<16x32xf32>
    %282 = arith.mulf %280, %281 : vector<16x32xf32>
    %283 = vector.broadcast %262 : vector<1x32xf32> to vector<16x32xf32>
    %284 = arith.addf %282, %283 : vector<16x32xf32>
    %c1_106 = arith.constant 1 : index
    %c0_107 = arith.constant 0 : index
    %c0_108 = arith.constant 0 : index
    %285 = vector.load %arg9[%c1_106, %c0_107, %c0_108] : memref<2x32x64xf32, #tpu.memory_space<vmem>>, vector<1x32x64xf32>
    %286 = vector.shape_cast %285 : vector<1x32x64xf32> to vector<32x64xf32>
    %cst_109 = arith.constant dense<0.000000e+00> : vector<16x64xf32>
    %287 = tpu.matmul %284, %286, %cst_109 {dimension_numbers = #tpu.dot_dimension_numbers<[1], [0], [0], [1], [0, 0, 1, 1], [], []>} : vector<16x32xf32>, vector<32x64xf32>, vector<16x64xf32> -> vector<16x64xf32>
    %c1_110 = arith.constant 1 : index
    %c0_111 = arith.constant 0 : index
    %c0_112 = arith.constant 0 : index
    %288 = vector.load %arg10[%c1_110, %c0_111, %c0_112] : memref<2x1x64xf32, #tpu.memory_space<vmem>>, vector<1x1x64xf32>
    %289 = vector.shape_cast %288 : vector<1x1x64xf32> to vector<1x64xf32>
    %290 = vector.broadcast %289 : vector<1x64xf32> to vector<16x64xf32>
    %291 = arith.addf %287, %290 : vector<16x64xf32>
    %cst_113 = arith.constant 0.000000e+00 : f32
    %292 = vector.broadcast %cst_113 : f32 to vector<16x64xf32>
    %293 = arith.maximumf %291, %292 : vector<16x64xf32>
    %c1_114 = arith.constant 1 : index
    %c0_115 = arith.constant 0 : index
    %c0_116 = arith.constant 0 : index
    %294 = vector.load %arg11[%c1_114, %c0_115, %c0_116] : memref<2x64x32xf32, #tpu.memory_space<vmem>>, vector<1x64x32xf32>
    %295 = vector.shape_cast %294 : vector<1x64x32xf32> to vector<64x32xf32>
    %cst_117 = arith.constant dense<0.000000e+00> : vector<16x32xf32>
    %296 = tpu.matmul %293, %295, %cst_117 {dimension_numbers = #tpu.dot_dimension_numbers<[1], [0], [0], [1], [0, 0, 1, 1], [], []>} : vector<16x64xf32>, vector<64x32xf32>, vector<16x32xf32> -> vector<16x32xf32>
    %c1_118 = arith.constant 1 : index
    %c0_119 = arith.constant 0 : index
    %c0_120 = arith.constant 0 : index
    %297 = vector.load %arg12[%c1_118, %c0_119, %c0_120] : memref<2x1x32xf32, #tpu.memory_space<vmem>>, vector<1x1x32xf32>
    %298 = vector.shape_cast %297 : vector<1x1x32xf32> to vector<1x32xf32>
    %299 = vector.broadcast %298 : vector<1x32xf32> to vector<16x32xf32>
    %300 = arith.addf %296, %299 : vector<16x32xf32>
    %301 = arith.addf %284, %300 : vector<16x32xf32>
    %302 = vector.extract_strided_slice %259 {offsets = [2, 0], sizes = [1, 32], strides = [1, 1]} : vector<4x32xf32> to vector<1x32xf32>
    %303 = vector.extract_strided_slice %259 {offsets = [3, 0], sizes = [1, 32], strides = [1, 1]} : vector<4x32xf32> to vector<1x32xf32>
    %cst_121 = arith.constant dense<0.000000e+00> : vector<16xf32>
    %304 = vector.multi_reduction <add>, %301, %cst_121 [1] : vector<16x32xf32> to vector<16xf32>
    %305 = vector.shape_cast %304 : vector<16xf32> to vector<16x1xf32>
    %cst_122 = arith.constant 3.200000e+01 : f32
    %306 = vector.broadcast %cst_122 : f32 to vector<16x1xf32>
    %307 = arith.divf %305, %306 : vector<16x1xf32>
    %308 = vector.broadcast %307 : vector<16x1xf32> to vector<16x32xf32>
    %309 = arith.subf %301, %308 : vector<16x32xf32>
    %310 = arith.mulf %309, %309 : vector<16x32xf32>
    %cst_123 = arith.constant dense<0.000000e+00> : vector<16xf32>
    %311 = vector.multi_reduction <add>, %310, %cst_123 [1] : vector<16x32xf32> to vector<16xf32>
    %312 = vector.shape_cast %311 : vector<16xf32> to vector<16x1xf32>
    %cst_124 = arith.constant 3.200000e+01 : f32
    %313 = vector.broadcast %cst_124 : f32 to vector<16x1xf32>
    %314 = arith.divf %312, %313 : vector<16x1xf32>
    %315 = vector.broadcast %307 : vector<16x1xf32> to vector<16x32xf32>
    %316 = arith.subf %301, %315 : vector<16x32xf32>
    %cst_125 = arith.constant 9.99999974E-6 : f32
    %317 = vector.broadcast %cst_125 : f32 to vector<16x1xf32>
    %318 = arith.addf %314, %317 : vector<16x1xf32>
    %319 = math.rsqrt %318 : vector<16x1xf32>
    %320 = vector.broadcast %319 : vector<16x1xf32> to vector<16x32xf32>
    %321 = arith.mulf %316, %320 : vector<16x32xf32>
    %322 = vector.broadcast %302 : vector<1x32xf32> to vector<16x32xf32>
    %323 = arith.mulf %321, %322 : vector<16x32xf32>
    %324 = vector.broadcast %303 : vector<1x32xf32> to vector<16x32xf32>
    %325 = arith.addf %323, %324 : vector<16x32xf32>
    %c0_126 = arith.constant 0 : index
    %c0_127 = arith.constant 0 : index
    %326 = vector.load %arg13[%c0_126, %c0_127] : memref<32x16xf32, #tpu.memory_space<vmem>>, vector<32x16xf32>
    %cst_128 = arith.constant dense<0.000000e+00> : vector<16x16xf32>
    %327 = tpu.matmul %325, %326, %cst_128 {dimension_numbers = #tpu.dot_dimension_numbers<[1], [0], [0], [1], [0, 0, 1, 1], [], []>} : vector<16x32xf32>, vector<32x16xf32>, vector<16x16xf32> -> vector<16x16xf32>
    %c0_129 = arith.constant 0 : index
    %c0_130 = arith.constant 0 : index
    %328 = vector.load %arg3[%c0_129, %c0_130] : memref<16x5xf32, #tpu.memory_space<vmem>>, vector<16x5xf32>
    %c0_131 = arith.constant 0 : index
    %c0_132 = arith.constant 0 : index
    %329 = vector.load %arg14[%c0_131, %c0_132] : memref<5x16xf32, #tpu.memory_space<vmem>>, vector<5x16xf32>
    %cst_133 = arith.constant dense<0.000000e+00> : vector<16x16xf32>
    %330 = tpu.matmul %328, %329, %cst_133 {dimension_numbers = #tpu.dot_dimension_numbers<[1], [0], [0], [1], [0, 0, 1, 1], [], []>} : vector<16x5xf32>, vector<5x16xf32>, vector<16x16xf32> -> vector<16x16xf32>
    %331 = arith.addf %327, %330 : vector<16x16xf32>
    %c0_134 = arith.constant 0 : index
    %c0_135 = arith.constant 0 : index
    %332 = vector.load %arg15[%c0_134, %c0_135] : memref<1x16xf32, #tpu.memory_space<vmem>>, vector<1x16xf32>
    %333 = vector.broadcast %332 : vector<1x16xf32> to vector<16x16xf32>
    %334 = arith.addf %331, %333 : vector<16x16xf32>
    %c0_136 = arith.constant 0 : index
    %c0_137 = arith.constant 0 : index
    %335 = vector.load %arg18[%c0_136, %c0_137] : memref<16x16xf32, #tpu.memory_space<vmem>>, vector<16x16xf32>
    tpu.vector_store %arg18[%c0_136, %c0_137], %334 {strides = array<i32>} : memref<16x16xf32, #tpu.memory_space<vmem>>, vector<16x16xf32>,
    %336 = vector.shape_cast %325 : vector<16x32xf32> to vector<2x8x32xf32>
    %cst_138 = arith.constant dense<0.000000e+00> : vector<2x32xf32>
    %337 = vector.multi_reduction <add>, %336, %cst_138 [1] : vector<2x8x32xf32> to vector<2x32xf32>
    %cst_139 = arith.constant 8.000000e+00 : f32
    %338 = vector.broadcast %cst_139 : f32 to vector<2x32xf32>
    %339 = arith.divf %337, %338 : vector<2x32xf32>
    %c0_140 = arith.constant 0 : index
    %c0_141 = arith.constant 0 : index
    %340 = vector.load %arg16[%c0_140, %c0_141] : memref<32x4xf32, #tpu.memory_space<vmem>>, vector<32x4xf32>
    %cst_142 = arith.constant dense<0.000000e+00> : vector<2x4xf32>
    %341 = tpu.matmul %339, %340, %cst_142 {dimension_numbers = #tpu.dot_dimension_numbers<[1], [0], [0], [1], [0, 0, 1, 1], [], []>} : vector<2x32xf32>, vector<32x4xf32>, vector<2x4xf32> -> vector<2x4xf32>
    %c0_143 = arith.constant 0 : index
    %c0_144 = arith.constant 0 : index
    %342 = vector.load %arg17[%c0_143, %c0_144] : memref<1x4xf32, #tpu.memory_space<vmem>>, vector<1x4xf32>
    %343 = vector.broadcast %342 : vector<1x4xf32> to vector<2x4xf32>
    %344 = arith.addf %341, %343 : vector<2x4xf32>
    %c0_145 = arith.constant 0 : index
    %c0_146 = arith.constant 0 : index
    %345 = vector.load %arg19[%c0_145, %c0_146] : memref<2x4xf32, #tpu.memory_space<vmem>>, vector<2x4xf32>
    tpu.vector_store %arg19[%c0_145, %c0_146], %344 {strides = array<i32>} : memref<2x4xf32, #tpu.memory_space<vmem>>, vector<2x4xf32>,
    return
  }
  func.func @transform_0(%arg0: i32) -> (i32, i32) {
    %c0_i32 = arith.constant 0 : i32
    %c0_i32_0 = arith.constant 0 : i32
    %c0_i32_1 = arith.constant 0 : i32
    return %c0_i32, %c0_i32_0 : i32, i32
  }
  func.func @transform_1(%arg0: i32) -> (i32, i32, i32) {
    %c0_i32 = arith.constant 0 : i32
    %c0_i32_0 = arith.constant 0 : i32
    %c0_i32_1 = arith.constant 0 : i32
    %c0_i32_2 = arith.constant 0 : i32
    return %c0_i32, %c0_i32_0, %c0_i32_1 : i32, i32, i32
  }
  func.func @transform_2(%arg0: i32) -> (i32, i32) {
    %c0_i32 = arith.constant 0 : i32
    %c0_i32_0 = arith.constant 0 : i32
    %c0_i32_1 = arith.constant 0 : i32
    return %c0_i32, %c0_i32_0 : i32, i32
  }
  func.func @transform_3(%arg0: i32) -> (i32, i32, i32) {
    %c0_i32 = arith.constant 0 : i32
    %c0_i32_0 = arith.constant 0 : i32
    %c0_i32_1 = arith.constant 0 : i32
    %c0_i32_2 = arith.constant 0 : i32
    return %c0_i32, %c0_i32_0, %c0_i32_1 : i32, i32, i32
  }
  func.func @transform_4(%arg0: i32) -> (i32, i32, i32) {
    %c0_i32 = arith.constant 0 : i32
    %c0_i32_0 = arith.constant 0 : i32
    %c0_i32_1 = arith.constant 0 : i32
    %c0_i32_2 = arith.constant 0 : i32
    return %c0_i32, %c0_i32_0, %c0_i32_1 : i32, i32, i32
  }
  func.func @transform_5(%arg0: i32) -> (i32, i32, i32) {
    %c0_i32 = arith.constant 0 : i32
    %c0_i32_0 = arith.constant 0 : i32
    %c0_i32_1 = arith.constant 0 : i32
    %c0_i32_2 = arith.constant 0 : i32
    return %c0_i32, %c0_i32_0, %c0_i32_1 : i32, i32, i32
  }
  func.func @transform_6(%arg0: i32) -> (i32, i32, i32) {
    %c0_i32 = arith.constant 0 : i32
    %c0_i32_0 = arith.constant 0 : i32
    %c0_i32_1 = arith.constant 0 : i32
    %c0_i32_2 = arith.constant 0 : i32
    return %c0_i32, %c0_i32_0, %c0_i32_1 : i32, i32, i32
  }
  func.func @transform_7(%arg0: i32) -> (i32, i32, i32) {
    %c0_i32 = arith.constant 0 : i32
    %c0_i32_0 = arith.constant 0 : i32
    %c0_i32_1 = arith.constant 0 : i32
    %c0_i32_2 = arith.constant 0 : i32
    return %c0_i32, %c0_i32_0, %c0_i32_1 : i32, i32, i32
  }
  func.func @transform_8(%arg0: i32) -> (i32, i32, i32) {
    %c0_i32 = arith.constant 0 : i32
    %c0_i32_0 = arith.constant 0 : i32
    %c0_i32_1 = arith.constant 0 : i32
    %c0_i32_2 = arith.constant 0 : i32
    return %c0_i32, %c0_i32_0, %c0_i32_1 : i32, i32, i32
  }
  func.func @transform_9(%arg0: i32) -> (i32, i32, i32) {
    %c0_i32 = arith.constant 0 : i32
    %c0_i32_0 = arith.constant 0 : i32
    %c0_i32_1 = arith.constant 0 : i32
    %c0_i32_2 = arith.constant 0 : i32
    return %c0_i32, %c0_i32_0, %c0_i32_1 : i32, i32, i32
  }
  func.func @transform_10(%arg0: i32) -> (i32, i32, i32) {
    %c0_i32 = arith.constant 0 : i32
    %c0_i32_0 = arith.constant 0 : i32
    %c0_i32_1 = arith.constant 0 : i32
    %c0_i32_2 = arith.constant 0 : i32
    return %c0_i32, %c0_i32_0, %c0_i32_1 : i32, i32, i32
  }
  func.func @transform_11(%arg0: i32) -> (i32, i32, i32) {
    %c0_i32 = arith.constant 0 : i32
    %c0_i32_0 = arith.constant 0 : i32
    %c0_i32_1 = arith.constant 0 : i32
    %c0_i32_2 = arith.constant 0 : i32
    return %c0_i32, %c0_i32_0, %c0_i32_1 : i32, i32, i32
  }
  func.func @transform_12(%arg0: i32) -> (i32, i32) {
    %c0_i32 = arith.constant 0 : i32
    %c0_i32_0 = arith.constant 0 : i32
    %c0_i32_1 = arith.constant 0 : i32
    return %c0_i32, %c0_i32_0 : i32, i32
  }
  func.func @transform_13(%arg0: i32) -> (i32, i32) {
    %c0_i32 = arith.constant 0 : i32
    %c0_i32_0 = arith.constant 0 : i32
    %c0_i32_1 = arith.constant 0 : i32
    return %c0_i32, %c0_i32_0 : i32, i32
  }
  func.func @transform_14(%arg0: i32) -> (i32, i32) {
    %c0_i32 = arith.constant 0 : i32
    %c0_i32_0 = arith.constant 0 : i32
    %c0_i32_1 = arith.constant 0 : i32
    return %c0_i32, %c0_i32_0 : i32, i32
  }
  func.func @transform_15(%arg0: i32) -> (i32, i32) {
    %c0_i32 = arith.constant 0 : i32
    %c0_i32_0 = arith.constant 0 : i32
    %c0_i32_1 = arith.constant 0 : i32
    return %c0_i32, %c0_i32_0 : i32, i32
  }
  func.func @transform_16(%arg0: i32) -> (i32, i32) {
    %c0_i32 = arith.constant 0 : i32
    %c0_i32_0 = arith.constant 0 : i32
    %c0_i32_1 = arith.constant 0 : i32
    return %c0_i32, %c0_i32_0 : i32, i32
  }
  func.func @transform_17(%arg0: i32) -> (i32, i32) {
    %c0_i32 = arith.constant 0 : i32
    %c0_i32_0 = arith.constant 0 : i32
    %c0_i32_1 = arith.constant 0 : i32
    return %c0_i32, %c0_i32_0 : i32, i32
  }
  func.func @transform_18(%arg0: i32) -> (i32, i32) {
    %c0_i32 = arith.constant 0 : i32
    %c0_i32_0 = arith.constant 0 : i32
    %c0_i32_1 = arith.constant 0 : i32
    return %c0_i32, %c0_i32_0 : i32, i32
  }
}

</mosaic_0001>

<llo_original>
// kernel: atom_transformer_forward.1
$region0: #{atom_transformer_forward.1}
  #allocation0 [shape = 'u32[]', space=smem, size = 0x4, offset = 0x4, fixed_abs, tag = 'smem constant byte address 0x4 - core index']
  #allocation1 [shape = 'u32[144,128]{1,0:T(1,128)}', space=vmem, size = 0x12000, scoped, tag = 'internal scratch']
  %s0 = inlined_call_operand.vmem [shape: f32[16,32], index: 0, kind: input, shape index: {}]
  %s1 = inlined_call_operand.vmem [shape: f32[2,8,8], index: 1, kind: input, shape index: {}]
  %s2 = inlined_call_operand.vmem [shape: f32[16,5], index: 2, kind: input, shape index: {}]
  %s3 = inlined_call_operand.vmem [shape: f32[2,32,96], index: 3, kind: input, shape index: {}]
  %s4 = inlined_call_operand.vmem [shape: f32[2,1,96], index: 4, kind: input, shape index: {}]
  %s5 = inlined_call_operand.vmem [shape: f32[2,32,32], index: 5, kind: input, shape index: {}]
  %s6 = inlined_call_operand.vmem [shape: f32[2,1,32], index: 6, kind: input, shape index: {}]
  %s7 = inlined_call_operand.vmem [shape: f32[2,4,32], index: 7, kind: input, shape index: {}]
  %s8 = inlined_call_operand.vmem [shape: f32[2,32,64], index: 8, kind: input, shape index: {}]
  %s9 = inlined_call_operand.vmem [shape: f32[2,1,64], index: 9, kind: input, shape index: {}]
  %s10 = inlined_call_operand.vmem [shape: f32[2,64,32], index: 10, kind: input, shape index: {}]
  %s11 = inlined_call_operand.vmem [shape: f32[2,1,32], index: 11, kind: input, shape index: {}]
  %s12 = inlined_call_operand.vmem [shape: f32[32,16], index: 12, kind: input, shape index: {}]
  %s13 = inlined_call_operand.vmem [shape: f32[5,16], index: 13, kind: input, shape index: {}]
  %s14 = inlined_call_operand.vmem [shape: f32[1,16], index: 14, kind: input, shape index: {}]
  %s15 = inlined_call_operand.vmem [shape: f32[32,4], index: 15, kind: input, shape index: {}]
  %s16 = inlined_call_operand.vmem [shape: f32[1,4], index: 16, kind: input, shape index: {}]
  %s17 = inlined_call_operand.vmem [shape: f32[16,16], index: 17, kind: output, shape index: {0}]
  %s18 = inlined_call_operand.vmem [shape: f32[2,4], index: 18, kind: output, shape index: {1}]
  %19 = xla_tuple %s17, %s18
  %s20 = sld [smem:[#allocation0]]
  $region86: #{atom_transformer_forward.1} parent=0
    _
  %s22 = ssub.s32 1, %s20
  %s23 = scalar_select 0, %s22, %s20
  // Predicated region
  $region2: #{atom_transformer_forward.1} parent=0 // pred_check
    _
  $region3: #{atom_transformer_forward.1} parent=0 // pred_check_branch
    %25 = sbr.rel (0) target = $region5
  $region4: #{atom_transformer_forward.1} parent=0 // pred_region
    _
  $region5: #{atom_transformer_forward.1} parent=0 // pred_fallthru
    _
  // Predicated region
  $region6: #{atom_transformer_forward.1} parent=0 // pred_check
    _
  $region7: #{atom_transformer_forward.1} parent=0 // pred_check_branch
    %27 = sbr.rel (0) target = $region9
  $region8: #{atom_transformer_forward.1} parent=0 // pred_region
    _
  $region9: #{atom_transformer_forward.1} parent=0 // pred_fallthru
    _
  // Predicated region
  $region10: #{atom_transformer_forward.1} parent=0 // pred_check
    _
  $region11: #{atom_transformer_forward.1} parent=0 // pred_check_branch
    %29 = sbr.rel (0) target = $region13
  $region12: #{atom_transformer_forward.1} parent=0 // pred_region
    _
  $region13: #{atom_transformer_forward.1} parent=0 // pred_fallthru
    _
  // Predicated region
  $region14: #{atom_transformer_forward.1} parent=0 // pred_check
    _
  $region15: #{atom_transformer_forward.1} parent=0 // pred_check_branch
    %31 = sbr.rel (0) target = $region17
  $region16: #{atom_transformer_forward.1} parent=0 // pred_region
    _
  $region17: #{atom_transformer_forward.1} parent=0 // pred_fallthru
    _
  // Predicated region
  $region18: #{atom_transformer_forward.1} parent=0 // pred_check
    _
  $region19: #{atom_transformer_forward.1} parent=0 // pred_check_branch
    %33 = sbr.rel (0) target = $region21
  $region20: #{atom_transformer_forward.1} parent=0 // pred_region
    _
  $region21: #{atom_transformer_forward.1} parent=0 // pred_fallthru
    _
  // Predicated region
  $region22: #{atom_transformer_forward.1} parent=0 // pred_check
    _
  $region23: #{atom_transformer_forward.1} parent=0 // pred_check_branch
    %35 = sbr.rel (0) target = $region25
  $region24: #{atom_transformer_forward.1} parent=0 // pred_region
    _
  $region25: #{atom_transformer_forward.1} parent=0 // pred_fallthru
    _
  // Predicated region
  $region26: #{atom_transformer_forward.1} parent=0 // pred_check
    _
  $region27: #{atom_transformer_forward.1} parent=0 // pred_check_branch
    %37 = sbr.rel (0) target = $region29
  $region28: #{atom_transformer_forward.1} parent=0 // pred_region
    _
  $region29: #{atom_transformer_forward.1} parent=0 // pred_fallthru
    _
  // Predicated region
  $region30: #{atom_transformer_forward.1} parent=0 // pred_check
    _
  $region31: #{atom_transformer_forward.1} parent=0 // pred_check_branch
    %39 = sbr.rel (0) target = $region33
  $region32: #{atom_transformer_forward.1} parent=0 // pred_region
    _
  $region33: #{atom_transformer_forward.1} parent=0 // pred_fallthru
    _
  // Predicated region
  $region34: #{atom_transformer_forward.1} parent=0 // pred_check
    _
  $region35: #{atom_transformer_forward.1} parent=0 // pred_check_branch
    %41 = sbr.rel (0) target = $region37
  $region36: #{atom_transformer_forward.1} parent=0 // pred_region
    _
  $region37: #{atom_transformer_forward.1} parent=0 // pred_fallthru
    _
  // Predicated region
  $region38: #{atom_transformer_forward.1} parent=0 // pred_check
    _
  $region39: #{atom_transformer_forward.1} parent=0 // pred_check_branch
    %43 = sbr.rel (0) target = $region41
  $region40: #{atom_transformer_forward.1} parent=0 // pred_region
    _
  $region41: #{atom_transformer_forward.1} parent=0 // pred_fallthru
    _
  // Predicated region
  $region42: #{atom_transformer_forward.1} parent=0 // pred_check
    _
  $region43: #{atom_transformer_forward.1} parent=0 // pred_check_branch
    %45 = sbr.rel (0) target = $region45
  $region44: #{atom_transformer_forward.1} parent=0 // pred_region
    _
  $region45: #{atom_transformer_forward.1} parent=0 // pred_fallthru
    _
  // Predicated region
  $region46: #{atom_transformer_forward.1} parent=0 // pred_check
    _
  $region47: #{atom_transformer_forward.1} parent=0 // pred_check_branch
    %47 = sbr.rel (0) target = $region49
  $region48: #{atom_transformer_forward.1} parent=0 // pred_region
    _
  $region49: #{atom_transformer_forward.1} parent=0 // pred_fallthru
    _
  // Predicated region
  $region50: #{atom_transformer_forward.1} parent=0 // pred_check
    _
  $region51: #{atom_transformer_forward.1} parent=0 // pred_check_branch
    %49 = sbr.rel (0) target = $region53
  $region52: #{atom_transformer_forward.1} parent=0 // pred_region
    _
  $region53: #{atom_transformer_forward.1} parent=0 // pred_fallthru
    _
  // Predicated region
  $region54: #{atom_transformer_forward.1} parent=0 // pred_check
    _
  $region55: #{atom_transformer_forward.1} parent=0 // pred_check_branch
    %51 = sbr.rel (0) target = $region57
  $region56: #{atom_transformer_forward.1} parent=0 // pred_region
    _
  $region57: #{atom_transformer_forward.1} parent=0 // pred_fallthru
    _
  // Predicated region
  $region58: #{atom_transformer_forward.1} parent=0 // pred_check
    _
  $region59: #{atom_transformer_forward.1} parent=0 // pred_check_branch
    %53 = sbr.rel (0) target = $region61
  $region60: #{atom_transformer_forward.1} parent=0 // pred_region
    _
  $region61: #{atom_transformer_forward.1} parent=0 // pred_fallthru
    _
  // Predicated region
  $region62: #{atom_transformer_forward.1} parent=0 // pred_check
    _
  $region63: #{atom_transformer_forward.1} parent=0 // pred_check_branch
    %55 = sbr.rel (0) target = $region65
  $region64: #{atom_transformer_forward.1} parent=0 // pred_region
    _
  $region65: #{atom_transformer_forward.1} parent=0 // pred_fallthru
    _
  // Predicated region
  $region66: #{atom_transformer_forward.1} parent=0 // pred_check
    _
  $region67: #{atom_transformer_forward.1} parent=0 // pred_check_branch
    %57 = sbr.rel (0) target = $region69
  $region68: #{atom_transformer_forward.1} parent=0 // pred_region
    _
  $region69: #{atom_transformer_forward.1} parent=0 // pred_fallthru
    _
  %v58 = vld [vmem:[%s0] sm:$0xff]
  %v59 = vld [vmem:[%s0 + $0x8] sm:$0xff]
  %v60 = vld [vmem:[%s1] sm:$0xff]
  %v61 = vld [vmem:[%s1 + $0x8] sm:$0xff]
  %v62 = vld [vmem:[%s3] sm:$0xff]
  %v63 = vld [vmem:[%s3 + $0x8] sm:$0xff]
  %v64 = vld [vmem:[%s3 + $0x10] sm:$0xff]
  %v65 = vld [vmem:[%s3 + $0x18] sm:$0xff]
  %v66 = vld [vmem:[%s4] sm:$0x1]
  %v68 = vlaneseq
  %v69 = vshrl.u32 %v68, 7
  %v70 = vsub.s32 0, %v69
  %v71 = vrot.slane %v66, %v70
  %vm73 = vcmask 261120
  %v75 = vsel %vm73, %v58, 0
  %v78 = vsel %vm73, %v59, 0
  %80 = vmatprep.subr.mxu0 0.0
  %81 = vmatpush1.msra.mxu0 %v62
  %82 = vmatprep.subr.mxu0 0.0
  %83 = vmatpush1.msra.mxu0 %v63
  %84 = vmatprep.subr.mxu0 0.0
  %85 = vmatpush1.msra.mxu0 %v64
  %86 = vmatprep.subr.mxu0 0.0
  %87 = vmatpush1.msra.mxu0 %v65
  %88 = vmatprep.subr.mxu0 0.0
  %89 = vmatpush1.msra.mxu0 0.0
  %90 = vmatprep.subr.mxu0 0.0
  %91 = vmatpush1.msra.mxu0 0.0
  %92 = vmatprep.subr.mxu0 0.0
  %93 = vmatpush1.msra.mxu0 0.0
  %94 = vmatprep.subr.mxu0 0.0
  %95 = vmatpush1.msra.mxu0 0.0
  %96 = vmatprep.subr.mxu0 0.0
  %97 = vmatpush1.msra.mxu0 0.0
  %98 = vmatprep.subr.mxu0 0.0
  %99 = vmatpush1.msra.mxu0 0.0
  %100 = vmatprep.subr.mxu0 0.0
  %101 = vmatpush1.msra.mxu0 0.0
  %102 = vmatprep.subr.mxu0 0.0
  %103 = vmatpush1.msra.mxu0 0.0
  %104 = vmatprep.subr.mxu0 0.0
  %105 = vmatpush1.msra.mxu0 0.0
  %106 = vmatprep.subr.mxu0 0.0
  %107 = vmatpush1.msra.mxu0 0.0
  %108 = vmatprep.subr.mxu0 0.0
  %109 = vmatpush1.msra.mxu0 0.0
  %110 = vmatprep.subr.mxu0 0.0
  %111 = vmatpush1.msra.mxu0 0.0
  %112 = vmatprep.subr.mxu0 0.0
  %113 = vmatpush1.msra.mxu0 0.0
  %114 = vmatprep.subr.mxu0 0.0
  %115 = vmatpush1.msra.mxu0 0.0
  %116 = vmatprep.subr.mxu0 0.0
  %117 = vmatpush1.msra.mxu0 0.0
  %118 = vmatprep.subr.mxu0 0.0
  %119 = vmatpush1.msra.mxu0 0.0
  %120 = vmatprep.subr.mxu0 0.0
  %121 = vmatpush1.msra.mxu0 0.0
  %122 = vmatprep.subr.mxu0 0.0
  %123 = vmatpush1.msra.mxu0 0.0
  %124 = vmatprep.subr.mxu0 0.0
  %125 = vmatpush1.msra.mxu0 0.0
  %126 = vmatprep.subr.mxu0 0.0
  %127 = vmatpush1.msra.mxu0 0.0
  %128 = vmatprep.subr.mxu0 0.0
  %129 = vmatpush1.msra.mxu0 0.0
  %130 = vmatprep.subr.mxu0 0.0
  %131 = vmatpush1.msra.mxu0 0.0
  %132 = vmatprep.subr.mxu0 0.0
  %133 = vmatpush1.msra.mxu0 0.0
  %134 = vmatprep.subr.mxu0 0.0
  %135 = vmatpush1.msra.mxu0 0.0
  %136 = vmatprep.subr.mxu0 0.0
  %137 = vmatpush1.msra.mxu0 0.0
  %138 = vmatprep.subr.mxu0 0.0
  %139 = vmatpush1.msra.mxu0 0.0
  %140 = vmatprep.subr.mxu0 0.0
  %141 = vmatpush1.msra.mxu0 0.0
  %142 = vmatprep.subr.mxu0 0.0
  %143 = vmatpush1.msra.mxu0 0.0
  %144 = vmatprep.mubr.f32.mxu0 0.0
  %145 = vmatmul.mubr.f32.gmra.mrb[0].mxu0 %v75
  %v146 = vpop.f32.mrb[0].mxu0
  %v147 = vadd.f32 %v71, %v146
  %v148 = vpop.f32.mrb[0].mxu0
  %149 = vmatprep.mubr.f32.mxu0 0.0
  %150 = vmatmul.mubr.f32.gmra.mrb[0].mxu0 %v78
  %v151 = vpop.f32.mrb[0].mxu0
  %v152 = vadd.f32 %v71, %v151
  %v153 = vpop.f32.mrb[0].mxu0
  %154 = vdwg.mxu0
  %156 = vrot.lane.b32.xlu0 %v147, 96
  %v157 = vpop.permute.xlu0 %156
  %vm158 = vcmask 64512
  %v159 = vsel %vm158, %v147, 0
  %v161 = vsel %vm158, %v157, 0
  %163 = vmatprep.subr.mxu0 0.0
  %164 = vmatpush1.xpose.msra.mxu0 %v161
  %165 = vmatprep.subr.mxu0 0.0
  %166 = vmatpush1.xpose.msra.mxu0 0.0
  %167 = vmatprep.subr.mxu0 0.0
  %168 = vmatpush1.xpose.msra.mxu0 0.0
  %169 = vmatprep.subr.mxu0 0.0
  %170 = vmatpush1.xpose.msra.mxu0 0.0
  %171 = vmatprep.subr.mxu0 0.0
  %172 = vmatpush1.xpose.msra.mxu0 0.0
  %173 = vmatprep.subr.mxu0 0.0
  %174 = vmatpush1.xpose.msra.mxu0 0.0
  %175 = vmatprep.subr.mxu0 0.0
  %176 = vmatpush1.xpose.msra.mxu0 0.0
  %177 = vmatprep.subr.mxu0 0.0
  %178 = vmatpush1.xpose.msra.mxu0 0.0
  %179 = vmatprep.subr.mxu0 0.0
  %180 = vmatpush1.xpose.msra.mxu0 0.0
  %181 = vmatprep.subr.mxu0 0.0
  %182 = vmatpush1.xpose.msra.mxu0 0.0
  %183 = vmatprep.subr.mxu0 0.0
  %184 = vmatpush1.xpose.msra.mxu0 0.0
  %185 = vmatprep.subr.mxu0 0.0
  %186 = vmatpush1.xpose.msra.mxu0 0.0
  %187 = vmatprep.subr.mxu0 0.0
  %188 = vmatpush1.xpose.msra.mxu0 0.0
  %189 = vmatprep.subr.mxu0 0.0
  %190 = vmatpush1.xpose.msra.mxu0 0.0
  %191 = vmatprep.subr.mxu0 0.0
  %192 = vmatpush1.xpose.msra.mxu0 0.0
  %193 = vmatprep.subr.mxu0 0.0
  %194 = vmatpush1.xpose.msra.mxu0 0.0
  %195 = vmatprep.subr.mxu0 0.0
  %196 = vmatpush1.xpose.msra.mxu0 0.0
  %197 = vmatprep.subr.mxu0 0.0
  %198 = vmatpush1.xpose.msra.mxu0 0.0
  %199 = vmatprep.subr.mxu0 0.0
  %200 = vmatpush1.xpose.msra.mxu0 0.0
  %201 = vmatprep.subr.mxu0 0.0
  %202 = vmatpush1.xpose.msra.mxu0 0.0
  %203 = vmatprep.subr.mxu0 0.0
  %204 = vmatpush1.xpose.msra.mxu0 0.0
  %205 = vmatprep.subr.mxu0 0.0
  %206 = vmatpush1.xpose.msra.mxu0 0.0
  %207 = vmatprep.subr.mxu0 0.0
  %208 = vmatpush1.xpose.msra.mxu0 0.0
  %209 = vmatprep.subr.mxu0 0.0
  %210 = vmatpush1.xpose.msra.mxu0 0.0
  %211 = vmatprep.subr.mxu0 0.0
  %212 = vmatpush1.xpose.msra.mxu0 0.0
  %213 = vmatprep.subr.mxu0 0.0
  %214 = vmatpush1.xpose.msra.mxu0 0.0
  %215 = vmatprep.subr.mxu0 0.0
  %216 = vmatpush1.xpose.msra.mxu0 0.0
  %217 = vmatprep.subr.mxu0 0.0
  %218 = vmatpush1.xpose.msra.mxu0 0.0
  %219 = vmatprep.subr.mxu0 0.0
  %220 = vmatpush1.xpose.msra.mxu0 0.0
  %221 = vmatprep.subr.mxu0 0.0
  %222 = vmatpush1.xpose.msra.mxu0 0.0
  %223 = vmatprep.subr.mxu0 0.0
  %224 = vmatpush1.xpose.msra.mxu0 0.0
  %225 = vmatprep.subr.mxu0 0.0
  %226 = vmatpush1.xpose.msra.mxu0 0.0
  %227 = vmatprep.mubr.f32.mxu0 0.0
  %228 = vmatmul.mubr.f32.gmra.mrb[0].mxu0 %v159
  %v229 = vpop.f32.mrb[0].mxu0
  %v230 = vadd.f32 0.0, %v229
  %v231 = vpop.f32.mrb[0].mxu0
  %232 = vdwg.mxu0
  %234 = vrot.lane.b32.xlu0 %v152, 96
  %v235 = vpop.permute.xlu0 %234
  %v236 = vsel %vm158, %v152, 0
  %v238 = vsel %vm158, %v235, 0
  %240 = vmatprep.subr.mxu0 0.0
  %241 = vmatpush1.xpose.msra.mxu0 %v238
  %242 = vmatprep.subr.mxu0 0.0
  %243 = vmatpush1.xpose.msra.mxu0 0.0
  %244 = vmatprep.subr.mxu0 0.0
  %245 = vmatpush1.xpose.msra.mxu0 0.0
  %246 = vmatprep.subr.mxu0 0.0
  %247 = vmatpush1.xpose.msra.mxu0 0.0
  %248 = vmatprep.subr.mxu0 0.0
  %249 = vmatpush1.xpose.msra.mxu0 0.0
  %250 = vmatprep.subr.mxu0 0.0
  %251 = vmatpush1.xpose.msra.mxu0 0.0
  %252 = vmatprep.subr.mxu0 0.0
  %253 = vmatpush1.xpose.msra.mxu0 0.0
  %254 = vmatprep.subr.mxu0 0.0
  %255 = vmatpush1.xpose.msra.mxu0 0.0
  %256 = vmatprep.subr.mxu0 0.0
  %257 = vmatpush1.xpose.msra.mxu0 0.0
  %258 = vmatprep.subr.mxu0 0.0
  %259 = vmatpush1.xpose.msra.mxu0 0.0
  %260 = vmatprep.subr.mxu0 0.0
  %261 = vmatpush1.xpose.msra.mxu0 0.0
  %262 = vmatprep.subr.mxu0 0.0
  %263 = vmatpush1.xpose.msra.mxu0 0.0
  %264 = vmatprep.subr.mxu0 0.0
  %265 = vmatpush1.xpose.msra.mxu0 0.0
  %266 = vmatprep.subr.mxu0 0.0
  %267 = vmatpush1.xpose.msra.mxu0 0.0
  %268 = vmatprep.subr.mxu0 0.0
  %269 = vmatpush1.xpose.msra.mxu0 0.0
  %270 = vmatprep.subr.mxu0 0.0
  %271 = vmatpush1.xpose.msra.mxu0 0.0
  %272 = vmatprep.subr.mxu0 0.0
  %273 = vmatpush1.xpose.msra.mxu0 0.0
  %274 = vmatprep.subr.mxu0 0.0
  %275 = vmatpush1.xpose.msra.mxu0 0.0
  %276 = vmatprep.subr.mxu0 0.0
  %277 = vmatpush1.xpose.msra.mxu0 0.0
  %278 = vmatprep.subr.mxu0 0.0
  %279 = vmatpush1.xpose.msra.mxu0 0.0
  %280 = vmatprep.subr.mxu0 0.0
  %281 = vmatpush1.xpose.msra.mxu0 0.0
  %282 = vmatprep.subr.mxu0 0.0
  %283 = vmatpush1.xpose.msra.mxu0 0.0
  %284 = vmatprep.subr.mxu0 0.0
  %285 = vmatpush1.xpose.msra.mxu0 0.0
  %286 = vmatprep.subr.mxu0 0.0
  %287 = vmatpush1.xpose.msra.mxu0 0.0
  %288 = vmatprep.subr.mxu0 0.0
  %289 = vmatpush1.xpose.msra.mxu0 0.0
  %290 = vmatprep.subr.mxu0 0.0
  %291 = vmatpush1.xpose.msra.mxu0 0.0
  %292 = vmatprep.subr.mxu0 0.0
  %293 = vmatpush1.xpose.msra.mxu0 0.0
  %294 = vmatprep.subr.mxu0 0.0
  %295 = vmatpush1.xpose.msra.mxu0 0.0
  %296 = vmatprep.subr.mxu0 0.0
  %297 = vmatpush1.xpose.msra.mxu0 0.0
  %298 = vmatprep.subr.mxu0 0.0
  %299 = vmatpush1.xpose.msra.mxu0 0.0
  %300 = vmatprep.subr.mxu0 0.0
  %301 = vmatpush1.xpose.msra.mxu0 0.0
  %302 = vmatprep.subr.mxu0 0.0
  %303 = vmatpush1.xpose.msra.mxu0 0.0
  %304 = vmatprep.mubr.f32.mxu0 0.0
  %305 = vmatmul.mubr.f32.gmra.mrb[0].mxu0 %v236
  %v306 = vpop.f32.mrb[0].mxu0
  %v307 = vadd.f32 0.0, %v306
  %v308 = vpop.f32.mrb[0].mxu0
  %309 = vdwg.mxu0
  %v310 = vmul.f32 %v230, 0.35355338
  %v311 = vmul.f32 %v307, 0.35355338
  %v312 = vadd.f32 %v310, %v60
  %v313 = vadd.f32 %v311, %v61
  %v314 = vsel %vm158, %v312, -inf
  %315 = vmax.xlane.f32.xlu0 %v314
  %v316 = vpop.xlane.xlu0 %315
  %v317 = vsel %vm158, %v313, -inf
  %318 = vmax.xlane.f32.xlu0 %v317
  %v319 = vpop.xlane.xlu0 %318
  %v320 = vsub.f32 %v312, %v316
  %v321 = vsub.f32 %v313, %v319
  %v322 = vmul.f32 %v320, 1.442695
  %v323 = vpow.pop %v322
  %v324 = vmul.f32 %v321, 1.442695
  %v325 = vpow.pop %v324
  %v326 = vsel %vm158, %v323, 0.0
  %327 = vadd.xlane.f32.xlu0 %v326
  %v328 = vpop.xlane.xlu0 %327
  %v329 = vsel %vm158, %v325, 0.0
  %330 = vadd.xlane.f32.xlu0 %v329
  %v331 = vpop.xlane.xlu0 %330
  %v332 = vrcp.pop %v328
  %v333 = vrcp.pop %v331
  %v334 = vmul.f32 %v323, %v332
  %v335 = vmul.f32 %v325, %v333
  %336 = vrot.lane.b32.xlu0 %v147, 64
  %v337 = vpop.permute.xlu0 %336
  %v340 = vsel %vm158, %v334, 0
  %342 = vmatprep.subr.mxu0 0.0
  %343 = vmatpush1.msra.mxu0 %v337
  %344 = vmatprep.subr.mxu0 0.0
  %345 = vmatpush1.msra.mxu0 0.0
  %346 = vmatprep.subr.mxu0 0.0
  %347 = vmatpush1.msra.mxu0 0.0
  %348 = vmatprep.subr.mxu0 0.0
  %349 = vmatpush1.msra.mxu0 0.0
  %350 = vmatprep.subr.mxu0 0.0
  %351 = vmatpush1.msra.mxu0 0.0
  %352 = vmatprep.subr.mxu0 0.0
  %353 = vmatpush1.msra.mxu0 0.0
  %354 = vmatprep.subr.mxu0 0.0
  %355 = vmatpush1.msra.mxu0 0.0
  %356 = vmatprep.subr.mxu0 0.0
  %357 = vmatpush1.msra.mxu0 0.0
  %358 = vmatprep.subr.mxu0 0.0
  %359 = vmatpush1.msra.mxu0 0.0
  %360 = vmatprep.subr.mxu0 0.0
  %361 = vmatpush1.msra.mxu0 0.0
  %362 = vmatprep.subr.mxu0 0.0
  %363 = vmatpush1.msra.mxu0 0.0
  %364 = vmatprep.subr.mxu0 0.0
  %365 = vmatpush1.msra.mxu0 0.0
  %366 = vmatprep.subr.mxu0 0.0
  %367 = vmatpush1.msra.mxu0 0.0
  %368 = vmatprep.subr.mxu0 0.0
  %369 = vmatpush1.msra.mxu0 0.0
  %370 = vmatprep.subr.mxu0 0.0
  %371 = vmatpush1.msra.mxu0 0.0
  %372 = vmatprep.subr.mxu0 0.0
  %373 = vmatpush1.msra.mxu0 0.0
  %374 = vmatprep.subr.mxu0 0.0
  %375 = vmatpush1.msra.mxu0 0.0
  %376 = vmatprep.subr.mxu0 0.0
  %377 = vmatpush1.msra.mxu0 0.0
  %378 = vmatprep.subr.mxu0 0.0
  %379 = vmatpush1.msra.mxu0 0.0
  %380 = vmatprep.subr.mxu0 0.0
  %381 = vmatpush1.msra.mxu0 0.0
  %382 = vmatprep.subr.mxu0 0.0
  %383 = vmatpush1.msra.mxu0 0.0
  %384 = vmatprep.subr.mxu0 0.0
  %385 = vmatpush1.msra.mxu0 0.0
  %386 = vmatprep.subr.mxu0 0.0
  %387 = vmatpush1.msra.mxu0 0.0
  %388 = vmatprep.subr.mxu0 0.0
  %389 = vmatpush1.msra.mxu0 0.0
  %390 = vmatprep.subr.mxu0 0.0
  %391 = vmatpush1.msra.mxu0 0.0
  %392 = vmatprep.subr.mxu0 0.0
  %393 = vmatpush1.msra.mxu0 0.0
  %394 = vmatprep.subr.mxu0 0.0
  %395 = vmatpush1.msra.mxu0 0.0
  %396 = vmatprep.subr.mxu0 0.0
  %397 = vmatpush1.msra.mxu0 0.0
  %398 = vmatprep.subr.mxu0 0.0
  %399 = vmatpush1.msra.mxu0 0.0
  %400 = vmatprep.subr.mxu0 0.0
  %401 = vmatpush1.msra.mxu0 0.0
  %402 = vmatprep.subr.mxu0 0.0
  %403 = vmatpush1.msra.mxu0 0.0
  %404 = vmatprep.subr.mxu0 0.0
  %405 = vmatpush1.msra.mxu0 0.0
  %406 = vmatprep.mubr.f32.mxu0 0.0
  %407 = vmatmul.mubr.f32.gmra.mrb[0].mxu0 %v340
  %v408 = vpop.f32.mrb[0].mxu0
  %v409 = vadd.f32 0.0, %v408
  %v410 = vpop.f32.mrb[0].mxu0
  %411 = vdwg.mxu0
  %412 = vrot.lane.b32.xlu0 %v152, 64
  %v413 = vpop.permute.xlu0 %412
  %v416 = vsel %vm158, %v335, 0
  %418 = vmatprep.subr.mxu0 0.0
  %419 = vmatpush1.msra.mxu0 %v413
  %420 = vmatprep.subr.mxu0 0.0
  %421 = vmatpush1.msra.mxu0 0.0
  %422 = vmatprep.subr.mxu0 0.0
  %423 = vmatpush1.msra.mxu0 0.0
  %424 = vmatprep.subr.mxu0 0.0
  %425 = vmatpush1.msra.mxu0 0.0
  %426 = vmatprep.subr.mxu0 0.0
  %427 = vmatpush1.msra.mxu0 0.0
  %428 = vmatprep.subr.mxu0 0.0
  %429 = vmatpush1.msra.mxu0 0.0
  %430 = vmatprep.subr.mxu0 0.0
  %431 = vmatpush1.msra.mxu0 0.0
  %432 = vmatprep.subr.mxu0 0.0
  %433 = vmatpush1.msra.mxu0 0.0
  %434 = vmatprep.subr.mxu0 0.0
  %435 = vmatpush1.msra.mxu0 0.0
  %436 = vmatprep.subr.mxu0 0.0
  %437 = vmatpush1.msra.mxu0 0.0
  %438 = vmatprep.subr.mxu0 0.0
  %439 = vmatpush1.msra.mxu0 0.0
  %440 = vmatprep.subr.mxu0 0.0
  %441 = vmatpush1.msra.mxu0 0.0
  %442 = vmatprep.subr.mxu0 0.0
  %443 = vmatpush1.msra.mxu0 0.0
  %444 = vmatprep.subr.mxu0 0.0
  %445 = vmatpush1.msra.mxu0 0.0
  %446 = vmatprep.subr.mxu0 0.0
  %447 = vmatpush1.msra.mxu0 0.0
  %448 = vmatprep.subr.mxu0 0.0
  %449 = vmatpush1.msra.mxu0 0.0
  %450 = vmatprep.subr.mxu0 0.0
  %451 = vmatpush1.msra.mxu0 0.0
  %452 = vmatprep.subr.mxu0 0.0
  %453 = vmatpush1.msra.mxu0 0.0
  %454 = vmatprep.subr.mxu0 0.0
  %455 = vmatpush1.msra.mxu0 0.0
  %456 = vmatprep.subr.mxu0 0.0
  %457 = vmatpush1.msra.mxu0 0.0
  %458 = vmatprep.subr.mxu0 0.0
  %459 = vmatpush1.msra.mxu0 0.0
  %460 = vmatprep.subr.mxu0 0.0
  %461 = vmatpush1.msra.mxu0 0.0
  %462 = vmatprep.subr.mxu0 0.0
  %463 = vmatpush1.msra.mxu0 0.0
  %464 = vmatprep.subr.mxu0 0.0
  %465 = vmatpush1.msra.mxu0 0.0
  %466 = vmatprep.subr.mxu0 0.0
  %467 = vmatpush1.msra.mxu0 0.0
  %468 = vmatprep.subr.mxu0 0.0
  %469 = vmatpush1.msra.mxu0 0.0
  %470 = vmatprep.subr.mxu0 0.0
  %471 = vmatpush1.msra.mxu0 0.0
  %472 = vmatprep.subr.mxu0 0.0
  %473 = vmatpush1.msra.mxu0 0.0
  %474 = vmatprep.subr.mxu0 0.0
  %475 = vmatpush1.msra.mxu0 0.0
  %476 = vmatprep.subr.mxu0 0.0
  %477 = vmatpush1.msra.mxu0 0.0
  %478 = vmatprep.subr.mxu0 0.0
  %479 = vmatpush1.msra.mxu0 0.0
  %480 = vmatprep.subr.mxu0 0.0
  %481 = vmatpush1.msra.mxu0 0.0
  %482 = vmatprep.mubr.f32.mxu0 0.0
  %483 = vmatmul.mubr.f32.gmra.mrb[0].mxu0 %v416
  %v484 = vpop.f32.mrb[0].mxu0
  %v485 = vadd.f32 0.0, %v484
  %v486 = vpop.f32.mrb[0].mxu0
  %487 = vdwg.mxu0
  %488 = vrot.lane.b32.xlu0 %v147, 120
  %v489 = vpop.permute.xlu0 %488
  %490 = vrot.lane.b32.xlu0 %v147, 88
  %v491 = vpop.permute.xlu0 %490
  %v492 = vsel %vm158, %v489, 0
  %v494 = vsel %vm158, %v491, 0
  %496 = vmatprep.subr.mxu0 0.0
  %497 = vmatpush1.xpose.msra.mxu0 %v494
  %498 = vmatprep.subr.mxu0 0.0
  %499 = vmatpush1.xpose.msra.mxu0 0.0
  %500 = vmatprep.subr.mxu0 0.0
  %501 = vmatpush1.xpose.msra.mxu0 0.0
  %502 = vmatprep.subr.mxu0 0.0
  %503 = vmatpush1.xpose.msra.mxu0 0.0
  %504 = vmatprep.subr.mxu0 0.0
  %505 = vmatpush1.xpose.msra.mxu0 0.0
  %506 = vmatprep.subr.mxu0 0.0
  %507 = vmatpush1.xpose.msra.mxu0 0.0
  %508 = vmatprep.subr.mxu0 0.0
  %509 = vmatpush1.xpose.msra.mxu0 0.0
  %510 = vmatprep.subr.mxu0 0.0
  %511 = vmatpush1.xpose.msra.mxu0 0.0
  %512 = vmatprep.subr.mxu0 0.0
  %513 = vmatpush1.xpose.msra.mxu0 0.0
  %514 = vmatprep.subr.mxu0 0.0
  %515 = vmatpush1.xpose.msra.mxu0 0.0
  %516 = vmatprep.subr.mxu0 0.0
  %517 = vmatpush1.xpose.msra.mxu0 0.0
  %518 = vmatprep.subr.mxu0 0.0
  %519 = vmatpush1.xpose.msra.mxu0 0.0
  %520 = vmatprep.subr.mxu0 0.0
  %521 = vmatpush1.xpose.msra.mxu0 0.0
  %522 = vmatprep.subr.mxu0 0.0
  %523 = vmatpush1.xpose.msra.mxu0 0.0
  %524 = vmatprep.subr.mxu0 0.0
  %525 = vmatpush1.xpose.msra.mxu0 0.0
  %526 = vmatprep.subr.mxu0 0.0
  %527 = vmatpush1.xpose.msra.mxu0 0.0
  %528 = vmatprep.subr.mxu0 0.0
  %529 = vmatpush1.xpose.msra.mxu0 0.0
  %530 = vmatprep.subr.mxu0 0.0
  %531 = vmatpush1.xpose.msra.mxu0 0.0
  %532 = vmatprep.subr.mxu0 0.0
  %533 = vmatpush1.xpose.msra.mxu0 0.0
  %534 = vmatprep.subr.mxu0 0.0
  %535 = vmatpush1.xpose.msra.mxu0 0.0
  %536 = vmatprep.subr.mxu0 0.0
  %537 = vmatpush1.xpose.msra.mxu0 0.0
  %538 = vmatprep.subr.mxu0 0.0
  %539 = vmatpush1.xpose.msra.mxu0 0.0
  %540 = vmatprep.subr.mxu0 0.0
  %541 = vmatpush1.xpose.msra.mxu0 0.0
  %542 = vmatprep.subr.mxu0 0.0
  %543 = vmatpush1.xpose.msra.mxu0 0.0
  %544 = vmatprep.subr.mxu0 0.0
  %545 = vmatpush1.xpose.msra.mxu0 0.0
  %546 = vmatprep.subr.mxu0 0.0
  %547 = vmatpush1.xpose.msra.mxu0 0.0
  %548 = vmatprep.subr.mxu0 0.0
  %549 = vmatpush1.xpose.msra.mxu0 0.0
  %550 = vmatprep.subr.mxu0 0.0
  %551 = vmatpush1.xpose.msra.mxu0 0.0
  %552 = vmatprep.subr.mxu0 0.0
  %553 = vmatpush1.xpose.msra.mxu0 0.0
  %554 = vmatprep.subr.mxu0 0.0
  %555 = vmatpush1.xpose.msra.mxu0 0.0
  %556 = vmatprep.subr.mxu0 0.0
  %557 = vmatpush1.xpose.msra.mxu0 0.0
  %558 = vmatprep.subr.mxu0 0.0
  %559 = vmatpush1.xpose.msra.mxu0 0.0
  %560 = vmatprep.mubr.f32.mxu0 0.0
  %561 = vmatmul.mubr.f32.gmra.mrb[0].mxu0 %v492
  %v562 = vpop.f32.mrb[0].mxu0
  %v563 = vadd.f32 0.0, %v562
  %v564 = vpop.f32.mrb[0].mxu0
  %565 = vdwg.mxu0
  %566 = vrot.lane.b32.xlu0 %v152, 120
  %v567 = vpop.permute.xlu0 %566
  %568 = vrot.lane.b32.xlu0 %v152, 88
  %v569 = vpop.permute.xlu0 %568
  %v570 = vsel %vm158, %v567, 0
  %v572 = vsel %vm158, %v569, 0
  %574 = vmatprep.subr.mxu0 0.0
  %575 = vmatpush1.xpose.msra.mxu0 %v572
  %576 = vmatprep.subr.mxu0 0.0
  %577 = vmatpush1.xpose.msra.mxu0 0.0
  %578 = vmatprep.subr.mxu0 0.0
  %579 = vmatpush1.xpose.msra.mxu0 0.0
  %580 = vmatprep.subr.mxu0 0.0
  %581 = vmatpush1.xpose.msra.mxu0 0.0
  %582 = vmatprep.subr.mxu0 0.0
  %583 = vmatpush1.xpose.msra.mxu0 0.0
  %584 = vmatprep.subr.mxu0 0.0
  %585 = vmatpush1.xpose.msra.mxu0 0.0
  %586 = vmatprep.subr.mxu0 0.0
  %587 = vmatpush1.xpose.msra.mxu0 0.0
  %588 = vmatprep.subr.mxu0 0.0
  %589 = vmatpush1.xpose.msra.mxu0 0.0
  %590 = vmatprep.subr.mxu0 0.0
  %591 = vmatpush1.xpose.msra.mxu0 0.0
  %592 = vmatprep.subr.mxu0 0.0
  %593 = vmatpush1.xpose.msra.mxu0 0.0
  %594 = vmatprep.subr.mxu0 0.0
  %595 = vmatpush1.xpose.msra.mxu0 0.0
  %596 = vmatprep.subr.mxu0 0.0
  %597 = vmatpush1.xpose.msra.mxu0 0.0
  %598 = vmatprep.subr.mxu0 0.0
  %599 = vmatpush1.xpose.msra.mxu0 0.0
  %600 = vmatprep.subr.mxu0 0.0
  %601 = vmatpush1.xpose.msra.mxu0 0.0
  %602 = vmatprep.subr.mxu0 0.0
  %603 = vmatpush1.xpose.msra.mxu0 0.0
  %604 = vmatprep.subr.mxu0 0.0
  %605 = vmatpush1.xpose.msra.mxu0 0.0
  %606 = vmatprep.subr.mxu0 0.0
  %607 = vmatpush1.xpose.msra.mxu0 0.0
  %608 = vmatprep.subr.mxu0 0.0
  %609 = vmatpush1.xpose.msra.mxu0 0.0
  %610 = vmatprep.subr.mxu0 0.0
  %611 = vmatpush1.xpose.msra.mxu0 0.0
  %612 = vmatprep.subr.mxu0 0.0
  %613 = vmatpush1.xpose.msra.mxu0 0.0
  %614 = vmatprep.subr.mxu0 0.0
  %615 = vmatpush1.xpose.msra.mxu0 0.0
  %616 = vmatprep.subr.mxu0 0.0
  %617 = vmatpush1.xpose.msra.mxu0 0.0
  %618 = vmatprep.subr.mxu0 0.0
  %619 = vmatpush1.xpose.msra.mxu0 0.0
  %620 = vmatprep.subr.mxu0 0.0
  %621 = vmatpush1.xpose.msra.mxu0 0.0
  %622 = vmatprep.subr.mxu0 0.0
  %623 = vmatpush1.xpose.msra.mxu0 0.0
  %624 = vmatprep.subr.mxu0 0.0
  %625 = vmatpush1.xpose.msra.mxu0 0.0
  %626 = vmatprep.subr.mxu0 0.0
  %627 = vmatpush1.xpose.msra.mxu0 0.0
  %628 = vmatprep.subr.mxu0 0.0
  %629 = vmatpush1.xpose.msra.mxu0 0.0
  %630 = vmatprep.subr.mxu0 0.0
  %631 = vmatpush1.xpose.msra.mxu0 0.0
  %632 = vmatprep.subr.mxu0 0.0
  %633 = vmatpush1.xpose.msra.mxu0 0.0
  %634 = vmatprep.subr.mxu0 0.0
  %635 = vmatpush1.xpose.msra.mxu0 0.0
  %636 = vmatprep.subr.mxu0 0.0
  %637 = vmatpush1.xpose.msra.mxu0 0.0
  %638 = vmatprep.mubr.f32.mxu0 0.0
  %639 = vmatmul.mubr.f32.gmra.mrb[0].mxu0 %v570
  %v640 = vpop.f32.mrb[0].mxu0
  %v641 = vadd.f32 0.0, %v640
  %v642 = vpop.f32.mrb[0].mxu0
  %643 = vdwg.mxu0
  %v644 = vmul.f32 %v563, 0.35355338
  %v645 = vmul.f32 %v641, 0.35355338
  %v646 = vadd.f32 %v644, %v60
  %v647 = vadd.f32 %v645, %v61
  %v648 = vsel %vm158, %v646, -inf
  %649 = vmax.xlane.f32.xlu0 %v648
  %v650 = vpop.xlane.xlu0 %649
  %v651 = vsel %vm158, %v647, -inf
  %652 = vmax.xlane.f32.xlu0 %v651
  %v653 = vpop.xlane.xlu0 %652
  %v654 = vsub.f32 %v646, %v650
  %v655 = vsub.f32 %v647, %v653
  %v656 = vmul.f32 %v654, 1.442695
  %v657 = vpow.pop %v656
  %v658 = vmul.f32 %v655, 1.442695
  %v659 = vpow.pop %v658
  %v660 = vsel %vm158, %v657, 0.0
  %661 = vadd.xlane.f32.xlu0 %v660
  %v662 = vpop.xlane.xlu0 %661
  %v663 = vsel %vm158, %v659, 0.0
  %664 = vadd.xlane.f32.xlu0 %v663
  %v665 = vpop.xlane.xlu0 %664
  %v666 = vrcp.pop %v662
  %v667 = vrcp.pop %v665
  %v668 = vmul.f32 %v657, %v666
  %v669 = vmul.f32 %v659, %v667
  %670 = vrot.lane.b32.xlu0 %v147, 56
  %v671 = vpop.permute.xlu0 %670
  %v674 = vsel %vm158, %v668, 0
  %676 = vmatprep.subr.mxu0 0.0
  %677 = vmatpush1.msra.mxu0 %v671
  %678 = vmatprep.subr.mxu0 0.0
  %679 = vmatpush1.msra.mxu0 0.0
  %680 = vmatprep.subr.mxu0 0.0
  %681 = vmatpush1.msra.mxu0 0.0
  %682 = vmatprep.subr.mxu0 0.0
  %683 = vmatpush1.msra.mxu0 0.0
  %684 = vmatprep.subr.mxu0 0.0
  %685 = vmatpush1.msra.mxu0 0.0
  %686 = vmatprep.subr.mxu0 0.0
  %687 = vmatpush1.msra.mxu0 0.0
  %688 = vmatprep.subr.mxu0 0.0
  %689 = vmatpush1.msra.mxu0 0.0
  %690 = vmatprep.subr.mxu0 0.0
  %691 = vmatpush1.msra.mxu0 0.0
  %692 = vmatprep.subr.mxu0 0.0
  %693 = vmatpush1.msra.mxu0 0.0
  %694 = vmatprep.subr.mxu0 0.0
  %695 = vmatpush1.msra.mxu0 0.0
  %696 = vmatprep.subr.mxu0 0.0
  %697 = vmatpush1.msra.mxu0 0.0
  %698 = vmatprep.subr.mxu0 0.0
  %699 = vmatpush1.msra.mxu0 0.0
  %700 = vmatprep.subr.mxu0 0.0
  %701 = vmatpush1.msra.mxu0 0.0
  %702 = vmatprep.subr.mxu0 0.0
  %703 = vmatpush1.msra.mxu0 0.0
  %704 = vmatprep.subr.mxu0 0.0
  %705 = vmatpush1.msra.mxu0 0.0
  %706 = vmatprep.subr.mxu0 0.0
  %707 = vmatpush1.msra.mxu0 0.0
  %708 = vmatprep.subr.mxu0 0.0
  %709 = vmatpush1.msra.mxu0 0.0
  %710 = vmatprep.subr.mxu0 0.0
  %711 = vmatpush1.msra.mxu0 0.0
  %712 = vmatprep.subr.mxu0 0.0
  %713 = vmatpush1.msra.mxu0 0.0
  %714 = vmatprep.subr.mxu0 0.0
  %715 = vmatpush1.msra.mxu0 0.0
  %716 = vmatprep.subr.mxu0 0.0
  %717 = vmatpush1.msra.mxu0 0.0
  %718 = vmatprep.subr.mxu0 0.0
  %719 = vmatpush1.msra.mxu0 0.0
  %720 = vmatprep.subr.mxu0 0.0
  %721 = vmatpush1.msra.mxu0 0.0
  %722 = vmatprep.subr.mxu0 0.0
  %723 = vmatpush1.msra.mxu0 0.0
  %724 = vmatprep.subr.mxu0 0.0
  %725 = vmatpush1.msra.mxu0 0.0
  %726 = vmatprep.subr.mxu0 0.0
  %727 = vmatpush1.msra.mxu0 0.0
  %728 = vmatprep.subr.mxu0 0.0
  %729 = vmatpush1.msra.mxu0 0.0
  %730 = vmatprep.subr.mxu0 0.0
  %731 = vmatpush1.msra.mxu0 0.0
  %732 = vmatprep.subr.mxu0 0.0
  %733 = vmatpush1.msra.mxu0 0.0
  %734 = vmatprep.subr.mxu0 0.0
  %735 = vmatpush1.msra.mxu0 0.0
  %736 = vmatprep.subr.mxu0 0.0
  %737 = vmatpush1.msra.mxu0 0.0
  %738 = vmatprep.subr.mxu0 0.0
  %739 = vmatpush1.msra.mxu0 0.0
  %740 = vmatprep.mubr.f32.mxu0 0.0
  %741 = vmatmul.mubr.f32.gmra.mrb[0].mxu0 %v674
  %v742 = vpop.f32.mrb[0].mxu0
  %v743 = vadd.f32 0.0, %v742
  %v744 = vpop.f32.mrb[0].mxu0
  %745 = vdwg.mxu0
  %746 = vrot.lane.b32.xlu0 %v152, 56
  %v747 = vpop.permute.xlu0 %746
  %v750 = vsel %vm158, %v669, 0
  %752 = vmatprep.subr.mxu0 0.0
  %753 = vmatpush1.msra.mxu0 %v747
  %754 = vmatprep.subr.mxu0 0.0
  %755 = vmatpush1.msra.mxu0 0.0
  %756 = vmatprep.subr.mxu0 0.0
  %757 = vmatpush1.msra.mxu0 0.0
  %758 = vmatprep.subr.mxu0 0.0
  %759 = vmatpush1.msra.mxu0 0.0
  %760 = vmatprep.subr.mxu0 0.0
  %761 = vmatpush1.msra.mxu0 0.0
  %762 = vmatprep.subr.mxu0 0.0
  %763 = vmatpush1.msra.mxu0 0.0
  %764 = vmatprep.subr.mxu0 0.0
  %765 = vmatpush1.msra.mxu0 0.0
  %766 = vmatprep.subr.mxu0 0.0
  %767 = vmatpush1.msra.mxu0 0.0
  %768 = vmatprep.subr.mxu0 0.0
  %769 = vmatpush1.msra.mxu0 0.0
  %770 = vmatprep.subr.mxu0 0.0
  %771 = vmatpush1.msra.mxu0 0.0
  %772 = vmatprep.subr.mxu0 0.0
  %773 = vmatpush1.msra.mxu0 0.0
  %774 = vmatprep.subr.mxu0 0.0
  %775 = vmatpush1.msra.mxu0 0.0
  %776 = vmatprep.subr.mxu0 0.0
  %777 = vmatpush1.msra.mxu0 0.0
  %778 = vmatprep.subr.mxu0 0.0
  %779 = vmatpush1.msra.mxu0 0.0
  %780 = vmatprep.subr.mxu0 0.0
  %781 = vmatpush1.msra.mxu0 0.0
  %782 = vmatprep.subr.mxu0 0.0
  %783 = vmatpush1.msra.mxu0 0.0
  %784 = vmatprep.subr.mxu0 0.0
  %785 = vmatpush1.msra.mxu0 0.0
  %786 = vmatprep.subr.mxu0 0.0
  %787 = vmatpush1.msra.mxu0 0.0
  %788 = vmatprep.subr.mxu0 0.0
  %789 = vmatpush1.msra.mxu0 0.0
  %790 = vmatprep.subr.mxu0 0.0
  %791 = vmatpush1.msra.mxu0 0.0
  %792 = vmatprep.subr.mxu0 0.0
  %793 = vmatpush1.msra.mxu0 0.0
  %794 = vmatprep.subr.mxu0 0.0
  %795 = vmatpush1.msra.mxu0 0.0
  %796 = vmatprep.subr.mxu0 0.0
  %797 = vmatpush1.msra.mxu0 0.0
  %798 = vmatprep.subr.mxu0 0.0
  %799 = vmatpush1.msra.mxu0 0.0
  %800 = vmatprep.subr.mxu0 0.0
  %801 = vmatpush1.msra.mxu0 0.0
  %802 = vmatprep.subr.mxu0 0.0
  %803 = vmatpush1.msra.mxu0 0.0
  %804 = vmatprep.subr.mxu0 0.0
  %805 = vmatpush1.msra.mxu0 0.0
  %806 = vmatprep.subr.mxu0 0.0
  %807 = vmatpush1.msra.mxu0 0.0
  %808 = vmatprep.subr.mxu0 0.0
  %809 = vmatpush1.msra.mxu0 0.0
  %810 = vmatprep.subr.mxu0 0.0
  %811 = vmatpush1.msra.mxu0 0.0
  %812 = vmatprep.subr.mxu0 0.0
  %813 = vmatpush1.msra.mxu0 0.0
  %814 = vmatprep.subr.mxu0 0.0
  %815 = vmatpush1.msra.mxu0 0.0
  %816 = vmatprep.mubr.f32.mxu0 0.0
  %817 = vmatmul.mubr.f32.gmra.mrb[0].mxu0 %v750
  %v818 = vpop.f32.mrb[0].mxu0
  %v819 = vadd.f32 0.0, %v818
  %v820 = vpop.f32.mrb[0].mxu0
  %821 = vdwg.mxu0
  %822 = vrot.lane.b32.xlu0 %v147, 112
  %v823 = vpop.permute.xlu0 %822
  %824 = vrot.lane.b32.xlu0 %v147, 80
  %v825 = vpop.permute.xlu0 %824
  %v826 = vsel %vm158, %v823, 0
  %v828 = vsel %vm158, %v825, 0
  %830 = vmatprep.subr.mxu0 0.0
  %831 = vmatpush1.xpose.msra.mxu0 %v828
  %832 = vmatprep.subr.mxu0 0.0
  %833 = vmatpush1.xpose.msra.mxu0 0.0
  %834 = vmatprep.subr.mxu0 0.0
  %835 = vmatpush1.xpose.msra.mxu0 0.0
  %836 = vmatprep.subr.mxu0 0.0
  %837 = vmatpush1.xpose.msra.mxu0 0.0
  %838 = vmatprep.subr.mxu0 0.0
  %839 = vmatpush1.xpose.msra.mxu0 0.0
  %840 = vmatprep.subr.mxu0 0.0
  %841 = vmatpush1.xpose.msra.mxu0 0.0
  %842 = vmatprep.subr.mxu0 0.0
  %843 = vmatpush1.xpose.msra.mxu0 0.0
  %844 = vmatprep.subr.mxu0 0.0
  %845 = vmatpush1.xpose.msra.mxu0 0.0
  %846 = vmatprep.subr.mxu0 0.0
  %847 = vmatpush1.xpose.msra.mxu0 0.0
  %848 = vmatprep.subr.mxu0 0.0
  %849 = vmatpush1.xpose.msra.mxu0 0.0
  %850 = vmatprep.subr.mxu0 0.0
  %851 = vmatpush1.xpose.msra.mxu0 0.0
  %852 = vmatprep.subr.mxu0 0.0
  %853 = vmatpush1.xpose.msra.mxu0 0.0
  %854 = vmatprep.subr.mxu0 0.0
  %855 = vmatpush1.xpose.msra.mxu0 0.0
  %856 = vmatprep.subr.mxu0 0.0
  %857 = vmatpush1.xpose.msra.mxu0 0.0
  %858 = vmatprep.subr.mxu0 0.0
  %859 = vmatpush1.xpose.msra.mxu0 0.0
  %860 = vmatprep.subr.mxu0 0.0
  %861 = vmatpush1.xpose.msra.mxu0 0.0
  %862 = vmatprep.subr.mxu0 0.0
  %863 = vmatpush1.xpose.msra.mxu0 0.0
  %864 = vmatprep.subr.mxu0 0.0
  %865 = vmatpush1.xpose.msra.mxu0 0.0
  %866 = vmatprep.subr.mxu0 0.0
  %867 = vmatpush1.xpose.msra.mxu0 0.0
  %868 = vmatprep.subr.mxu0 0.0
  %869 = vmatpush1.xpose.msra.mxu0 0.0
  %870 = vmatprep.subr.mxu0 0.0
  %871 = vmatpush1.xpose.msra.mxu0 0.0
  %872 = vmatprep.subr.mxu0 0.0
  %873 = vmatpush1.xpose.msra.mxu0 0.0
  %874 = vmatprep.subr.mxu0 0.0
  %875 = vmatpush1.xpose.msra.mxu0 0.0
  %876 = vmatprep.subr.mxu0 0.0
  %877 = vmatpush1.xpose.msra.mxu0 0.0
  %878 = vmatprep.subr.mxu0 0.0
  %879 = vmatpush1.xpose.msra.mxu0 0.0
  %880 = vmatprep.subr.mxu0 0.0
  %881 = vmatpush1.xpose.msra.mxu0 0.0
  %882 = vmatprep.subr.mxu0 0.0
  %883 = vmatpush1.xpose.msra.mxu0 0.0
  %884 = vmatprep.subr.mxu0 0.0
  %885 = vmatpush1.xpose.msra.mxu0 0.0
  %886 = vmatprep.subr.mxu0 0.0
  %887 = vmatpush1.xpose.msra.mxu0 0.0
  %888 = vmatprep.subr.mxu0 0.0
  %889 = vmatpush1.xpose.msra.mxu0 0.0
  %890 = vmatprep.subr.mxu0 0.0
  %891 = vmatpush1.xpose.msra.mxu0 0.0
  %892 = vmatprep.subr.mxu0 0.0
  %893 = vmatpush1.xpose.msra.mxu0 0.0
  %894 = vmatprep.mubr.f32.mxu0 0.0
  %895 = vmatmul.mubr.f32.gmra.mrb[0].mxu0 %v826
  %v896 = vpop.f32.mrb[0].mxu0
  %v897 = vadd.f32 0.0, %v896
  %v898 = vpop.f32.mrb[0].mxu0
  %899 = vdwg.mxu0
  %900 = vrot.lane.b32.xlu0 %v152, 112
  %v901 = vpop.permute.xlu0 %900
  %902 = vrot.lane.b32.xlu0 %v152, 80
  %v903 = vpop.permute.xlu0 %902
  %v904 = vsel %vm158, %v901, 0
  %v906 = vsel %vm158, %v903, 0
  %908 = vmatprep.subr.mxu0 0.0
  %909 = vmatpush1.xpose.msra.mxu0 %v906
  %910 = vmatprep.subr.mxu0 0.0
  %911 = vmatpush1.xpose.msra.mxu0 0.0
  %912 = vmatprep.subr.mxu0 0.0
  %913 = vmatpush1.xpose.msra.mxu0 0.0
  %914 = vmatprep.subr.mxu0 0.0
  %915 = vmatpush1.xpose.msra.mxu0 0.0
  %916 = vmatprep.subr.mxu0 0.0
  %917 = vmatpush1.xpose.msra.mxu0 0.0
  %918 = vmatprep.subr.mxu0 0.0
  %919 = vmatpush1.xpose.msra.mxu0 0.0
  %920 = vmatprep.subr.mxu0 0.0
  %921 = vmatpush1.xpose.msra.mxu0 0.0
  %922 = vmatprep.subr.mxu0 0.0
  %923 = vmatpush1.xpose.msra.mxu0 0.0
  %924 = vmatprep.subr.mxu0 0.0
  %925 = vmatpush1.xpose.msra.mxu0 0.0
  %926 = vmatprep.subr.mxu0 0.0
  %927 = vmatpush1.xpose.msra.mxu0 0.0
  %928 = vmatprep.subr.mxu0 0.0
  %929 = vmatpush1.xpose.msra.mxu0 0.0
  %930 = vmatprep.subr.mxu0 0.0
  %931 = vmatpush1.xpose.msra.mxu0 0.0
  %932 = vmatprep.subr.mxu0 0.0
  %933 = vmatpush1.xpose.msra.mxu0 0.0
  %934 = vmatprep.subr.mxu0 0.0
  %935 = vmatpush1.xpose.msra.mxu0 0.0
  %936 = vmatprep.subr.mxu0 0.0
  %937 = vmatpush1.xpose.msra.mxu0 0.0
  %938 = vmatprep.subr.mxu0 0.0
  %939 = vmatpush1.xpose.msra.mxu0 0.0
  %940 = vmatprep.subr.mxu0 0.0
  %941 = vmatpush1.xpose.msra.mxu0 0.0
  %942 = vmatprep.subr.mxu0 0.0
  %943 = vmatpush1.xpose.msra.mxu0 0.0
  %944 = vmatprep.subr.mxu0 0.0
  %945 = vmatpush1.xpose.msra.mxu0 0.0
  %946 = vmatprep.subr.mxu0 0.0
  %947 = vmatpush1.xpose.msra.mxu0 0.0
  %948 = vmatprep.subr.mxu0 0.0
  %949 = vmatpush1.xpose.msra.mxu0 0.0
  %950 = vmatprep.subr.mxu0 0.0
  %951 = vmatpush1.xpose.msra.mxu0 0.0
  %952 = vmatprep.subr.mxu0 0.0
  %953 = vmatpush1.xpose.msra.mxu0 0.0
  %954 = vmatprep.subr.mxu0 0.0
  %955 = vmatpush1.xpose.msra.mxu0 0.0
  %956 = vmatprep.subr.mxu0 0.0
  %957 = vmatpush1.xpose.msra.mxu0 0.0
  %958 = vmatprep.subr.mxu0 0.0
  %959 = vmatpush1.xpose.msra.mxu0 0.0
  %960 = vmatprep.subr.mxu0 0.0
  %961 = vmatpush1.xpose.msra.mxu0 0.0
  %962 = vmatprep.subr.mxu0 0.0
  %963 = vmatpush1.xpose.msra.mxu0 0.0
  %964 = vmatprep.subr.mxu0 0.0
  %965 = vmatpush1.xpose.msra.mxu0 0.0
  %966 = vmatprep.subr.mxu0 0.0
  %967 = vmatpush1.xpose.msra.mxu0 0.0
  %968 = vmatprep.subr.mxu0 0.0
  %969 = vmatpush1.xpose.msra.mxu0 0.0
  %970 = vmatprep.subr.mxu0 0.0
  %971 = vmatpush1.xpose.msra.mxu0 0.0
  %972 = vmatprep.mubr.f32.mxu0 0.0
  %973 = vmatmul.mubr.f32.gmra.mrb[0].mxu0 %v904
  %v974 = vpop.f32.mrb[0].mxu0
  %v975 = vadd.f32 0.0, %v974
  %v976 = vpop.f32.mrb[0].mxu0
  %977 = vdwg.mxu0
  %v978 = vmul.f32 %v897, 0.35355338
  %v979 = vmul.f32 %v975, 0.35355338
  %v980 = vadd.f32 %v978, %v60
  %v981 = vadd.f32 %v979, %v61
  %v982 = vsel %vm158, %v980, -inf
  %983 = vmax.xlane.f32.xlu0 %v982
  %v984 = vpop.xlane.xlu0 %983
  %v985 = vsel %vm158, %v981, -inf
  %986 = vmax.xlane.f32.xlu0 %v985
  %v987 = vpop.xlane.xlu0 %986
  %v988 = vsub.f32 %v980, %v984
  %v989 = vsub.f32 %v981, %v987
  %v990 = vmul.f32 %v988, 1.442695
  %v991 = vpow.pop %v990
  %v992 = vmul.f32 %v989, 1.442695
  %v993 = vpow.pop %v992
  %v994 = vsel %vm158, %v991, 0.0
  %995 = vadd.xlane.f32.xlu0 %v994
  %v996 = vpop.xlane.xlu0 %995
  %v997 = vsel %vm158, %v993, 0.0
  %998 = vadd.xlane.f32.xlu0 %v997
  %v999 = vpop.xlane.xlu0 %998
  %v1000 = vrcp.pop %v996
  %v1001 = vrcp.pop %v999
  %v1002 = vmul.f32 %v991, %v1000
  %v1003 = vmul.f32 %v993, %v1001
  %1004 = vrot.lane.b32.xlu0 %v147, 48
  %v1005 = vpop.permute.xlu0 %1004
  %v1008 = vsel %vm158, %v1002, 0
  %1010 = vmatprep.subr.mxu0 0.0
  %1011 = vmatpush1.msra.mxu0 %v1005
  %1012 = vmatprep.subr.mxu0 0.0
  %1013 = vmatpush1.msra.mxu0 0.0
  %1014 = vmatprep.subr.mxu0 0.0
  %1015 = vmatpush1.msra.mxu0 0.0
  %1016 = vmatprep.subr.mxu0 0.0
  %1017 = vmatpush1.msra.mxu0 0.0
  %1018 = vmatprep.subr.mxu0 0.0
  %1019 = vmatpush1.msra.mxu0 0.0
  %1020 = vmatprep.subr.mxu0 0.0
  %1021 = vmatpush1.msra.mxu0 0.0
  %1022 = vmatprep.subr.mxu0 0.0
  %1023 = vmatpush1.msra.mxu0 0.0
  %1024 = vmatprep.subr.mxu0 0.0
  %1025 = vmatpush1.msra.mxu0 0.0
  %1026 = vmatprep.subr.mxu0 0.0
  %1027 = vmatpush1.msra.mxu0 0.0
  %1028 = vmatprep.subr.mxu0 0.0
  %1029 = vmatpush1.msra.mxu0 0.0
  %1030 = vmatprep.subr.mxu0 0.0
  %1031 = vmatpush1.msra.mxu0 0.0
  %1032 = vmatprep.subr.mxu0 0.0
  %1033 = vmatpush1.msra.mxu0 0.0
  %1034 = vmatprep.subr.mxu0 0.0
  %1035 = vmatpush1.msra.mxu0 0.0
  %1036 = vmatprep.subr.mxu0 0.0
  %1037 = vmatpush1.msra.mxu0 0.0
  %1038 = vmatprep.subr.mxu0 0.0
  %1039 = vmatpush1.msra.mxu0 0.0
  %1040 = vmatprep.subr.mxu0 0.0
  %1041 = vmatpush1.msra.mxu0 0.0
  %1042 = vmatprep.subr.mxu0 0.0
  %1043 = vmatpush1.msra.mxu0 0.0
  %1044 = vmatprep.subr.mxu0 0.0
  %1045 = vmatpush1.msra.mxu0 0.0
  %1046 = vmatprep.subr.mxu0 0.0
  %1047 = vmatpush1.msra.mxu0 0.0
  %1048 = vmatprep.subr.mxu0 0.0
  %1049 = vmatpush1.msra.mxu0 0.0
  %1050 = vmatprep.subr.mxu0 0.0
  %1051 = vmatpush1.msra.mxu0 0.0
  %1052 = vmatprep.subr.mxu0 0.0
  %1053 = vmatpush1.msra.mxu0 0.0
  %1054 = vmatprep.subr.mxu0 0.0
  %1055 = vmatpush1.msra.mxu0 0.0
  %1056 = vmatprep.subr.mxu0 0.0
  %1057 = vmatpush1.msra.mxu0 0.0
  %1058 = vmatprep.subr.mxu0 0.0
  %1059 = vmatpush1.msra.mxu0 0.0
  %1060 = vmatprep.subr.mxu0 0.0
  %1061 = vmatpush1.msra.mxu0 0.0
  %1062 = vmatprep.subr.mxu0 0.0
  %1063 = vmatpush1.msra.mxu0 0.0
  %1064 = vmatprep.subr.mxu0 0.0
  %1065 = vmatpush1.msra.mxu0 0.0
  %1066 = vmatprep.subr.mxu0 0.0
  %1067 = vmatpush1.msra.mxu0 0.0
  %1068 = vmatprep.subr.mxu0 0.0
  %1069 = vmatpush1.msra.mxu0 0.0
  %1070 = vmatprep.subr.mxu0 0.0
  %1071 = vmatpush1.msra.mxu0 0.0
  %1072 = vmatprep.subr.mxu0 0.0
  %1073 = vmatpush1.msra.mxu0 0.0
  %1074 = vmatprep.mubr.f32.mxu0 0.0
  %1075 = vmatmul.mubr.f32.gmra.mrb[0].mxu0 %v1008
  %v1076 = vpop.f32.mrb[0].mxu0
  %v1077 = vadd.f32 0.0, %v1076
  %v1078 = vpop.f32.mrb[0].mxu0
  %1079 = vdwg.mxu0
  %1080 = vrot.lane.b32.xlu0 %v152, 48
  %v1081 = vpop.permute.xlu0 %1080
  %v1084 = vsel %vm158, %v1003, 0
  %1086 = vmatprep.subr.mxu0 0.0
  %1087 = vmatpush1.msra.mxu0 %v1081
  %1088 = vmatprep.subr.mxu0 0.0
  %1089 = vmatpush1.msra.mxu0 0.0
  %1090 = vmatprep.subr.mxu0 0.0
  %1091 = vmatpush1.msra.mxu0 0.0
  %1092 = vmatprep.subr.mxu0 0.0
  %1093 = vmatpush1.msra.mxu0 0.0
  %1094 = vmatprep.subr.mxu0 0.0
  %1095 = vmatpush1.msra.mxu0 0.0
  %1096 = vmatprep.subr.mxu0 0.0
  %1097 = vmatpush1.msra.mxu0 0.0
  %1098 = vmatprep.subr.mxu0 0.0
  %1099 = vmatpush1.msra.mxu0 0.0
  %1100 = vmatprep.subr.mxu0 0.0
  %1101 = vmatpush1.msra.mxu0 0.0
  %1102 = vmatprep.subr.mxu0 0.0
  %1103 = vmatpush1.msra.mxu0 0.0
  %1104 = vmatprep.subr.mxu0 0.0
  %1105 = vmatpush1.msra.mxu0 0.0
  %1106 = vmatprep.subr.mxu0 0.0
  %1107 = vmatpush1.msra.mxu0 0.0
  %1108 = vmatprep.subr.mxu0 0.0
  %1109 = vmatpush1.msra.mxu0 0.0
  %1110 = vmatprep.subr.mxu0 0.0
  %1111 = vmatpush1.msra.mxu0 0.0
  %1112 = vmatprep.subr.mxu0 0.0
  %1113 = vmatpush1.msra.mxu0 0.0
  %1114 = vmatprep.subr.mxu0 0.0
  %1115 = vmatpush1.msra.mxu0 0.0
  %1116 = vmatprep.subr.mxu0 0.0
  %1117 = vmatpush1.msra.mxu0 0.0
  %1118 = vmatprep.subr.mxu0 0.0
  %1119 = vmatpush1.msra.mxu0 0.0
  %1120 = vmatprep.subr.mxu0 0.0
  %1121 = vmatpush1.msra.mxu0 0.0
  %1122 = vmatprep.subr.mxu0 0.0
  %1123 = vmatpush1.msra.mxu0 0.0
  %1124 = vmatprep.subr.mxu0 0.0
  %1125 = vmatpush1.msra.mxu0 0.0
  %1126 = vmatprep.subr.mxu0 0.0
  %1127 = vmatpush1.msra.mxu0 0.0
  %1128 = vmatprep.subr.mxu0 0.0
  %1129 = vmatpush1.msra.mxu0 0.0
  %1130 = vmatprep.subr.mxu0 0.0
  %1131 = vmatpush1.msra.mxu0 0.0
  %1132 = vmatprep.subr.mxu0 0.0
  %1133 = vmatpush1.msra.mxu0 0.0
  %1134 = vmatprep.subr.mxu0 0.0
  %1135 = vmatpush1.msra.mxu0 0.0
  %1136 = vmatprep.subr.mxu0 0.0
  %1137 = vmatpush1.msra.mxu0 0.0
  %1138 = vmatprep.subr.mxu0 0.0
  %1139 = vmatpush1.msra.mxu0 0.0
  %1140 = vmatprep.subr.mxu0 0.0
  %1141 = vmatpush1.msra.mxu0 0.0
  %1142 = vmatprep.subr.mxu0 0.0
  %1143 = vmatpush1.msra.mxu0 0.0
  %1144 = vmatprep.subr.mxu0 0.0
  %1145 = vmatpush1.msra.mxu0 0.0
  %1146 = vmatprep.subr.mxu0 0.0
  %1147 = vmatpush1.msra.mxu0 0.0
  %1148 = vmatprep.subr.mxu0 0.0
  %1149 = vmatpush1.msra.mxu0 0.0
  %1150 = vmatprep.mubr.f32.mxu0 0.0
  %1151 = vmatmul.mubr.f32.gmra.mrb[0].mxu0 %v1084
  %v1152 = vpop.f32.mrb[0].mxu0
  %v1153 = vadd.f32 0.0, %v1152
  %v1154 = vpop.f32.mrb[0].mxu0
  %1155 = vdwg.mxu0
  %1156 = vrot.lane.b32.xlu0 %v147, 104
  %v1157 = vpop.permute.xlu0 %1156
  %1158 = vrot.lane.b32.xlu0 %v147, 72
  %v1159 = vpop.permute.xlu0 %1158
  %v1160 = vsel %vm158, %v1157, 0
  %v1162 = vsel %vm158, %v1159, 0
  %1164 = vmatprep.subr.mxu0 0.0
  %1165 = vmatpush1.xpose.msra.mxu0 %v1162
  %1166 = vmatprep.subr.mxu0 0.0
  %1167 = vmatpush1.xpose.msra.mxu0 0.0
  %1168 = vmatprep.subr.mxu0 0.0
  %1169 = vmatpush1.xpose.msra.mxu0 0.0
  %1170 = vmatprep.subr.mxu0 0.0
  %1171 = vmatpush1.xpose.msra.mxu0 0.0
  %1172 = vmatprep.subr.mxu0 0.0
  %1173 = vmatpush1.xpose.msra.mxu0 0.0
  %1174 = vmatprep.subr.mxu0 0.0
  %1175 = vmatpush1.xpose.msra.mxu0 0.0
  %1176 = vmatprep.subr.mxu0 0.0
  %1177 = vmatpush1.xpose.msra.mxu0 0.0
  %1178 = vmatprep.subr.mxu0 0.0
  %1179 = vmatpush1.xpose.msra.mxu0 0.0
  %1180 = vmatprep.subr.mxu0 0.0
  %1181 = vmatpush1.xpose.msra.mxu0 0.0
  %1182 = vmatprep.subr.mxu0 0.0
  %1183 = vmatpush1.xpose.msra.mxu0 0.0
  %1184 = vmatprep.subr.mxu0 0.0
  %1185 = vmatpush1.xpose.msra.mxu0 0.0
  %1186 = vmatprep.subr.mxu0 0.0
  %1187 = vmatpush1.xpose.msra.mxu0 0.0
  %1188 = vmatprep.subr.mxu0 0.0
  %1189 = vmatpush1.xpose.msra.mxu0 0.0
  %1190 = vmatprep.subr.mxu0 0.0
  %1191 = vmatpush1.xpose.msra.mxu0 0.0
  %1192 = vmatprep.subr.mxu0 0.0
  %1193 = vmatpush1.xpose.msra.mxu0 0.0
  %1194 = vmatprep.subr.mxu0 0.0
  %1195 = vmatpush1.xpose.msra.mxu0 0.0
  %1196 = vmatprep.subr.mxu0 0.0
  %1197 = vmatpush1.xpose.msra.mxu0 0.0
  %1198 = vmatprep.subr.mxu0 0.0
  %1199 = vmatpush1.xpose.msra.mxu0 0.0
  %1200 = vmatprep.subr.mxu0 0.0
  %1201 = vmatpush1.xpose.msra.mxu0 0.0
  %1202 = vmatprep.subr.mxu0 0.0
  %1203 = vmatpush1.xpose.msra.mxu0 0.0
  %1204 = vmatprep.subr.mxu0 0.0
  %1205 = vmatpush1.xpose.msra.mxu0 0.0
  %1206 = vmatprep.subr.mxu0 0.0
  %1207 = vmatpush1.xpose.msra.mxu0 0.0
  %1208 = vmatprep.subr.mxu0 0.0
  %1209 = vmatpush1.xpose.msra.mxu0 0.0
  %1210 = vmatprep.subr.mxu0 0.0
  %1211 = vmatpush1.xpose.msra.mxu0 0.0
  %1212 = vmatprep.subr.mxu0 0.0
  %1213 = vmatpush1.xpose.msra.mxu0 0.0
  %1214 = vmatprep.subr.mxu0 0.0
  %1215 = vmatpush1.xpose.msra.mxu0 0.0
  %1216 = vmatprep.subr.mxu0 0.0
  %1217 = vmatpush1.xpose.msra.mxu0 0.0
  %1218 = vmatprep.subr.mxu0 0.0
  %1219 = vmatpush1.xpose.msra.mxu0 0.0
  %1220 = vmatprep.subr.mxu0 0.0
  %1221 = vmatpush1.xpose.msra.mxu0 0.0
  %1222 = vmatprep.subr.mxu0 0.0
  %1223 = vmatpush1.xpose.msra.mxu0 0.0
  %1224 = vmatprep.subr.mxu0 0.0
  %1225 = vmatpush1.xpose.msra.mxu0 0.0
  %1226 = vmatprep.subr.mxu0 0.0
  %1227 = vmatpush1.xpose.msra.mxu0 0.0
  %1228 = vmatprep.mubr.f32.mxu0 0.0
  %1229 = vmatmul.mubr.f32.gmra.mrb[0].mxu0 %v1160
  %v1230 = vpop.f32.mrb[0].mxu0
  %v1231 = vadd.f32 0.0, %v1230
  %v1232 = vpop.f32.mrb[0].mxu0
  %1233 = vdwg.mxu0
  %1234 = vrot.lane.b32.xlu0 %v152, 104
  %v1235 = vpop.permute.xlu0 %1234
  %1236 = vrot.lane.b32.xlu0 %v152, 72
  %v1237 = vpop.permute.xlu0 %1236
  %v1238 = vsel %vm158, %v1235, 0
  %v1240 = vsel %vm158, %v1237, 0
  %1242 = vmatprep.subr.mxu0 0.0
  %1243 = vmatpush1.xpose.msra.mxu0 %v1240
  %1244 = vmatprep.subr.mxu0 0.0
  %1245 = vmatpush1.xpose.msra.mxu0 0.0
  %1246 = vmatprep.subr.mxu0 0.0
  %1247 = vmatpush1.xpose.msra.mxu0 0.0
  %1248 = vmatprep.subr.mxu0 0.0
  %1249 = vmatpush1.xpose.msra.mxu0 0.0
  %1250 = vmatprep.subr.mxu0 0.0
  %1251 = vmatpush1.xpose.msra.mxu0 0.0
  %1252 = vmatprep.subr.mxu0 0.0
  %1253 = vmatpush1.xpose.msra.mxu0 0.0
  %1254 = vmatprep.subr.mxu0 0.0
  %1255 = vmatpush1.xpose.msra.mxu0 0.0
  %1256 = vmatprep.subr.mxu0 0.0
  %1257 = vmatpush1.xpose.msra.mxu0 0.0
  %1258 = vmatprep.subr.mxu0 0.0
  %1259 = vmatpush1.xpose.msra.mxu0 0.0
  %1260 = vmatprep.subr.mxu0 0.0
  %1261 = vmatpush1.xpose.msra.mxu0 0.0
  %1262 = vmatprep.subr.mxu0 0.0
  %1263 = vmatpush1.xpose.msra.mxu0 0.0
  %1264 = vmatprep.subr.mxu0 0.0
  %1265 = vmatpush1.xpose.msra.mxu0 0.0
  %1266 = vmatprep.subr.mxu0 0.0
  %1267 = vmatpush1.xpose.msra.mxu0 0.0
  %1268 = vmatprep.subr.mxu0 0.0
  %1269 = vmatpush1.xpose.msra.mxu0 0.0
  %1270 = vmatprep.subr.mxu0 0.0
  %1271 = vmatpush1.xpose.msra.mxu0 0.0
  %1272 = vmatprep.subr.mxu0 0.0
  %1273 = vmatpush1.xpose.msra.mxu0 0.0
  %1274 = vmatprep.subr.mxu0 0.0
  %1275 = vmatpush1.xpose.msra.mxu0 0.0
  %1276 = vmatprep.subr.mxu0 0.0
  %1277 = vmatpush1.xpose.msra.mxu0 0.0
  %1278 = vmatprep.subr.mxu0 0.0
  %1279 = vmatpush1.xpose.msra.mxu0 0.0
  %1280 = vmatprep.subr.mxu0 0.0
  %1281 = vmatpush1.xpose.msra.mxu0 0.0
  %1282 = vmatprep.subr.mxu0 0.0
  %1283 = vmatpush1.xpose.msra.mxu0 0.0
  %1284 = vmatprep.subr.mxu0 0.0
  %1285 = vmatpush1.xpose.msra.mxu0 0.0
  %1286 = vmatprep.subr.mxu0 0.0
  %1287 = vmatpush1.xpose.msra.mxu0 0.0
  %1288 = vmatprep.subr.mxu0 0.0
  %1289 = vmatpush1.xpose.msra.mxu0 0.0
  %1290 = vmatprep.subr.mxu0 0.0
  %1291 = vmatpush1.xpose.msra.mxu0 0.0
  %1292 = vmatprep.subr.mxu0 0.0
  %1293 = vmatpush1.xpose.msra.mxu0 0.0
  %1294 = vmatprep.subr.mxu0 0.0
  %1295 = vmatpush1.xpose.msra.mxu0 0.0
  %1296 = vmatprep.subr.mxu0 0.0
  %1297 = vmatpush1.xpose.msra.mxu0 0.0
  %1298 = vmatprep.subr.mxu0 0.0
  %1299 = vmatpush1.xpose.msra.mxu0 0.0
  %1300 = vmatprep.subr.mxu0 0.0
  %1301 = vmatpush1.xpose.msra.mxu0 0.0
  %1302 = vmatprep.subr.mxu0 0.0
  %1303 = vmatpush1.xpose.msra.mxu0 0.0
  %1304 = vmatprep.subr.mxu0 0.0
  %1305 = vmatpush1.xpose.msra.mxu0 0.0
  %1306 = vmatprep.mubr.f32.mxu0 0.0
  %1307 = vmatmul.mubr.f32.gmra.mrb[0].mxu0 %v1238
  %v1308 = vpop.f32.mrb[0].mxu0
  %v1309 = vadd.f32 0.0, %v1308
  %v1310 = vpop.f32.mrb[0].mxu0
  %1311 = vdwg.mxu0
  %v1312 = vmul.f32 %v1231, 0.35355338
  %v1313 = vmul.f32 %v1309, 0.35355338
  %v1314 = vadd.f32 %v1312, %v60
  %v1315 = vadd.f32 %v1313, %v61
  %v1316 = vsel %vm158, %v1314, -inf
  %1317 = vmax.xlane.f32.xlu0 %v1316
  %v1318 = vpop.xlane.xlu0 %1317
  %v1319 = vsel %vm158, %v1315, -inf
  %1320 = vmax.xlane.f32.xlu0 %v1319
  %v1321 = vpop.xlane.xlu0 %1320
  %v1322 = vsub.f32 %v1314, %v1318
  %v1323 = vsub.f32 %v1315, %v1321
  %v1324 = vmul.f32 %v1322, 1.442695
  %v1325 = vpow.pop %v1324
  %v1326 = vmul.f32 %v1323, 1.442695
  %v1327 = vpow.pop %v1326
  %v1328 = vsel %vm158, %v1325, 0.0
  %1329 = vadd.xlane.f32.xlu0 %v1328
  %v1330 = vpop.xlane.xlu0 %1329
  %v1331 = vsel %vm158, %v1327, 0.0
  %1332 = vadd.xlane.f32.xlu0 %v1331
  %v1333 = vpop.xlane.xlu0 %1332
  %v1334 = vrcp.pop %v1330
  %v1335 = vrcp.pop %v1333
  %v1336 = vmul.f32 %v1325, %v1334
  %v1337 = vmul.f32 %v1327, %v1335
  %1338 = vrot.lane.b32.xlu0 %v147, 40
  %v1339 = vpop.permute.xlu0 %1338
  %v1342 = vsel %vm158, %v1336, 0
  %1344 = vmatprep.subr.mxu0 0.0
  %1345 = vmatpush1.msra.mxu0 %v1339
  %1346 = vmatprep.subr.mxu0 0.0
  %1347 = vmatpush1.msra.mxu0 0.0
  %1348 = vmatprep.subr.mxu0 0.0
  %1349 = vmatpush1.msra.mxu0 0.0
  %1350 = vmatprep.subr.mxu0 0.0
  %1351 = vmatpush1.msra.mxu0 0.0
  %1352 = vmatprep.subr.mxu0 0.0
  %1353 = vmatpush1.msra.mxu0 0.0
  %1354 = vmatprep.subr.mxu0 0.0
  %1355 = vmatpush1.msra.mxu0 0.0
  %1356 = vmatprep.subr.mxu0 0.0
  %1357 = vmatpush1.msra.mxu0 0.0
  %1358 = vmatprep.subr.mxu0 0.0
  %1359 = vmatpush1.msra.mxu0 0.0
  %1360 = vmatprep.subr.mxu0 0.0
  %1361 = vmatpush1.msra.mxu0 0.0
  %1362 = vmatprep.subr.mxu0 0.0
  %1363 = vmatpush1.msra.mxu0 0.0
  %1364 = vmatprep.subr.mxu0 0.0
  %1365 = vmatpush1.msra.mxu0 0.0
  %1366 = vmatprep.subr.mxu0 0.0
  %1367 = vmatpush1.msra.mxu0 0.0
  %1368 = vmatprep.subr.mxu0 0.0
  %1369 = vmatpush1.msra.mxu0 0.0
  %1370 = vmatprep.subr.mxu0 0.0
  %1371 = vmatpush1.msra.mxu0 0.0
  %1372 = vmatprep.subr.mxu0 0.0
  %1373 = vmatpush1.msra.mxu0 0.0
  %1374 = vmatprep.subr.mxu0 0.0
  %1375 = vmatpush1.msra.mxu0 0.0
  %1376 = vmatprep.subr.mxu0 0.0
  %1377 = vmatpush1.msra.mxu0 0.0
  %1378 = vmatprep.subr.mxu0 0.0
  %1379 = vmatpush1.msra.mxu0 0.0
  %1380 = vmatprep.subr.mxu0 0.0
  %1381 = vmatpush1.msra.mxu0 0.0
  %1382 = vmatprep.subr.mxu0 0.0
  %1383 = vmatpush1.msra.mxu0 0.0
  %1384 = vmatprep.subr.mxu0 0.0
  %1385 = vmatpush1.msra.mxu0 0.0
  %1386 = vmatprep.subr.mxu0 0.0
  %1387 = vmatpush1.msra.mxu0 0.0
  %1388 = vmatprep.subr.mxu0 0.0
  %1389 = vmatpush1.msra.mxu0 0.0
  %1390 = vmatprep.subr.mxu0 0.0
  %1391 = vmatpush1.msra.mxu0 0.0
  %1392 = vmatprep.subr.mxu0 0.0
  %1393 = vmatpush1.msra.mxu0 0.0
  %1394 = vmatprep.subr.mxu0 0.0
  %1395 = vmatpush1.msra.mxu0 0.0
  %1396 = vmatprep.subr.mxu0 0.0
  %1397 = vmatpush1.msra.mxu0 0.0
  %1398 = vmatprep.subr.mxu0 0.0
  %1399 = vmatpush1.msra.mxu0 0.0
  %1400 = vmatprep.subr.mxu0 0.0
  %1401 = vmatpush1.msra.mxu0 0.0
  %1402 = vmatprep.subr.mxu0 0.0
  %1403 = vmatpush1.msra.mxu0 0.0
  %1404 = vmatprep.subr.mxu0 0.0
  %1405 = vmatpush1.msra.mxu0 0.0
  %1406 = vmatprep.subr.mxu0 0.0
  %1407 = vmatpush1.msra.mxu0 0.0
  %1408 = vmatprep.mubr.f32.mxu0 0.0
  %1409 = vmatmul.mubr.f32.gmra.mrb[0].mxu0 %v1342
  %v1410 = vpop.f32.mrb[0].mxu0
  %v1411 = vadd.f32 0.0, %v1410
  %v1412 = vpop.f32.mrb[0].mxu0
  %1413 = vdwg.mxu0
  %1414 = vrot.lane.b32.xlu0 %v152, 40
  %v1415 = vpop.permute.xlu0 %1414
  %v1418 = vsel %vm158, %v1337, 0
  %1420 = vmatprep.subr.mxu0 0.0
  %1421 = vmatpush1.msra.mxu0 %v1415
  %1422 = vmatprep.subr.mxu0 0.0
  %1423 = vmatpush1.msra.mxu0 0.0
  %1424 = vmatprep.subr.mxu0 0.0
  %1425 = vmatpush1.msra.mxu0 0.0
  %1426 = vmatprep.subr.mxu0 0.0
  %1427 = vmatpush1.msra.mxu0 0.0
  %1428 = vmatprep.subr.mxu0 0.0
  %1429 = vmatpush1.msra.mxu0 0.0
  %1430 = vmatprep.subr.mxu0 0.0
  %1431 = vmatpush1.msra.mxu0 0.0
  %1432 = vmatprep.subr.mxu0 0.0
  %1433 = vmatpush1.msra.mxu0 0.0
  %1434 = vmatprep.subr.mxu0 0.0
  %1435 = vmatpush1.msra.mxu0 0.0
  %1436 = vmatprep.subr.mxu0 0.0
  %1437 = vmatpush1.msra.mxu0 0.0
  %1438 = vmatprep.subr.mxu0 0.0
  %1439 = vmatpush1.msra.mxu0 0.0
  %1440 = vmatprep.subr.mxu0 0.0
  %1441 = vmatpush1.msra.mxu0 0.0
  %1442 = vmatprep.subr.mxu0 0.0
  %1443 = vmatpush1.msra.mxu0 0.0
  %1444 = vmatprep.subr.mxu0 0.0
  %1445 = vmatpush1.msra.mxu0 0.0
  %1446 = vmatprep.subr.mxu0 0.0
  %1447 = vmatpush1.msra.mxu0 0.0
  %1448 = vmatprep.subr.mxu0 0.0
  %1449 = vmatpush1.msra.mxu0 0.0
  %1450 = vmatprep.subr.mxu0 0.0
  %1451 = vmatpush1.msra.mxu0 0.0
  %1452 = vmatprep.subr.mxu0 0.0
  %1453 = vmatpush1.msra.mxu0 0.0
  %1454 = vmatprep.subr.mxu0 0.0
  %1455 = vmatpush1.msra.mxu0 0.0
  %1456 = vmatprep.subr.mxu0 0.0
  %1457 = vmatpush1.msra.mxu0 0.0
  %1458 = vmatprep.subr.mxu0 0.0
  %1459 = vmatpush1.msra.mxu0 0.0
  %1460 = vmatprep.subr.mxu0 0.0
  %1461 = vmatpush1.msra.mxu0 0.0
  %1462 = vmatprep.subr.mxu0 0.0
  %1463 = vmatpush1.msra.mxu0 0.0
  %1464 = vmatprep.subr.mxu0 0.0
  %1465 = vmatpush1.msra.mxu0 0.0
  %1466 = vmatprep.subr.mxu0 0.0
  %1467 = vmatpush1.msra.mxu0 0.0
  %1468 = vmatprep.subr.mxu0 0.0
  %1469 = vmatpush1.msra.mxu0 0.0
  %1470 = vmatprep.subr.mxu0 0.0
  %1471 = vmatpush1.msra.mxu0 0.0
  %1472 = vmatprep.subr.mxu0 0.0
  %1473 = vmatpush1.msra.mxu0 0.0
  %1474 = vmatprep.subr.mxu0 0.0
  %1475 = vmatpush1.msra.mxu0 0.0
  %1476 = vmatprep.subr.mxu0 0.0
  %1477 = vmatpush1.msra.mxu0 0.0
  %1478 = vmatprep.subr.mxu0 0.0
  %1479 = vmatpush1.msra.mxu0 0.0
  %1480 = vmatprep.subr.mxu0 0.0
  %1481 = vmatpush1.msra.mxu0 0.0
  %1482 = vmatprep.subr.mxu0 0.0
  %1483 = vmatpush1.msra.mxu0 0.0
  %1484 = vmatprep.mubr.f32.mxu0 0.0
  %1485 = vmatmul.mubr.f32.gmra.mrb[0].mxu0 %v1418
  %v1486 = vpop.f32.mrb[0].mxu0
  %v1487 = vadd.f32 0.0, %v1486
  %v1488 = vpop.f32.mrb[0].mxu0
  %1489 = vdwg.mxu0
  %1492 = vrot.lane.b32.xlu0 %v743, 8
  %v1493 = vpop.permute.xlu0 %1492
  %1494 = vrot.lane.b32.xlu0 %v819, 8
  %v1495 = vpop.permute.xlu0 %1494
  %1500 = vrot.lane.b32.xlu0 %v1077, 16
  %v1501 = vpop.permute.xlu0 %1500
  %1502 = vrot.lane.b32.xlu0 %v1153, 16
  %v1503 = vpop.permute.xlu0 %1502
  %1508 = vrot.lane.b32.xlu0 %v1411, 24
  %v1509 = vpop.permute.xlu0 %1508
  %1510 = vrot.lane.b32.xlu0 %v1487, 24
  %v1511 = vpop.permute.xlu0 %1510
  %v1514 = vsel %vm158, %v409, %v1493
  %v1515 = vsel %vm158, %v485, %v1495
  %vm1516 = vcmask 130048
  %v1517 = vsel %vm1516, %v1514, %v1501
  %v1518 = vsel %vm1516, %v1515, %v1503
  %vm1519 = vcmask 195584
  %v1520 = vsel %vm1519, %v1517, %v1509
  %v1521 = vsel %vm1519, %v1518, %v1511
  %v1522 = vld [vmem:[%s5] sm:$0xff]
  %v1523 = vld [vmem:[%s5 + $0x8] sm:$0xff]
  %v1524 = vld [vmem:[%s5 + $0x10] sm:$0xff]
  %v1525 = vld [vmem:[%s5 + $0x18] sm:$0xff]
  %v1526 = vld [vmem:[%s6] sm:$0x1]
  %v1528 = vlaneseq
  %v1529 = vshrl.u32 %v1528, 7
  %v1530 = vsub.s32 0, %v1529
  %v1531 = vrot.slane %v1526, %v1530
  %v1534 = vsel %vm73, %v1520, 0
  %v1537 = vsel %vm73, %v1521, 0
  %1539 = vmatprep.subr.mxu0 0.0
  %1540 = vmatpush1.msra.mxu0 %v1522
  %1541 = vmatprep.subr.mxu0 0.0
  %1542 = vmatpush1.msra.mxu0 %v1523
  %1543 = vmatprep.subr.mxu0 0.0
  %1544 = vmatpush1.msra.mxu0 %v1524
  %1545 = vmatprep.subr.mxu0 0.0
  %1546 = vmatpush1.msra.mxu0 %v1525
  %1547 = vmatprep.subr.mxu0 0.0
  %1548 = vmatpush1.msra.mxu0 0.0
  %1549 = vmatprep.subr.mxu0 0.0
  %1550 = vmatpush1.msra.mxu0 0.0
  %1551 = vmatprep.subr.mxu0 0.0
  %1552 = vmatpush1.msra.mxu0 0.0
  %1553 = vmatprep.subr.mxu0 0.0
  %1554 = vmatpush1.msra.mxu0 0.0
  %1555 = vmatprep.subr.mxu0 0.0
  %1556 = vmatpush1.msra.mxu0 0.0
  %1557 = vmatprep.subr.mxu0 0.0
  %1558 = vmatpush1.msra.mxu0 0.0
  %1559 = vmatprep.subr.mxu0 0.0
  %1560 = vmatpush1.msra.mxu0 0.0
  %1561 = vmatprep.subr.mxu0 0.0
  %1562 = vmatpush1.msra.mxu0 0.0
  %1563 = vmatprep.subr.mxu0 0.0
  %1564 = vmatpush1.msra.mxu0 0.0
  %1565 = vmatprep.subr.mxu0 0.0
  %1566 = vmatpush1.msra.mxu0 0.0
  %1567 = vmatprep.subr.mxu0 0.0
  %1568 = vmatpush1.msra.mxu0 0.0
  %1569 = vmatprep.subr.mxu0 0.0
  %1570 = vmatpush1.msra.mxu0 0.0
  %1571 = vmatprep.subr.mxu0 0.0
  %1572 = vmatpush1.msra.mxu0 0.0
  %1573 = vmatprep.subr.mxu0 0.0
  %1574 = vmatpush1.msra.mxu0 0.0
  %1575 = vmatprep.subr.mxu0 0.0
  %1576 = vmatpush1.msra.mxu0 0.0
  %1577 = vmatprep.subr.mxu0 0.0
  %1578 = vmatpush1.msra.mxu0 0.0
  %1579 = vmatprep.subr.mxu0 0.0
  %1580 = vmatpush1.msra.mxu0 0.0
  %1581 = vmatprep.subr.mxu0 0.0
  %1582 = vmatpush1.msra.mxu0 0.0
  %1583 = vmatprep.subr.mxu0 0.0
  %1584 = vmatpush1.msra.mxu0 0.0
  %1585 = vmatprep.subr.mxu0 0.0
  %1586 = vmatpush1.msra.mxu0 0.0
  %1587 = vmatprep.subr.mxu0 0.0
  %1588 = vmatpush1.msra.mxu0 0.0
  %1589 = vmatprep.subr.mxu0 0.0
  %1590 = vmatpush1.msra.mxu0 0.0
  %1591 = vmatprep.subr.mxu0 0.0
  %1592 = vmatpush1.msra.mxu0 0.0
  %1593 = vmatprep.subr.mxu0 0.0
  %1594 = vmatpush1.msra.mxu0 0.0
  %1595 = vmatprep.subr.mxu0 0.0
  %1596 = vmatpush1.msra.mxu0 0.0
  %1597 = vmatprep.subr.mxu0 0.0
  %1598 = vmatpush1.msra.mxu0 0.0
  %1599 = vmatprep.subr.mxu0 0.0
  %1600 = vmatpush1.msra.mxu0 0.0
  %1601 = vmatprep.subr.mxu0 0.0
  %1602 = vmatpush1.msra.mxu0 0.0
  %1603 = vmatprep.mubr.f32.mxu0 0.0
  %1604 = vmatmul.mubr.f32.gmra.mrb[0].mxu0 %v1534
  %v1605 = vpop.f32.mrb[0].mxu0
  %v1606 = vadd.f32 %v1531, %v1605
  %v1607 = vpop.f32.mrb[0].mxu0
  %1608 = vmatprep.mubr.f32.mxu0 0.0
  %1609 = vmatmul.mubr.f32.gmra.mrb[0].mxu0 %v1537
  %v1610 = vpop.f32.mrb[0].mxu0
  %v1611 = vadd.f32 %v1531, %v1610
  %v1612 = vpop.f32.mrb[0].mxu0
  %1613 = vdwg.mxu0
  %v1614 = vld [vmem:[%s7] sm:$0xf]
  %v1615 = vadd.f32 %v58, %v1606
  %v1616 = vadd.f32 %v59, %v1611
  %v1617 = vsel %vm73, %v1615, 0.0
  %1618 = vadd.xlane.f32.xlu0 %v1617
  %v1619 = vpop.xlane.xlu0 %1618
  %v1620 = vsel %vm73, %v1616, 0.0
  %1621 = vadd.xlane.f32.xlu0 %v1620
  %v1622 = vpop.xlane.xlu0 %1621
  %v1623 = vrcp.pop 32.0
  %v1624 = vmul.f32 %v1619, %v1623
  %v1625 = vmul.f32 %v1622, %v1623
  %v1626 = vsub.f32 %v1615, %v1624
  %v1627 = vsub.f32 %v1616, %v1625
  %v1628 = vmul.f32 %v1626, %v1626
  %v1629 = vmul.f32 %v1627, %v1627
  %v1630 = vsel %vm73, %v1628, 0.0
  %1631 = vadd.xlane.f32.xlu0 %v1630
  %v1632 = vpop.xlane.xlu0 %1631
  %v1633 = vsel %vm73, %v1629, 0.0
  %1634 = vadd.xlane.f32.xlu0 %v1633
  %v1635 = vpop.xlane.xlu0 %1634
  %v1636 = vmul.f32 %v1632, %v1623
  %v1637 = vmul.f32 %v1635, %v1623
  %v1638 = vadd.f32 %v1636, 1e-05
  %v1639 = vadd.f32 %v1637, 1e-05
  %v1640 = vrsqrt.pop %v1638
  %v1641 = vrsqrt.pop %v1639
  %v1642 = vmul.f32 %v1626, %v1640
  %v1643 = vmul.f32 %v1627, %v1641
  %v1644 = vlaneseq
  %v1645 = vshrl.u32 %v1644, 7
  %v1646 = vsub.s32 0, %v1645
  %v1647 = vrot.slane %v1614, %v1646
  %v1648 = vmul.f32 %v1642, %v1647
  %v1649 = vmul.f32 %v1643, %v1647
  %v1650 = vlaneseq
  %v1651 = vshrl.u32 %v1650, 7
  %v1652 = vsub.s32 1, %v1651
  %v1653 = vrot.slane %v1614, %v1652
  %v1654 = vadd.f32 %v1648, %v1653
  %v1655 = vadd.f32 %v1649, %v1653
  %v1656 = vld [vmem:[%s8] sm:$0xff]
  %v1657 = vld [vmem:[%s8 + $0x8] sm:$0xff]
  %v1658 = vld [vmem:[%s8 + $0x10] sm:$0xff]
  %v1659 = vld [vmem:[%s8 + $0x18] sm:$0xff]
  %v1660 = vld [vmem:[%s9] sm:$0x1]
  %v1662 = vlaneseq
  %v1663 = vshrl.u32 %v1662, 7
  %v1664 = vsub.s32 0, %v1663
  %v1665 = vrot.slane %v1660, %v1664
  %v1668 = vsel %vm73, %v1654, 0
  %v1671 = vsel %vm73, %v1655, 0
  %1673 = vmatprep.subr.mxu0 0.0
  %1674 = vmatpush1.msra.mxu0 %v1656
  %1675 = vmatprep.subr.mxu0 0.0
  %1676 = vmatpush1.msra.mxu0 %v1657
  %1677 = vmatprep.subr.mxu0 0.0
  %1678 = vmatpush1.msra.mxu0 %v1658
  %1679 = vmatprep.subr.mxu0 0.0
  %1680 = vmatpush1.msra.mxu0 %v1659
  %1681 = vmatprep.subr.mxu0 0.0
  %1682 = vmatpush1.msra.mxu0 0.0
  %1683 = vmatprep.subr.mxu0 0.0
  %1684 = vmatpush1.msra.mxu0 0.0
  %1685 = vmatprep.subr.mxu0 0.0
  %1686 = vmatpush1.msra.mxu0 0.0
  %1687 = vmatprep.subr.mxu0 0.0
  %1688 = vmatpush1.msra.mxu0 0.0
  %1689 = vmatprep.subr.mxu0 0.0
  %1690 = vmatpush1.msra.mxu0 0.0
  %1691 = vmatprep.subr.mxu0 0.0
  %1692 = vmatpush1.msra.mxu0 0.0
  %1693 = vmatprep.subr.mxu0 0.0
  %1694 = vmatpush1.msra.mxu0 0.0
  %1695 = vmatprep.subr.mxu0 0.0
  %1696 = vmatpush1.msra.mxu0 0.0
  %1697 = vmatprep.subr.mxu0 0.0
  %1698 = vmatpush1.msra.mxu0 0.0
  %1699 = vmatprep.subr.mxu0 0.0
  %1700 = vmatpush1.msra.mxu0 0.0
  %1701 = vmatprep.subr.mxu0 0.0
  %1702 = vmatpush1.msra.mxu0 0.0
  %1703 = vmatprep.subr.mxu0 0.0
  %1704 = vmatpush1.msra.mxu0 0.0
  %1705 = vmatprep.subr.mxu0 0.0
  %1706 = vmatpush1.msra.mxu0 0.0
  %1707 = vmatprep.subr.mxu0 0.0
  %1708 = vmatpush1.msra.mxu0 0.0
  %1709 = vmatprep.subr.mxu0 0.0
  %1710 = vmatpush1.msra.mxu0 0.0
  %1711 = vmatprep.subr.mxu0 0.0
  %1712 = vmatpush1.msra.mxu0 0.0
  %1713 = vmatprep.subr.mxu0 0.0
  %1714 = vmatpush1.msra.mxu0 0.0
  %1715 = vmatprep.subr.mxu0 0.0
  %1716 = vmatpush1.msra.mxu0 0.0
  %1717 = vmatprep.subr.mxu0 0.0
  %1718 = vmatpush1.msra.mxu0 0.0
  %1719 = vmatprep.subr.mxu0 0.0
  %1720 = vmatpush1.msra.mxu0 0.0
  %1721 = vmatprep.subr.mxu0 0.0
  %1722 = vmatpush1.msra.mxu0 0.0
  %1723 = vmatprep.subr.mxu0 0.0
  %1724 = vmatpush1.msra.mxu0 0.0
  %1725 = vmatprep.subr.mxu0 0.0
  %1726 = vmatpush1.msra.mxu0 0.0
  %1727 = vmatprep.subr.mxu0 0.0
  %1728 = vmatpush1.msra.mxu0 0.0
  %1729 = vmatprep.subr.mxu0 0.0
  %1730 = vmatpush1.msra.mxu0 0.0
  %1731 = vmatprep.subr.mxu0 0.0
  %1732 = vmatpush1.msra.mxu0 0.0
  %1733 = vmatprep.subr.mxu0 0.0
  %1734 = vmatpush1.msra.mxu0 0.0
  %1735 = vmatprep.subr.mxu0 0.0
  %1736 = vmatpush1.msra.mxu0 0.0
  %1737 = vmatprep.mubr.f32.mxu0 0.0
  %1738 = vmatmul.mubr.f32.gmra.mrb[0].mxu0 %v1668
  %v1739 = vpop.f32.mrb[0].mxu0
  %v1740 = vadd.f32 %v1665, %v1739
  %v1741 = vpop.f32.mrb[0].mxu0
  %1742 = vmatprep.mubr.f32.mxu0 0.0
  %1743 = vmatmul.mubr.f32.gmra.mrb[0].mxu0 %v1671
  %v1744 = vpop.f32.mrb[0].mxu0
  %v1745 = vadd.f32 %v1665, %v1744
  %v1746 = vpop.f32.mrb[0].mxu0
  %1747 = vdwg.mxu0
  %v1748 = vmax.f32 %v1740, 0.0
  %v1749 = vmax.f32 %v1745, 0.0
  %v1750 = vld [vmem:[%s10] sm:$0xff]
  %v1751 = vld [vmem:[%s10 + $0x8] sm:$0xff]
  %v1752 = vld [vmem:[%s10 + $0x10] sm:$0xff]
  %v1753 = vld [vmem:[%s10 + $0x18] sm:$0xff]
  %v1754 = vld [vmem:[%s10 + $0x20] sm:$0xff]
  %v1755 = vld [vmem:[%s10 + $0x28] sm:$0xff]
  %v1756 = vld [vmem:[%s10 + $0x30] sm:$0xff]
  %v1757 = vld [vmem:[%s10 + $0x38] sm:$0xff]
  %v1758 = vld [vmem:[%s11] sm:$0x1]
  %v1760 = vlaneseq
  %v1761 = vshrl.u32 %v1760, 7
  %v1762 = vsub.s32 0, %v1761
  %v1763 = vrot.slane %v1758, %v1762
  %vm1765 = vcmask 523264
  %v1767 = vsel %vm1765, %v1748, 0
  %v1770 = vsel %vm1765, %v1749, 0
  %1772 = vmatprep.subr.mxu0 0.0
  %1773 = vmatpush1.msra.mxu0 %v1750
  %1774 = vmatprep.subr.mxu0 0.0
  %1775 = vmatpush1.msra.mxu0 %v1751
  %1776 = vmatprep.subr.mxu0 0.0
  %1777 = vmatpush1.msra.mxu0 %v1752
  %1778 = vmatprep.subr.mxu0 0.0
  %1779 = vmatpush1.msra.mxu0 %v1753
  %1780 = vmatprep.subr.mxu0 0.0
  %1781 = vmatpush1.msra.mxu0 %v1754
  %1782 = vmatprep.subr.mxu0 0.0
  %1783 = vmatpush1.msra.mxu0 %v1755
  %1784 = vmatprep.subr.mxu0 0.0
  %1785 = vmatpush1.msra.mxu0 %v1756
  %1786 = vmatprep.subr.mxu0 0.0
  %1787 = vmatpush1.msra.mxu0 %v1757
  %1788 = vmatprep.subr.mxu0 0.0
  %1789 = vmatpush1.msra.mxu0 0.0
  %1790 = vmatprep.subr.mxu0 0.0
  %1791 = vmatpush1.msra.mxu0 0.0
  %1792 = vmatprep.subr.mxu0 0.0
  %1793 = vmatpush1.msra.mxu0 0.0
  %1794 = vmatprep.subr.mxu0 0.0
  %1795 = vmatpush1.msra.mxu0 0.0
  %1796 = vmatprep.subr.mxu0 0.0
  %1797 = vmatpush1.msra.mxu0 0.0
  %1798 = vmatprep.subr.mxu0 0.0
  %1799 = vmatpush1.msra.mxu0 0.0
  %1800 = vmatprep.subr.mxu0 0.0
  %1801 = vmatpush1.msra.mxu0 0.0
  %1802 = vmatprep.subr.mxu0 0.0
  %1803 = vmatpush1.msra.mxu0 0.0
  %1804 = vmatprep.subr.mxu0 0.0
  %1805 = vmatpush1.msra.mxu0 0.0
  %1806 = vmatprep.subr.mxu0 0.0
  %1807 = vmatpush1.msra.mxu0 0.0
  %1808 = vmatprep.subr.mxu0 0.0
  %1809 = vmatpush1.msra.mxu0 0.0
  %1810 = vmatprep.subr.mxu0 0.0
  %1811 = vmatpush1.msra.mxu0 0.0
  %1812 = vmatprep.subr.mxu0 0.0
  %1813 = vmatpush1.msra.mxu0 0.0
  %1814 = vmatprep.subr.mxu0 0.0
  %1815 = vmatpush1.msra.mxu0 0.0
  %1816 = vmatprep.subr.mxu0 0.0
  %1817 = vmatpush1.msra.mxu0 0.0
  %1818 = vmatprep.subr.mxu0 0.0
  %1819 = vmatpush1.msra.mxu0 0.0
  %1820 = vmatprep.subr.mxu0 0.0
  %1821 = vmatpush1.msra.mxu0 0.0
  %1822 = vmatprep.subr.mxu0 0.0
  %1823 = vmatpush1.msra.mxu0 0.0
  %1824 = vmatprep.subr.mxu0 0.0
  %1825 = vmatpush1.msra.mxu0 0.0
  %1826 = vmatprep.subr.mxu0 0.0
  %1827 = vmatpush1.msra.mxu0 0.0
  %1828 = vmatprep.subr.mxu0 0.0
  %1829 = vmatpush1.msra.mxu0 0.0
  %1830 = vmatprep.subr.mxu0 0.0
  %1831 = vmatpush1.msra.mxu0 0.0
  %1832 = vmatprep.subr.mxu0 0.0
  %1833 = vmatpush1.msra.mxu0 0.0
  %1834 = vmatprep.subr.mxu0 0.0
  %1835 = vmatpush1.msra.mxu0 0.0
  %1836 = vmatprep.mubr.f32.mxu0 0.0
  %1837 = vmatmul.mubr.f32.gmra.mrb[0].mxu0 %v1767
  %v1838 = vpop.f32.mrb[0].mxu0
  %v1839 = vadd.f32 %v1763, %v1838
  %v1840 = vpop.f32.mrb[0].mxu0
  %1841 = vmatprep.mubr.f32.mxu0 0.0
  %1842 = vmatmul.mubr.f32.gmra.mrb[0].mxu0 %v1770
  %v1843 = vpop.f32.mrb[0].mxu0
  %v1844 = vadd.f32 %v1763, %v1843
  %v1845 = vpop.f32.mrb[0].mxu0
  %1846 = vdwg.mxu0
  %v1847 = vadd.f32 %v1654, %v1839
  %v1848 = vadd.f32 %v1655, %v1844
  %v1849 = vsel %vm73, %v1847, 0.0
  %1850 = vadd.xlane.f32.xlu0 %v1849
  %v1851 = vpop.xlane.xlu0 %1850
  %v1852 = vsel %vm73, %v1848, 0.0
  %1853 = vadd.xlane.f32.xlu0 %v1852
  %v1854 = vpop.xlane.xlu0 %1853
  %v1855 = vmul.f32 %v1851, %v1623
  %v1856 = vmul.f32 %v1854, %v1623
  %v1857 = vsub.f32 %v1847, %v1855
  %v1858 = vsub.f32 %v1848, %v1856
  %v1859 = vmul.f32 %v1857, %v1857
  %v1860 = vmul.f32 %v1858, %v1858
  %v1861 = vsel %vm73, %v1859, 0.0
  %1862 = vadd.xlane.f32.xlu0 %v1861
  %v1863 = vpop.xlane.xlu0 %1862
  %v1864 = vsel %vm73, %v1860, 0.0
  %1865 = vadd.xlane.f32.xlu0 %v1864
  %v1866 = vpop.xlane.xlu0 %1865
  %v1867 = vmul.f32 %v1863, %v1623
  %v1868 = vmul.f32 %v1866, %v1623
  %v1869 = vadd.f32 %v1867, 1e-05
  %v1870 = vadd.f32 %v1868, 1e-05
  %v1871 = vrsqrt.pop %v1869
  %v1872 = vrsqrt.pop %v1870
  %v1873 = vmul.f32 %v1857, %v1871
  %v1874 = vmul.f32 %v1858, %v1872
  %v1875 = vlaneseq
  %v1876 = vshrl.u32 %v1875, 7
  %v1877 = vsub.s32 2, %v1876
  %v1878 = vrot.slane %v1614, %v1877
  %v1879 = vmul.f32 %v1873, %v1878
  %v1880 = vmul.f32 %v1874, %v1878
  %v1881 = vlaneseq
  %v1882 = vshrl.u32 %v1881, 7
  %v1883 = vsub.s32 3, %v1882
  %v1884 = vrot.slane %v1614, %v1883
  %v1885 = vadd.f32 %v1879, %v1884
  %v1886 = vadd.f32 %v1880, %v1884
  %s1887 = scalar_lea.vmem %s3, 32
  %v1888 = vld [vmem:[%s1887] sm:$0xff]
  %v1889 = vld [vmem:[%s1887 + $0x8] sm:$0xff]
  %v1890 = vld [vmem:[%s1887 + $0x10] sm:$0xff]
  %v1891 = vld [vmem:[%s1887 + $0x18] sm:$0xff]
  %s1892 = scalar_lea.vmem %s4, 1
  %v1893 = vld [vmem:[%s1892] sm:$0x1]
  %v1895 = vlaneseq
  %v1896 = vshrl.u32 %v1895, 7
  %v1897 = vsub.s32 0, %v1896
  %v1898 = vrot.slane %v1893, %v1897
  %v1901 = vsel %vm73, %v1885, 0
  %v1904 = vsel %vm73, %v1886, 0
  %1906 = vmatprep.subr.mxu0 0.0
  %1907 = vmatpush1.msra.mxu0 %v1888
  %1908 = vmatprep.subr.mxu0 0.0
  %1909 = vmatpush1.msra.mxu0 %v1889
  %1910 = vmatprep.subr.mxu0 0.0
  %1911 = vmatpush1.msra.mxu0 %v1890
  %1912 = vmatprep.subr.mxu0 0.0
  %1913 = vmatpush1.msra.mxu0 %v1891
  %1914 = vmatprep.subr.mxu0 0.0
  %1915 = vmatpush1.msra.mxu0 0.0
  %1916 = vmatprep.subr.mxu0 0.0
  %1917 = vmatpush1.msra.mxu0 0.0
  %1918 = vmatprep.subr.mxu0 0.0
  %1919 = vmatpush1.msra.mxu0 0.0
  %1920 = vmatprep.subr.mxu0 0.0
  %1921 = vmatpush1.msra.mxu0 0.0
  %1922 = vmatprep.subr.mxu0 0.0
  %1923 = vmatpush1.msra.mxu0 0.0
  %1924 = vmatprep.subr.mxu0 0.0
  %1925 = vmatpush1.msra.mxu0 0.0
  %1926 = vmatprep.subr.mxu0 0.0
  %1927 = vmatpush1.msra.mxu0 0.0
  %1928 = vmatprep.subr.mxu0 0.0
  %1929 = vmatpush1.msra.mxu0 0.0
  %1930 = vmatprep.subr.mxu0 0.0
  %1931 = vmatpush1.msra.mxu0 0.0
  %1932 = vmatprep.subr.mxu0 0.0
  %1933 = vmatpush1.msra.mxu0 0.0
  %1934 = vmatprep.subr.mxu0 0.0
  %1935 = vmatpush1.msra.mxu0 0.0
  %1936 = vmatprep.subr.mxu0 0.0
  %1937 = vmatpush1.msra.mxu0 0.0
  %1938 = vmatprep.subr.mxu0 0.0
  %1939 = vmatpush1.msra.mxu0 0.0
  %1940 = vmatprep.subr.mxu0 0.0
  %1941 = vmatpush1.msra.mxu0 0.0
  %1942 = vmatprep.subr.mxu0 0.0
  %1943 = vmatpush1.msra.mxu0 0.0
  %1944 = vmatprep.subr.mxu0 0.0
  %1945 = vmatpush1.msra.mxu0 0.0
  %1946 = vmatprep.subr.mxu0 0.0
  %1947 = vmatpush1.msra.mxu0 0.0
  %1948 = vmatprep.subr.mxu0 0.0
  %1949 = vmatpush1.msra.mxu0 0.0
  %1950 = vmatprep.subr.mxu0 0.0
  %1951 = vmatpush1.msra.mxu0 0.0
  %1952 = vmatprep.subr.mxu0 0.0
  %1953 = vmatpush1.msra.mxu0 0.0
  %1954 = vmatprep.subr.mxu0 0.0
  %1955 = vmatpush1.msra.mxu0 0.0
  %1956 = vmatprep.subr.mxu0 0.0
  %1957 = vmatpush1.msra.mxu0 0.0
  %1958 = vmatprep.subr.mxu0 0.0
  %1959 = vmatpush1.msra.mxu0 0.0
  %1960 = vmatprep.subr.mxu0 0.0
  %1961 = vmatpush1.msra.mxu0 0.0
  %1962 = vmatprep.subr.mxu0 0.0
  %1963 = vmatpush1.msra.mxu0 0.0
  %1964 = vmatprep.subr.mxu0 0.0
  %1965 = vmatpush1.msra.mxu0 0.0
  %1966 = vmatprep.subr.mxu0 0.0
  %1967 = vmatpush1.msra.mxu0 0.0
  %1968 = vmatprep.subr.mxu0 0.0
  %1969 = vmatpush1.msra.mxu0 0.0
  %1970 = vmatprep.mubr.f32.mxu0 0.0
  %1971 = vmatmul.mubr.f32.gmra.mrb[0].mxu0 %v1901
  %v1972 = vpop.f32.mrb[0].mxu0
  %v1973 = vadd.f32 %v1898, %v1972
  %v1974 = vpop.f32.mrb[0].mxu0
  %1975 = vmatprep.mubr.f32.mxu0 0.0
  %1976 = vmatmul.mubr.f32.gmra.mrb[0].mxu0 %v1904
  %v1977 = vpop.f32.mrb[0].mxu0
  %v1978 = vadd.f32 %v1898, %v1977
  %v1979 = vpop.f32.mrb[0].mxu0
  %1980 = vdwg.mxu0
  %1982 = vrot.lane.b32.xlu0 %v1973, 96
  %v1983 = vpop.permute.xlu0 %1982
  %v1984 = vsel %vm158, %v1973, 0
  %v1986 = vsel %vm158, %v1983, 0
  %1988 = vmatprep.subr.mxu0 0.0
  %1989 = vmatpush1.xpose.msra.mxu0 %v1986
  %1990 = vmatprep.subr.mxu0 0.0
  %1991 = vmatpush1.xpose.msra.mxu0 0.0
  %1992 = vmatprep.subr.mxu0 0.0
  %1993 = vmatpush1.xpose.msra.mxu0 0.0
  %1994 = vmatprep.subr.mxu0 0.0
  %1995 = vmatpush1.xpose.msra.mxu0 0.0
  %1996 = vmatprep.subr.mxu0 0.0
  %1997 = vmatpush1.xpose.msra.mxu0 0.0
  %1998 = vmatprep.subr.mxu0 0.0
  %1999 = vmatpush1.xpose.msra.mxu0 0.0
  %2000 = vmatprep.subr.mxu0 0.0
  %2001 = vmatpush1.xpose.msra.mxu0 0.0
  %2002 = vmatprep.subr.mxu0 0.0
  %2003 = vmatpush1.xpose.msra.mxu0 0.0
  %2004 = vmatprep.subr.mxu0 0.0
  %2005 = vmatpush1.xpose.msra.mxu0 0.0
  %2006 = vmatprep.subr.mxu0 0.0
  %2007 = vmatpush1.xpose.msra.mxu0 0.0
  %2008 = vmatprep.subr.mxu0 0.0
  %2009 = vmatpush1.xpose.msra.mxu0 0.0
  %2010 = vmatprep.subr.mxu0 0.0
  %2011 = vmatpush1.xpose.msra.mxu0 0.0
  %2012 = vmatprep.subr.mxu0 0.0
  %2013 = vmatpush1.xpose.msra.mxu0 0.0
  %2014 = vmatprep.subr.mxu0 0.0
  %2015 = vmatpush1.xpose.msra.mxu0 0.0
  %2016 = vmatprep.subr.mxu0 0.0
  %2017 = vmatpush1.xpose.msra.mxu0 0.0
  %2018 = vmatprep.subr.mxu0 0.0
  %2019 = vmatpush1.xpose.msra.mxu0 0.0
  %2020 = vmatprep.subr.mxu0 0.0
  %2021 = vmatpush1.xpose.msra.mxu0 0.0
  %2022 = vmatprep.subr.mxu0 0.0
  %2023 = vmatpush1.xpose.msra.mxu0 0.0
  %2024 = vmatprep.subr.mxu0 0.0
  %2025 = vmatpush1.xpose.msra.mxu0 0.0
  %2026 = vmatprep.subr.mxu0 0.0
  %2027 = vmatpush1.xpose.msra.mxu0 0.0
  %2028 = vmatprep.subr.mxu0 0.0
  %2029 = vmatpush1.xpose.msra.mxu0 0.0
  %2030 = vmatprep.subr.mxu0 0.0
  %2031 = vmatpush1.xpose.msra.mxu0 0.0
  %2032 = vmatprep.subr.mxu0 0.0
  %2033 = vmatpush1.xpose.msra.mxu0 0.0
  %2034 = vmatprep.subr.mxu0 0.0
  %2035 = vmatpush1.xpose.msra.mxu0 0.0
  %2036 = vmatprep.subr.mxu0 0.0
  %2037 = vmatpush1.xpose.msra.mxu0 0.0
  %2038 = vmatprep.subr.mxu0 0.0
  %2039 = vmatpush1.xpose.msra.mxu0 0.0
  %2040 = vmatprep.subr.mxu0 0.0
  %2041 = vmatpush1.xpose.msra.mxu0 0.0
  %2042 = vmatprep.subr.mxu0 0.0
  %2043 = vmatpush1.xpose.msra.mxu0 0.0
  %2044 = vmatprep.subr.mxu0 0.0
  %2045 = vmatpush1.xpose.msra.mxu0 0.0
  %2046 = vmatprep.subr.mxu0 0.0
  %2047 = vmatpush1.xpose.msra.mxu0 0.0
  %2048 = vmatprep.subr.mxu0 0.0
  %2049 = vmatpush1.xpose.msra.mxu0 0.0
  %2050 = vmatprep.subr.mxu0 0.0
  %2051 = vmatpush1.xpose.msra.mxu0 0.0
  %2052 = vmatprep.mubr.f32.mxu0 0.0
  %2053 = vmatmul.mubr.f32.gmra.mrb[0].mxu0 %v1984
  %v2054 = vpop.f32.mrb[0].mxu0
  %v2055 = vadd.f32 0.0, %v2054
  %v2056 = vpop.f32.mrb[0].mxu0
  %2057 = vdwg.mxu0
  %2059 = vrot.lane.b32.xlu0 %v1978, 96
  %v2060 = vpop.permute.xlu0 %2059
  %v2061 = vsel %vm158, %v1978, 0
  %v2063 = vsel %vm158, %v2060, 0
  %2065 = vmatprep.subr.mxu0 0.0
  %2066 = vmatpush1.xpose.msra.mxu0 %v2063
  %2067 = vmatprep.subr.mxu0 0.0
  %2068 = vmatpush1.xpose.msra.mxu0 0.0
  %2069 = vmatprep.subr.mxu0 0.0
  %2070 = vmatpush1.xpose.msra.mxu0 0.0
  %2071 = vmatprep.subr.mxu0 0.0
  %2072 = vmatpush1.xpose.msra.mxu0 0.0
  %2073 = vmatprep.subr.mxu0 0.0
  %2074 = vmatpush1.xpose.msra.mxu0 0.0
  %2075 = vmatprep.subr.mxu0 0.0
  %2076 = vmatpush1.xpose.msra.mxu0 0.0
  %2077 = vmatprep.subr.mxu0 0.0
  %2078 = vmatpush1.xpose.msra.mxu0 0.0
  %2079 = vmatprep.subr.mxu0 0.0
  %2080 = vmatpush1.xpose.msra.mxu0 0.0
  %2081 = vmatprep.subr.mxu0 0.0
  %2082 = vmatpush1.xpose.msra.mxu0 0.0
  %2083 = vmatprep.subr.mxu0 0.0
  %2084 = vmatpush1.xpose.msra.mxu0 0.0
  %2085 = vmatprep.subr.mxu0 0.0
  %2086 = vmatpush1.xpose.msra.mxu0 0.0
  %2087 = vmatprep.subr.mxu0 0.0
  %2088 = vmatpush1.xpose.msra.mxu0 0.0
  %2089 = vmatprep.subr.mxu0 0.0
  %2090 = vmatpush1.xpose.msra.mxu0 0.0
  %2091 = vmatprep.subr.mxu0 0.0
  %2092 = vmatpush1.xpose.msra.mxu0 0.0
  %2093 = vmatprep.subr.mxu0 0.0
  %2094 = vmatpush1.xpose.msra.mxu0 0.0
  %2095 = vmatprep.subr.mxu0 0.0
  %2096 = vmatpush1.xpose.msra.mxu0 0.0
  %2097 = vmatprep.subr.mxu0 0.0
  %2098 = vmatpush1.xpose.msra.mxu0 0.0
  %2099 = vmatprep.subr.mxu0 0.0
  %2100 = vmatpush1.xpose.msra.mxu0 0.0
  %2101 = vmatprep.subr.mxu0 0.0
  %2102 = vmatpush1.xpose.msra.mxu0 0.0
  %2103 = vmatprep.subr.mxu0 0.0
  %2104 = vmatpush1.xpose.msra.mxu0 0.0
  %2105 = vmatprep.subr.mxu0 0.0
  %2106 = vmatpush1.xpose.msra.mxu0 0.0
  %2107 = vmatprep.subr.mxu0 0.0
  %2108 = vmatpush1.xpose.msra.mxu0 0.0
  %2109 = vmatprep.subr.mxu0 0.0
  %2110 = vmatpush1.xpose.msra.mxu0 0.0
  %2111 = vmatprep.subr.mxu0 0.0
  %2112 = vmatpush1.xpose.msra.mxu0 0.0
  %2113 = vmatprep.subr.mxu0 0.0
  %2114 = vmatpush1.xpose.msra.mxu0 0.0
  %2115 = vmatprep.subr.mxu0 0.0
  %2116 = vmatpush1.xpose.msra.mxu0 0.0
  %2117 = vmatprep.subr.mxu0 0.0
  %2118 = vmatpush1.xpose.msra.mxu0 0.0
  %2119 = vmatprep.subr.mxu0 0.0
  %2120 = vmatpush1.xpose.msra.mxu0 0.0
  %2121 = vmatprep.subr.mxu0 0.0
  %2122 = vmatpush1.xpose.msra.mxu0 0.0
  %2123 = vmatprep.subr.mxu0 0.0
  %2124 = vmatpush1.xpose.msra.mxu0 0.0
  %2125 = vmatprep.subr.mxu0 0.0
  %2126 = vmatpush1.xpose.msra.mxu0 0.0
  %2127 = vmatprep.subr.mxu0 0.0
  %2128 = vmatpush1.xpose.msra.mxu0 0.0
  %2129 = vmatprep.mubr.f32.mxu0 0.0
  %2130 = vmatmul.mubr.f32.gmra.mrb[0].mxu0 %v2061
  %v2131 = vpop.f32.mrb[0].mxu0
  %v2132 = vadd.f32 0.0, %v2131
  %v2133 = vpop.f32.mrb[0].mxu0
  %2134 = vdwg.mxu0
  %v2135 = vmul.f32 %v2055, 0.35355338
  %v2136 = vmul.f32 %v2132, 0.35355338
  %v2137 = vadd.f32 %v2135, %v60
  %v2138 = vadd.f32 %v2136, %v61
  %v2139 = vsel %vm158, %v2137, -inf
  %2140 = vmax.xlane.f32.xlu0 %v2139
  %v2141 = vpop.xlane.xlu0 %2140
  %v2142 = vsel %vm158, %v2138, -inf
  %2143 = vmax.xlane.f32.xlu0 %v2142
  %v2144 = vpop.xlane.xlu0 %2143
  %v2145 = vsub.f32 %v2137, %v2141
  %v2146 = vsub.f32 %v2138, %v2144
  %v2147 = vmul.f32 %v2145, 1.442695
  %v2148 = vpow.pop %v2147
  %v2149 = vmul.f32 %v2146, 1.442695
  %v2150 = vpow.pop %v2149
  %v2151 = vsel %vm158, %v2148, 0.0
  %2152 = vadd.xlane.f32.xlu0 %v2151
  %v2153 = vpop.xlane.xlu0 %2152
  %v2154 = vsel %vm158, %v2150, 0.0
  %2155 = vadd.xlane.f32.xlu0 %v2154
  %v2156 = vpop.xlane.xlu0 %2155
  %v2157 = vrcp.pop %v2153
  %v2158 = vrcp.pop %v2156
  %v2159 = vmul.f32 %v2148, %v2157
  %v2160 = vmul.f32 %v2150, %v2158
  %2161 = vrot.lane.b32.xlu0 %v1973, 64
  %v2162 = vpop.permute.xlu0 %2161
  %v2165 = vsel %vm158, %v2159, 0
  %2167 = vmatprep.subr.mxu0 0.0
  %2168 = vmatpush1.msra.mxu0 %v2162
  %2169 = vmatprep.subr.mxu0 0.0
  %2170 = vmatpush1.msra.mxu0 0.0
  %2171 = vmatprep.subr.mxu0 0.0
  %2172 = vmatpush1.msra.mxu0 0.0
  %2173 = vmatprep.subr.mxu0 0.0
  %2174 = vmatpush1.msra.mxu0 0.0
  %2175 = vmatprep.subr.mxu0 0.0
  %2176 = vmatpush1.msra.mxu0 0.0
  %2177 = vmatprep.subr.mxu0 0.0
  %2178 = vmatpush1.msra.mxu0 0.0
  %2179 = vmatprep.subr.mxu0 0.0
  %2180 = vmatpush1.msra.mxu0 0.0
  %2181 = vmatprep.subr.mxu0 0.0
  %2182 = vmatpush1.msra.mxu0 0.0
  %2183 = vmatprep.subr.mxu0 0.0
  %2184 = vmatpush1.msra.mxu0 0.0
  %2185 = vmatprep.subr.mxu0 0.0
  %2186 = vmatpush1.msra.mxu0 0.0
  %2187 = vmatprep.subr.mxu0 0.0
  %2188 = vmatpush1.msra.mxu0 0.0
  %2189 = vmatprep.subr.mxu0 0.0
  %2190 = vmatpush1.msra.mxu0 0.0
  %2191 = vmatprep.subr.mxu0 0.0
  %2192 = vmatpush1.msra.mxu0 0.0
  %2193 = vmatprep.subr.mxu0 0.0
  %2194 = vmatpush1.msra.mxu0 0.0
  %2195 = vmatprep.subr.mxu0 0.0
  %2196 = vmatpush1.msra.mxu0 0.0
  %2197 = vmatprep.subr.mxu0 0.0
  %2198 = vmatpush1.msra.mxu0 0.0
  %2199 = vmatprep.subr.mxu0 0.0
  %2200 = vmatpush1.msra.mxu0 0.0
  %2201 = vmatprep.subr.mxu0 0.0
  %2202 = vmatpush1.msra.mxu0 0.0
  %2203 = vmatprep.subr.mxu0 0.0
  %2204 = vmatpush1.msra.mxu0 0.0
  %2205 = vmatprep.subr.mxu0 0.0
  %2206 = vmatpush1.msra.mxu0 0.0
  %2207 = vmatprep.subr.mxu0 0.0
  %2208 = vmatpush1.msra.mxu0 0.0
  %2209 = vmatprep.subr.mxu0 0.0
  %2210 = vmatpush1.msra.mxu0 0.0
  %2211 = vmatprep.subr.mxu0 0.0
  %2212 = vmatpush1.msra.mxu0 0.0
  %2213 = vmatprep.subr.mxu0 0.0
  %2214 = vmatpush1.msra.mxu0 0.0
  %2215 = vmatprep.subr.mxu0 0.0
  %2216 = vmatpush1.msra.mxu0 0.0
  %2217 = vmatprep.subr.mxu0 0.0
  %2218 = vmatpush1.msra.mxu0 0.0
  %2219 = vmatprep.subr.mxu0 0.0
  %2220 = vmatpush1.msra.mxu0 0.0
  %2221 = vmatprep.subr.mxu0 0.0
  %2222 = vmatpush1.msra.mxu0 0.0
  %2223 = vmatprep.subr.mxu0 0.0
  %2224 = vmatpush1.msra.mxu0 0.0
  %2225 = vmatprep.subr.mxu0 0.0
  %2226 = vmatpush1.msra.mxu0 0.0
  %2227 = vmatprep.subr.mxu0 0.0
  %2228 = vmatpush1.msra.mxu0 0.0
  %2229 = vmatprep.subr.mxu0 0.0
  %2230 = vmatpush1.msra.mxu0 0.0
  %2231 = vmatprep.mubr.f32.mxu0 0.0
  %2232 = vmatmul.mubr.f32.gmra.mrb[0].mxu0 %v2165
  %v2233 = vpop.f32.mrb[0].mxu0
  %v2234 = vadd.f32 0.0, %v2233
  %v2235 = vpop.f32.mrb[0].mxu0
  %2236 = vdwg.mxu0
  %2237 = vrot.lane.b32.xlu0 %v1978, 64
  %v2238 = vpop.permute.xlu0 %2237
  %v2241 = vsel %vm158, %v2160, 0
  %2243 = vmatprep.subr.mxu0 0.0
  %2244 = vmatpush1.msra.mxu0 %v2238
  %2245 = vmatprep.subr.mxu0 0.0
  %2246 = vmatpush1.msra.mxu0 0.0
  %2247 = vmatprep.subr.mxu0 0.0
  %2248 = vmatpush1.msra.mxu0 0.0
  %2249 = vmatprep.subr.mxu0 0.0
  %2250 = vmatpush1.msra.mxu0 0.0
  %2251 = vmatprep.subr.mxu0 0.0
  %2252 = vmatpush1.msra.mxu0 0.0
  %2253 = vmatprep.subr.mxu0 0.0
  %2254 = vmatpush1.msra.mxu0 0.0
  %2255 = vmatprep.subr.mxu0 0.0
  %2256 = vmatpush1.msra.mxu0 0.0
  %2257 = vmatprep.subr.mxu0 0.0
  %2258 = vmatpush1.msra.mxu0 0.0
  %2259 = vmatprep.subr.mxu0 0.0
  %2260 = vmatpush1.msra.mxu0 0.0
  %2261 = vmatprep.subr.mxu0 0.0
  %2262 = vmatpush1.msra.mxu0 0.0
  %2263 = vmatprep.subr.mxu0 0.0
  %2264 = vmatpush1.msra.mxu0 0.0
  %2265 = vmatprep.subr.mxu0 0.0
  %2266 = vmatpush1.msra.mxu0 0.0
  %2267 = vmatprep.subr.mxu0 0.0
  %2268 = vmatpush1.msra.mxu0 0.0
  %2269 = vmatprep.subr.mxu0 0.0
  %2270 = vmatpush1.msra.mxu0 0.0
  %2271 = vmatprep.subr.mxu0 0.0
  %2272 = vmatpush1.msra.mxu0 0.0
  %2273 = vmatprep.subr.mxu0 0.0
  %2274 = vmatpush1.msra.mxu0 0.0
  %2275 = vmatprep.subr.mxu0 0.0
  %2276 = vmatpush1.msra.mxu0 0.0
  %2277 = vmatprep.subr.mxu0 0.0
  %2278 = vmatpush1.msra.mxu0 0.0
  %2279 = vmatprep.subr.mxu0 0.0
  %2280 = vmatpush1.msra.mxu0 0.0
  %2281 = vmatprep.subr.mxu0 0.0
  %2282 = vmatpush1.msra.mxu0 0.0
  %2283 = vmatprep.subr.mxu0 0.0
  %2284 = vmatpush1.msra.mxu0 0.0
  %2285 = vmatprep.subr.mxu0 0.0
  %2286 = vmatpush1.msra.mxu0 0.0
  %2287 = vmatprep.subr.mxu0 0.0
  %2288 = vmatpush1.msra.mxu0 0.0
  %2289 = vmatprep.subr.mxu0 0.0
  %2290 = vmatpush1.msra.mxu0 0.0
  %2291 = vmatprep.subr.mxu0 0.0
  %2292 = vmatpush1.msra.mxu0 0.0
  %2293 = vmatprep.subr.mxu0 0.0
  %2294 = vmatpush1.msra.mxu0 0.0
  %2295 = vmatprep.subr.mxu0 0.0
  %2296 = vmatpush1.msra.mxu0 0.0
  %2297 = vmatprep.subr.mxu0 0.0
  %2298 = vmatpush1.msra.mxu0 0.0
  %2299 = vmatprep.subr.mxu0 0.0
  %2300 = vmatpush1.msra.mxu0 0.0
  %2301 = vmatprep.subr.mxu0 0.0
  %2302 = vmatpush1.msra.mxu0 0.0
  %2303 = vmatprep.subr.mxu0 0.0
  %2304 = vmatpush1.msra.mxu0 0.0
  %2305 = vmatprep.subr.mxu0 0.0
  %2306 = vmatpush1.msra.mxu0 0.0
  %2307 = vmatprep.mubr.f32.mxu0 0.0
  %2308 = vmatmul.mubr.f32.gmra.mrb[0].mxu0 %v2241
  %v2309 = vpop.f32.mrb[0].mxu0
  %v2310 = vadd.f32 0.0, %v2309
  %v2311 = vpop.f32.mrb[0].mxu0
  %2312 = vdwg.mxu0
  %2313 = vrot.lane.b32.xlu0 %v1973, 120
  %v2314 = vpop.permute.xlu0 %2313
  %2315 = vrot.lane.b32.xlu0 %v1973, 88
  %v2316 = vpop.permute.xlu0 %2315
  %v2317 = vsel %vm158, %v2314, 0
  %v2319 = vsel %vm158, %v2316, 0
  %2321 = vmatprep.subr.mxu0 0.0
  %2322 = vmatpush1.xpose.msra.mxu0 %v2319
  %2323 = vmatprep.subr.mxu0 0.0
  %2324 = vmatpush1.xpose.msra.mxu0 0.0
  %2325 = vmatprep.subr.mxu0 0.0
  %2326 = vmatpush1.xpose.msra.mxu0 0.0
  %2327 = vmatprep.subr.mxu0 0.0
  %2328 = vmatpush1.xpose.msra.mxu0 0.0
  %2329 = vmatprep.subr.mxu0 0.0
  %2330 = vmatpush1.xpose.msra.mxu0 0.0
  %2331 = vmatprep.subr.mxu0 0.0
  %2332 = vmatpush1.xpose.msra.mxu0 0.0
  %2333 = vmatprep.subr.mxu0 0.0
  %2334 = vmatpush1.xpose.msra.mxu0 0.0
  %2335 = vmatprep.subr.mxu0 0.0
  %2336 = vmatpush1.xpose.msra.mxu0 0.0
  %2337 = vmatprep.subr.mxu0 0.0
  %2338 = vmatpush1.xpose.msra.mxu0 0.0
  %2339 = vmatprep.subr.mxu0 0.0
  %2340 = vmatpush1.xpose.msra.mxu0 0.0
  %2341 = vmatprep.subr.mxu0 0.0
  %2342 = vmatpush1.xpose.msra.mxu0 0.0
  %2343 = vmatprep.subr.mxu0 0.0
  %2344 = vmatpush1.xpose.msra.mxu0 0.0
  %2345 = vmatprep.subr.mxu0 0.0
  %2346 = vmatpush1.xpose.msra.mxu0 0.0
  %2347 = vmatprep.subr.mxu0 0.0
  %2348 = vmatpush1.xpose.msra.mxu0 0.0
  %2349 = vmatprep.subr.mxu0 0.0
  %2350 = vmatpush1.xpose.msra.mxu0 0.0
  %2351 = vmatprep.subr.mxu0 0.0
  %2352 = vmatpush1.xpose.msra.mxu0 0.0
  %2353 = vmatprep.subr.mxu0 0.0
  %2354 = vmatpush1.xpose.msra.mxu0 0.0
  %2355 = vmatprep.subr.mxu0 0.0
  %2356 = vmatpush1.xpose.msra.mxu0 0.0
  %2357 = vmatprep.subr.mxu0 0.0
  %2358 = vmatpush1.xpose.msra.mxu0 0.0
  %2359 = vmatprep.subr.mxu0 0.0
  %2360 = vmatpush1.xpose.msra.mxu0 0.0
  %2361 = vmatprep.subr.mxu0 0.0
  %2362 = vmatpush1.xpose.msra.mxu0 0.0
  %2363 = vmatprep.subr.mxu0 0.0
  %2364 = vmatpush1.xpose.msra.mxu0 0.0
  %2365 = vmatprep.subr.mxu0 0.0
  %2366 = vmatpush1.xpose.msra.mxu0 0.0
  %2367 = vmatprep.subr.mxu0 0.0
  %2368 = vmatpush1.xpose.msra.mxu0 0.0
  %2369 = vmatprep.subr.mxu0 0.0
  %2370 = vmatpush1.xpose.msra.mxu0 0.0
  %2371 = vmatprep.subr.mxu0 0.0
  %2372 = vmatpush1.xpose.msra.mxu0 0.0
  %2373 = vmatprep.subr.mxu0 0.0
  %2374 = vmatpush1.xpose.msra.mxu0 0.0
  %2375 = vmatprep.subr.mxu0 0.0
  %2376 = vmatpush1.xpose.msra.mxu0 0.0
  %2377 = vmatprep.subr.mxu0 0.0
  %2378 = vmatpush1.xpose.msra.mxu0 0.0
  %2379 = vmatprep.subr.mxu0 0.0
  %2380 = vmatpush1.xpose.msra.mxu0 0.0
  %2381 = vmatprep.subr.mxu0 0.0
  %2382 = vmatpush1.xpose.msra.mxu0 0.0
  %2383 = vmatprep.subr.mxu0 0.0
  %2384 = vmatpush1.xpose.msra.mxu0 0.0
  %2385 = vmatprep.mubr.f32.mxu0 0.0
  %2386 = vmatmul.mubr.f32.gmra.mrb[0].mxu0 %v2317
  %v2387 = vpop.f32.mrb[0].mxu0
  %v2388 = vadd.f32 0.0, %v2387
  %v2389 = vpop.f32.mrb[0].mxu0
  %2390 = vdwg.mxu0
  %2391 = vrot.lane.b32.xlu0 %v1978, 120
  %v2392 = vpop.permute.xlu0 %2391
  %2393 = vrot.lane.b32.xlu0 %v1978, 88
  %v2394 = vpop.permute.xlu0 %2393
  %v2395 = vsel %vm158, %v2392, 0
  %v2397 = vsel %vm158, %v2394, 0
  %2399 = vmatprep.subr.mxu0 0.0
  %2400 = vmatpush1.xpose.msra.mxu0 %v2397
  %2401 = vmatprep.subr.mxu0 0.0
  %2402 = vmatpush1.xpose.msra.mxu0 0.0
  %2403 = vmatprep.subr.mxu0 0.0
  %2404 = vmatpush1.xpose.msra.mxu0 0.0
  %2405 = vmatprep.subr.mxu0 0.0
  %2406 = vmatpush1.xpose.msra.mxu0 0.0
  %2407 = vmatprep.subr.mxu0 0.0
  %2408 = vmatpush1.xpose.msra.mxu0 0.0
  %2409 = vmatprep.subr.mxu0 0.0
  %2410 = vmatpush1.xpose.msra.mxu0 0.0
  %2411 = vmatprep.subr.mxu0 0.0
  %2412 = vmatpush1.xpose.msra.mxu0 0.0
  %2413 = vmatprep.subr.mxu0 0.0
  %2414 = vmatpush1.xpose.msra.mxu0 0.0
  %2415 = vmatprep.subr.mxu0 0.0
  %2416 = vmatpush1.xpose.msra.mxu0 0.0
  %2417 = vmatprep.subr.mxu0 0.0
  %2418 = vmatpush1.xpose.msra.mxu0 0.0
  %2419 = vmatprep.subr.mxu0 0.0
  %2420 = vmatpush1.xpose.msra.mxu0 0.0
  %2421 = vmatprep.subr.mxu0 0.0
  %2422 = vmatpush1.xpose.msra.mxu0 0.0
  %2423 = vmatprep.subr.mxu0 0.0
  %2424 = vmatpush1.xpose.msra.mxu0 0.0
  %2425 = vmatprep.subr.mxu0 0.0
  %2426 = vmatpush1.xpose.msra.mxu0 0.0
  %2427 = vmatprep.subr.mxu0 0.0
  %2428 = vmatpush1.xpose.msra.mxu0 0.0
  %2429 = vmatprep.subr.mxu0 0.0
  %2430 = vmatpush1.xpose.msra.mxu0 0.0
  %2431 = vmatprep.subr.mxu0 0.0
  %2432 = vmatpush1.xpose.msra.mxu0 0.0
  %2433 = vmatprep.subr.mxu0 0.0
  %2434 = vmatpush1.xpose.msra.mxu0 0.0
  %2435 = vmatprep.subr.mxu0 0.0
  %2436 = vmatpush1.xpose.msra.mxu0 0.0
  %2437 = vmatprep.subr.mxu0 0.0
  %2438 = vmatpush1.xpose.msra.mxu0 0.0
  %2439 = vmatprep.subr.mxu0 0.0
  %2440 = vmatpush1.xpose.msra.mxu0 0.0
  %2441 = vmatprep.subr.mxu0 0.0
  %2442 = vmatpush1.xpose.msra.mxu0 0.0
  %2443 = vmatprep.subr.mxu0 0.0
  %2444 = vmatpush1.xpose.msra.mxu0 0.0
  %2445 = vmatprep.subr.mxu0 0.0
  %2446 = vmatpush1.xpose.msra.mxu0 0.0
  %2447 = vmatprep.subr.mxu0 0.0
  %2448 = vmatpush1.xpose.msra.mxu0 0.0
  %2449 = vmatprep.subr.mxu0 0.0
  %2450 = vmatpush1.xpose.msra.mxu0 0.0
  %2451 = vmatprep.subr.mxu0 0.0
  %2452 = vmatpush1.xpose.msra.mxu0 0.0
  %2453 = vmatprep.subr.mxu0 0.0
  %2454 = vmatpush1.xpose.msra.mxu0 0.0
  %2455 = vmatprep.subr.mxu0 0.0
  %2456 = vmatpush1.xpose.msra.mxu0 0.0
  %2457 = vmatprep.subr.mxu0 0.0
  %2458 = vmatpush1.xpose.msra.mxu0 0.0
  %2459 = vmatprep.subr.mxu0 0.0
  %2460 = vmatpush1.xpose.msra.mxu0 0.0
  %2461 = vmatprep.subr.mxu0 0.0
  %2462 = vmatpush1.xpose.msra.mxu0 0.0
  %2463 = vmatprep.mubr.f32.mxu0 0.0
  %2464 = vmatmul.mubr.f32.gmra.mrb[0].mxu0 %v2395
  %v2465 = vpop.f32.mrb[0].mxu0
  %v2466 = vadd.f32 0.0, %v2465
  %v2467 = vpop.f32.mrb[0].mxu0
  %2468 = vdwg.mxu0
  %v2469 = vmul.f32 %v2388, 0.35355338
  %v2470 = vmul.f32 %v2466, 0.35355338
  %v2471 = vadd.f32 %v2469, %v60
  %v2472 = vadd.f32 %v2470, %v61
  %v2473 = vsel %vm158, %v2471, -inf
  %2474 = vmax.xlane.f32.xlu0 %v2473
  %v2475 = vpop.xlane.xlu0 %2474
  %v2476 = vsel %vm158, %v2472, -inf
  %2477 = vmax.xlane.f32.xlu0 %v2476
  %v2478 = vpop.xlane.xlu0 %2477
  %v2479 = vsub.f32 %v2471, %v2475
  %v2480 = vsub.f32 %v2472, %v2478
  %v2481 = vmul.f32 %v2479, 1.442695
  %v2482 = vpow.pop %v2481
  %v2483 = vmul.f32 %v2480, 1.442695
  %v2484 = vpow.pop %v2483
  %v2485 = vsel %vm158, %v2482, 0.0
  %2486 = vadd.xlane.f32.xlu0 %v2485
  %v2487 = vpop.xlane.xlu0 %2486
  %v2488 = vsel %vm158, %v2484, 0.0
  %2489 = vadd.xlane.f32.xlu0 %v2488
  %v2490 = vpop.xlane.xlu0 %2489
  %v2491 = vrcp.pop %v2487
  %v2492 = vrcp.pop %v2490
  %v2493 = vmul.f32 %v2482, %v2491
  %v2494 = vmul.f32 %v2484, %v2492
  %2495 = vrot.lane.b32.xlu0 %v1973, 56
  %v2496 = vpop.permute.xlu0 %2495
  %v2499 = vsel %vm158, %v2493, 0
  %2501 = vmatprep.subr.mxu0 0.0
  %2502 = vmatpush1.msra.mxu0 %v2496
  %2503 = vmatprep.subr.mxu0 0.0
  %2504 = vmatpush1.msra.mxu0 0.0
  %2505 = vmatprep.subr.mxu0 0.0
  %2506 = vmatpush1.msra.mxu0 0.0
  %2507 = vmatprep.subr.mxu0 0.0
  %2508 = vmatpush1.msra.mxu0 0.0
  %2509 = vmatprep.subr.mxu0 0.0
  %2510 = vmatpush1.msra.mxu0 0.0
  %2511 = vmatprep.subr.mxu0 0.0
  %2512 = vmatpush1.msra.mxu0 0.0
  %2513 = vmatprep.subr.mxu0 0.0
  %2514 = vmatpush1.msra.mxu0 0.0
  %2515 = vmatprep.subr.mxu0 0.0
  %2516 = vmatpush1.msra.mxu0 0.0
  %2517 = vmatprep.subr.mxu0 0.0
  %2518 = vmatpush1.msra.mxu0 0.0
  %2519 = vmatprep.subr.mxu0 0.0
  %2520 = vmatpush1.msra.mxu0 0.0
  %2521 = vmatprep.subr.mxu0 0.0
  %2522 = vmatpush1.msra.mxu0 0.0
  %2523 = vmatprep.subr.mxu0 0.0
  %2524 = vmatpush1.msra.mxu0 0.0
  %2525 = vmatprep.subr.mxu0 0.0
  %2526 = vmatpush1.msra.mxu0 0.0
  %2527 = vmatprep.subr.mxu0 0.0
  %2528 = vmatpush1.msra.mxu0 0.0
  %2529 = vmatprep.subr.mxu0 0.0
  %2530 = vmatpush1.msra.mxu0 0.0
  %2531 = vmatprep.subr.mxu0 0.0
  %2532 = vmatpush1.msra.mxu0 0.0
  %2533 = vmatprep.subr.mxu0 0.0
  %2534 = vmatpush1.msra.mxu0 0.0
  %2535 = vmatprep.subr.mxu0 0.0
  %2536 = vmatpush1.msra.mxu0 0.0
  %2537 = vmatprep.subr.mxu0 0.0
  %2538 = vmatpush1.msra.mxu0 0.0
  %2539 = vmatprep.subr.mxu0 0.0
  %2540 = vmatpush1.msra.mxu0 0.0
  %2541 = vmatprep.subr.mxu0 0.0
  %2542 = vmatpush1.msra.mxu0 0.0
  %2543 = vmatprep.subr.mxu0 0.0
  %2544 = vmatpush1.msra.mxu0 0.0
  %2545 = vmatprep.subr.mxu0 0.0
  %2546 = vmatpush1.msra.mxu0 0.0
  %2547 = vmatprep.subr.mxu0 0.0
  %2548 = vmatpush1.msra.mxu0 0.0
  %2549 = vmatprep.subr.mxu0 0.0
  %2550 = vmatpush1.msra.mxu0 0.0
  %2551 = vmatprep.subr.mxu0 0.0
  %2552 = vmatpush1.msra.mxu0 0.0
  %2553 = vmatprep.subr.mxu0 0.0
  %2554 = vmatpush1.msra.mxu0 0.0
  %2555 = vmatprep.subr.mxu0 0.0
  %2556 = vmatpush1.msra.mxu0 0.0
  %2557 = vmatprep.subr.mxu0 0.0
  %2558 = vmatpush1.msra.mxu0 0.0
  %2559 = vmatprep.subr.mxu0 0.0
  %2560 = vmatpush1.msra.mxu0 0.0
  %2561 = vmatprep.subr.mxu0 0.0
  %2562 = vmatpush1.msra.mxu0 0.0
  %2563 = vmatprep.subr.mxu0 0.0
  %2564 = vmatpush1.msra.mxu0 0.0
  %2565 = vmatprep.mubr.f32.mxu0 0.0
  %2566 = vmatmul.mubr.f32.gmra.mrb[0].mxu0 %v2499
  %v2567 = vpop.f32.mrb[0].mxu0
  %v2568 = vadd.f32 0.0, %v2567
  %v2569 = vpop.f32.mrb[0].mxu0
  %2570 = vdwg.mxu0
  %2571 = vrot.lane.b32.xlu0 %v1978, 56
  %v2572 = vpop.permute.xlu0 %2571
  %v2575 = vsel %vm158, %v2494, 0
  %2577 = vmatprep.subr.mxu0 0.0
  %2578 = vmatpush1.msra.mxu0 %v2572
  %2579 = vmatprep.subr.mxu0 0.0
  %2580 = vmatpush1.msra.mxu0 0.0
  %2581 = vmatprep.subr.mxu0 0.0
  %2582 = vmatpush1.msra.mxu0 0.0
  %2583 = vmatprep.subr.mxu0 0.0
  %2584 = vmatpush1.msra.mxu0 0.0
  %2585 = vmatprep.subr.mxu0 0.0
  %2586 = vmatpush1.msra.mxu0 0.0
  %2587 = vmatprep.subr.mxu0 0.0
  %2588 = vmatpush1.msra.mxu0 0.0
  %2589 = vmatprep.subr.mxu0 0.0
  %2590 = vmatpush1.msra.mxu0 0.0
  %2591 = vmatprep.subr.mxu0 0.0
  %2592 = vmatpush1.msra.mxu0 0.0
  %2593 = vmatprep.subr.mxu0 0.0
  %2594 = vmatpush1.msra.mxu0 0.0
  %2595 = vmatprep.subr.mxu0 0.0
  %2596 = vmatpush1.msra.mxu0 0.0
  %2597 = vmatprep.subr.mxu0 0.0
  %2598 = vmatpush1.msra.mxu0 0.0
  %2599 = vmatprep.subr.mxu0 0.0
  %2600 = vmatpush1.msra.mxu0 0.0
  %2601 = vmatprep.subr.mxu0 0.0
  %2602 = vmatpush1.msra.mxu0 0.0
  %2603 = vmatprep.subr.mxu0 0.0
  %2604 = vmatpush1.msra.mxu0 0.0
  %2605 = vmatprep.subr.mxu0 0.0
  %2606 = vmatpush1.msra.mxu0 0.0
  %2607 = vmatprep.subr.mxu0 0.0
  %2608 = vmatpush1.msra.mxu0 0.0
  %2609 = vmatprep.subr.mxu0 0.0
  %2610 = vmatpush1.msra.mxu0 0.0
  %2611 = vmatprep.subr.mxu0 0.0
  %2612 = vmatpush1.msra.mxu0 0.0
  %2613 = vmatprep.subr.mxu0 0.0
  %2614 = vmatpush1.msra.mxu0 0.0
  %2615 = vmatprep.subr.mxu0 0.0
  %2616 = vmatpush1.msra.mxu0 0.0
  %2617 = vmatprep.subr.mxu0 0.0
  %2618 = vmatpush1.msra.mxu0 0.0
  %2619 = vmatprep.subr.mxu0 0.0
  %2620 = vmatpush1.msra.mxu0 0.0
  %2621 = vmatprep.subr.mxu0 0.0
  %2622 = vmatpush1.msra.mxu0 0.0
  %2623 = vmatprep.subr.mxu0 0.0
  %2624 = vmatpush1.msra.mxu0 0.0
  %2625 = vmatprep.subr.mxu0 0.0
  %2626 = vmatpush1.msra.mxu0 0.0
  %2627 = vmatprep.subr.mxu0 0.0
  %2628 = vmatpush1.msra.mxu0 0.0
  %2629 = vmatprep.subr.mxu0 0.0
  %2630 = vmatpush1.msra.mxu0 0.0
  %2631 = vmatprep.subr.mxu0 0.0
  %2632 = vmatpush1.msra.mxu0 0.0
  %2633 = vmatprep.subr.mxu0 0.0
  %2634 = vmatpush1.msra.mxu0 0.0
  %2635 = vmatprep.subr.mxu0 0.0
  %2636 = vmatpush1.msra.mxu0 0.0
  %2637 = vmatprep.subr.mxu0 0.0
  %2638 = vmatpush1.msra.mxu0 0.0
  %2639 = vmatprep.subr.mxu0 0.0
  %2640 = vmatpush1.msra.mxu0 0.0
  %2641 = vmatprep.mubr.f32.mxu0 0.0
  %2642 = vmatmul.mubr.f32.gmra.mrb[0].mxu0 %v2575
  %v2643 = vpop.f32.mrb[0].mxu0
  %v2644 = vadd.f32 0.0, %v2643
  %v2645 = vpop.f32.mrb[0].mxu0
  %2646 = vdwg.mxu0
  %2647 = vrot.lane.b32.xlu0 %v1973, 112
  %v2648 = vpop.permute.xlu0 %2647
  %2649 = vrot.lane.b32.xlu0 %v1973, 80
  %v2650 = vpop.permute.xlu0 %2649
  %v2651 = vsel %vm158, %v2648, 0
  %v2653 = vsel %vm158, %v2650, 0
  %2655 = vmatprep.subr.mxu0 0.0
  %2656 = vmatpush1.xpose.msra.mxu0 %v2653
  %2657 = vmatprep.subr.mxu0 0.0
  %2658 = vmatpush1.xpose.msra.mxu0 0.0
  %2659 = vmatprep.subr.mxu0 0.0
  %2660 = vmatpush1.xpose.msra.mxu0 0.0
  %2661 = vmatprep.subr.mxu0 0.0
  %2662 = vmatpush1.xpose.msra.mxu0 0.0
  %2663 = vmatprep.subr.mxu0 0.0
  %2664 = vmatpush1.xpose.msra.mxu0 0.0
  %2665 = vmatprep.subr.mxu0 0.0
  %2666 = vmatpush1.xpose.msra.mxu0 0.0
  %2667 = vmatprep.subr.mxu0 0.0
  %2668 = vmatpush1.xpose.msra.mxu0 0.0
  %2669 = vmatprep.subr.mxu0 0.0
  %2670 = vmatpush1.xpose.msra.mxu0 0.0
  %2671 = vmatprep.subr.mxu0 0.0
  %2672 = vmatpush1.xpose.msra.mxu0 0.0
  %2673 = vmatprep.subr.mxu0 0.0
  %2674 = vmatpush1.xpose.msra.mxu0 0.0
  %2675 = vmatprep.subr.mxu0 0.0
  %2676 = vmatpush1.xpose.msra.mxu0 0.0
  %2677 = vmatprep.subr.mxu0 0.0
  %2678 = vmatpush1.xpose.msra.mxu0 0.0
  %2679 = vmatprep.subr.mxu0 0.0
  %2680 = vmatpush1.xpose.msra.mxu0 0.0
  %2681 = vmatprep.subr.mxu0 0.0
  %2682 = vmatpush1.xpose.msra.mxu0 0.0
  %2683 = vmatprep.subr.mxu0 0.0
  %2684 = vmatpush1.xpose.msra.mxu0 0.0
  %2685 = vmatprep.subr.mxu0 0.0
  %2686 = vmatpush1.xpose.msra.mxu0 0.0
  %2687 = vmatprep.subr.mxu0 0.0
  %2688 = vmatpush1.xpose.msra.mxu0 0.0
  %2689 = vmatprep.subr.mxu0 0.0
  %2690 = vmatpush1.xpose.msra.mxu0 0.0
  %2691 = vmatprep.subr.mxu0 0.0
  %2692 = vmatpush1.xpose.msra.mxu0 0.0
  %2693 = vmatprep.subr.mxu0 0.0
  %2694 = vmatpush1.xpose.msra.mxu0 0.0
  %2695 = vmatprep.subr.mxu0 0.0
  %2696 = vmatpush1.xpose.msra.mxu0 0.0
  %2697 = vmatprep.subr.mxu0 0.0
  %2698 = vmatpush1.xpose.msra.mxu0 0.0
  %2699 = vmatprep.subr.mxu0 0.0
  %2700 = vmatpush1.xpose.msra.mxu0 0.0
  %2701 = vmatprep.subr.mxu0 0.0
  %2702 = vmatpush1.xpose.msra.mxu0 0.0
  %2703 = vmatprep.subr.mxu0 0.0
  %2704 = vmatpush1.xpose.msra.mxu0 0.0
  %2705 = vmatprep.subr.mxu0 0.0
  %2706 = vmatpush1.xpose.msra.mxu0 0.0
  %2707 = vmatprep.subr.mxu0 0.0
  %2708 = vmatpush1.xpose.msra.mxu0 0.0
  %2709 = vmatprep.subr.mxu0 0.0
  %2710 = vmatpush1.xpose.msra.mxu0 0.0
  %2711 = vmatprep.subr.mxu0 0.0
  %2712 = vmatpush1.xpose.msra.mxu0 0.0
  %2713 = vmatprep.subr.mxu0 0.0
  %2714 = vmatpush1.xpose.msra.mxu0 0.0
  %2715 = vmatprep.subr.mxu0 0.0
  %2716 = vmatpush1.xpose.msra.mxu0 0.0
  %2717 = vmatprep.subr.mxu0 0.0
  %2718 = vmatpush1.xpose.msra.mxu0 0.0
  %2719 = vmatprep.mubr.f32.mxu0 0.0
  %2720 = vmatmul.mubr.f32.gmra.mrb[0].mxu0 %v2651
  %v2721 = vpop.f32.mrb[0].mxu0
  %v2722 = vadd.f32 0.0, %v2721
  %v2723 = vpop.f32.mrb[0].mxu0
  %2724 = vdwg.mxu0
  %2725 = vrot.lane.b32.xlu0 %v1978, 112
  %v2726 = vpop.permute.xlu0 %2725
  %2727 = vrot.lane.b32.xlu0 %v1978, 80
  %v2728 = vpop.permute.xlu0 %2727
  %v2729 = vsel %vm158, %v2726, 0
  %v2731 = vsel %vm158, %v2728, 0
  %2733 = vmatprep.subr.mxu0 0.0
  %2734 = vmatpush1.xpose.msra.mxu0 %v2731
  %2735 = vmatprep.subr.mxu0 0.0
  %2736 = vmatpush1.xpose.msra.mxu0 0.0
  %2737 = vmatprep.subr.mxu0 0.0
  %2738 = vmatpush1.xpose.msra.mxu0 0.0
  %2739 = vmatprep.subr.mxu0 0.0
  %2740 = vmatpush1.xpose.msra.mxu0 0.0
  %2741 = vmatprep.subr.mxu0 0.0
  %2742 = vmatpush1.xpose.msra.mxu0 0.0
  %2743 = vmatprep.subr.mxu0 0.0
  %2744 = vmatpush1.xpose.msra.mxu0 0.0
  %2745 = vmatprep.subr.mxu0 0.0
  %2746 = vmatpush1.xpose.msra.mxu0 0.0
  %2747 = vmatprep.subr.mxu0 0.0
  %2748 = vmatpush1.xpose.msra.mxu0 0.0
  %2749 = vmatprep.subr.mxu0 0.0
  %2750 = vmatpush1.xpose.msra.mxu0 0.0
  %2751 = vmatprep.subr.mxu0 0.0
  %2752 = vmatpush1.xpose.msra.mxu0 0.0
  %2753 = vmatprep.subr.mxu0 0.0
  %2754 = vmatpush1.xpose.msra.mxu0 0.0
  %2755 = vmatprep.subr.mxu0 0.0
  %2756 = vmatpush1.xpose.msra.mxu0 0.0
  %2757 = vmatprep.subr.mxu0 0.0
  %2758 = vmatpush1.xpose.msra.mxu0 0.0
  %2759 = vmatprep.subr.mxu0 0.0
  %2760 = vmatpush1.xpose.msra.mxu0 0.0
  %2761 = vmatprep.subr.mxu0 0.0
  %2762 = vmatpush1.xpose.msra.mxu0 0.0
  %2763 = vmatprep.subr.mxu0 0.0
  %2764 = vmatpush1.xpose.msra.mxu0 0.0
  %2765 = vmatprep.subr.mxu0 0.0
  %2766 = vmatpush1.xpose.msra.mxu0 0.0
  %2767 = vmatprep.subr.mxu0 0.0
  %2768 = vmatpush1.xpose.msra.mxu0 0.0
  %2769 = vmatprep.subr.mxu0 0.0
  %2770 = vmatpush1.xpose.msra.mxu0 0.0
  %2771 = vmatprep.subr.mxu0 0.0
  %2772 = vmatpush1.xpose.msra.mxu0 0.0
  %2773 = vmatprep.subr.mxu0 0.0
  %2774 = vmatpush1.xpose.msra.mxu0 0.0
  %2775 = vmatprep.subr.mxu0 0.0
  %2776 = vmatpush1.xpose.msra.mxu0 0.0
  %2777 = vmatprep.subr.mxu0 0.0
  %2778 = vmatpush1.xpose.msra.mxu0 0.0
  %2779 = vmatprep.subr.mxu0 0.0
  %2780 = vmatpush1.xpose.msra.mxu0 0.0
  %2781 = vmatprep.subr.mxu0 0.0
  %2782 = vmatpush1.xpose.msra.mxu0 0.0
  %2783 = vmatprep.subr.mxu0 0.0
  %2784 = vmatpush1.xpose.msra.mxu0 0.0
  %2785 = vmatprep.subr.mxu0 0.0
  %2786 = vmatpush1.xpose.msra.mxu0 0.0
  %2787 = vmatprep.subr.mxu0 0.0
  %2788 = vmatpush1.xpose.msra.mxu0 0.0
  %2789 = vmatprep.subr.mxu0 0.0
  %2790 = vmatpush1.xpose.msra.mxu0 0.0
  %2791 = vmatprep.subr.mxu0 0.0
  %2792 = vmatpush1.xpose.msra.mxu0 0.0
  %2793 = vmatprep.subr.mxu0 0.0
  %2794 = vmatpush1.xpose.msra.mxu0 0.0
  %2795 = vmatprep.subr.mxu0 0.0
  %2796 = vmatpush1.xpose.msra.mxu0 0.0
  %2797 = vmatprep.mubr.f32.mxu0 0.0
  %2798 = vmatmul.mubr.f32.gmra.mrb[0].mxu0 %v2729
  %v2799 = vpop.f32.mrb[0].mxu0
  %v2800 = vadd.f32 0.0, %v2799
  %v2801 = vpop.f32.mrb[0].mxu0
  %2802 = vdwg.mxu0
  %v2803 = vmul.f32 %v2722, 0.35355338
  %v2804 = vmul.f32 %v2800, 0.35355338
  %v2805 = vadd.f32 %v2803, %v60
  %v2806 = vadd.f32 %v2804, %v61
  %v2807 = vsel %vm158, %v2805, -inf
  %2808 = vmax.xlane.f32.xlu0 %v2807
  %v2809 = vpop.xlane.xlu0 %2808
  %v2810 = vsel %vm158, %v2806, -inf
  %2811 = vmax.xlane.f32.xlu0 %v2810
  %v2812 = vpop.xlane.xlu0 %2811
  %v2813 = vsub.f32 %v2805, %v2809
  %v2814 = vsub.f32 %v2806, %v2812
  %v2815 = vmul.f32 %v2813, 1.442695
  %v2816 = vpow.pop %v2815
  %v2817 = vmul.f32 %v2814, 1.442695
  %v2818 = vpow.pop %v2817
  %v2819 = vsel %vm158, %v2816, 0.0
  %2820 = vadd.xlane.f32.xlu0 %v2819
  %v2821 = vpop.xlane.xlu0 %2820
  %v2822 = vsel %vm158, %v2818, 0.0
  %2823 = vadd.xlane.f32.xlu0 %v2822
  %v2824 = vpop.xlane.xlu0 %2823
  %v2825 = vrcp.pop %v2821
  %v2826 = vrcp.pop %v2824
  %v2827 = vmul.f32 %v2816, %v2825
  %v2828 = vmul.f32 %v2818, %v2826
  %2829 = vrot.lane.b32.xlu0 %v1973, 48
  %v2830 = vpop.permute.xlu0 %2829
  %v2833 = vsel %vm158, %v2827, 0
  %2835 = vmatprep.subr.mxu0 0.0
  %2836 = vmatpush1.msra.mxu0 %v2830
  %2837 = vmatprep.subr.mxu0 0.0
  %2838 = vmatpush1.msra.mxu0 0.0
  %2839 = vmatprep.subr.mxu0 0.0
  %2840 = vmatpush1.msra.mxu0 0.0
  %2841 = vmatprep.subr.mxu0 0.0
  %2842 = vmatpush1.msra.mxu0 0.0
  %2843 = vmatprep.subr.mxu0 0.0
  %2844 = vmatpush1.msra.mxu0 0.0
  %2845 = vmatprep.subr.mxu0 0.0
  %2846 = vmatpush1.msra.mxu0 0.0
  %2847 = vmatprep.subr.mxu0 0.0
  %2848 = vmatpush1.msra.mxu0 0.0
  %2849 = vmatprep.subr.mxu0 0.0
  %2850 = vmatpush1.msra.mxu0 0.0
  %2851 = vmatprep.subr.mxu0 0.0
  %2852 = vmatpush1.msra.mxu0 0.0
  %2853 = vmatprep.subr.mxu0 0.0
  %2854 = vmatpush1.msra.mxu0 0.0
  %2855 = vmatprep.subr.mxu0 0.0
  %2856 = vmatpush1.msra.mxu0 0.0
  %2857 = vmatprep.subr.mxu0 0.0
  %2858 = vmatpush1.msra.mxu0 0.0
  %2859 = vmatprep.subr.mxu0 0.0
  %2860 = vmatpush1.msra.mxu0 0.0
  %2861 = vmatprep.subr.mxu0 0.0
  %2862 = vmatpush1.msra.mxu0 0.0
  %2863 = vmatprep.subr.mxu0 0.0
  %2864 = vmatpush1.msra.mxu0 0.0
  %2865 = vmatprep.subr.mxu0 0.0
  %2866 = vmatpush1.msra.mxu0 0.0
  %2867 = vmatprep.subr.mxu0 0.0
  %2868 = vmatpush1.msra.mxu0 0.0
  %2869 = vmatprep.subr.mxu0 0.0
  %2870 = vmatpush1.msra.mxu0 0.0
  %2871 = vmatprep.subr.mxu0 0.0
  %2872 = vmatpush1.msra.mxu0 0.0
  %2873 = vmatprep.subr.mxu0 0.0
  %2874 = vmatpush1.msra.mxu0 0.0
  %2875 = vmatprep.subr.mxu0 0.0
  %2876 = vmatpush1.msra.mxu0 0.0
  %2877 = vmatprep.subr.mxu0 0.0
  %2878 = vmatpush1.msra.mxu0 0.0
  %2879 = vmatprep.subr.mxu0 0.0
  %2880 = vmatpush1.msra.mxu0 0.0
  %2881 = vmatprep.subr.mxu0 0.0
  %2882 = vmatpush1.msra.mxu0 0.0
  %2883 = vmatprep.subr.mxu0 0.0
  %2884 = vmatpush1.msra.mxu0 0.0
  %2885 = vmatprep.subr.mxu0 0.0
  %2886 = vmatpush1.msra.mxu0 0.0
  %2887 = vmatprep.subr.mxu0 0.0
  %2888 = vmatpush1.msra.mxu0 0.0
  %2889 = vmatprep.subr.mxu0 0.0
  %2890 = vmatpush1.msra.mxu0 0.0
  %2891 = vmatprep.subr.mxu0 0.0
  %2892 = vmatpush1.msra.mxu0 0.0
  %2893 = vmatprep.subr.mxu0 0.0
  %2894 = vmatpush1.msra.mxu0 0.0
  %2895 = vmatprep.subr.mxu0 0.0
  %2896 = vmatpush1.msra.mxu0 0.0
  %2897 = vmatprep.subr.mxu0 0.0
  %2898 = vmatpush1.msra.mxu0 0.0
  %2899 = vmatprep.mubr.f32.mxu0 0.0
  %2900 = vmatmul.mubr.f32.gmra.mrb[0].mxu0 %v2833
  %v2901 = vpop.f32.mrb[0].mxu0
  %v2902 = vadd.f32 0.0, %v2901
  %v2903 = vpop.f32.mrb[0].mxu0
  %2904 = vdwg.mxu0
  %2905 = vrot.lane.b32.xlu0 %v1978, 48
  %v2906 = vpop.permute.xlu0 %2905
  %v2909 = vsel %vm158, %v2828, 0
  %2911 = vmatprep.subr.mxu0 0.0
  %2912 = vmatpush1.msra.mxu0 %v2906
  %2913 = vmatprep.subr.mxu0 0.0
  %2914 = vmatpush1.msra.mxu0 0.0
  %2915 = vmatprep.subr.mxu0 0.0
  %2916 = vmatpush1.msra.mxu0 0.0
  %2917 = vmatprep.subr.mxu0 0.0
  %2918 = vmatpush1.msra.mxu0 0.0
  %2919 = vmatprep.subr.mxu0 0.0
  %2920 = vmatpush1.msra.mxu0 0.0
  %2921 = vmatprep.subr.mxu0 0.0
  %2922 = vmatpush1.msra.mxu0 0.0
  %2923 = vmatprep.subr.mxu0 0.0
  %2924 = vmatpush1.msra.mxu0 0.0
  %2925 = vmatprep.subr.mxu0 0.0
  %2926 = vmatpush1.msra.mxu0 0.0
  %2927 = vmatprep.subr.mxu0 0.0
  %2928 = vmatpush1.msra.mxu0 0.0
  %2929 = vmatprep.subr.mxu0 0.0
  %2930 = vmatpush1.msra.mxu0 0.0
  %2931 = vmatprep.subr.mxu0 0.0
  %2932 = vmatpush1.msra.mxu0 0.0
  %2933 = vmatprep.subr.mxu0 0.0
  %2934 = vmatpush1.msra.mxu0 0.0
  %2935 = vmatprep.subr.mxu0 0.0
  %2936 = vmatpush1.msra.mxu0 0.0
  %2937 = vmatprep.subr.mxu0 0.0
  %2938 = vmatpush1.msra.mxu0 0.0
  %2939 = vmatprep.subr.mxu0 0.0
  %2940 = vmatpush1.msra.mxu0 0.0
  %2941 = vmatprep.subr.mxu0 0.0
  %2942 = vmatpush1.msra.mxu0 0.0
  %2943 = vmatprep.subr.mxu0 0.0
  %2944 = vmatpush1.msra.mxu0 0.0
  %2945 = vmatprep.subr.mxu0 0.0
  %2946 = vmatpush1.msra.mxu0 0.0
  %2947 = vmatprep.subr.mxu0 0.0
  %2948 = vmatpush1.msra.mxu0 0.0
  %2949 = vmatprep.subr.mxu0 0.0
  %2950 = vmatpush1.msra.mxu0 0.0
  %2951 = vmatprep.subr.mxu0 0.0
  %2952 = vmatpush1.msra.mxu0 0.0
  %2953 = vmatprep.subr.mxu0 0.0
  %2954 = vmatpush1.msra.mxu0 0.0
  %2955 = vmatprep.subr.mxu0 0.0
  %2956 = vmatpush1.msra.mxu0 0.0
  %2957 = vmatprep.subr.mxu0 0.0
  %2958 = vmatpush1.msra.mxu0 0.0
  %2959 = vmatprep.subr.mxu0 0.0
  %2960 = vmatpush1.msra.mxu0 0.0
  %2961 = vmatprep.subr.mxu0 0.0
  %2962 = vmatpush1.msra.mxu0 0.0
  %2963 = vmatprep.subr.mxu0 0.0
  %2964 = vmatpush1.msra.mxu0 0.0
  %2965 = vmatprep.subr.mxu0 0.0
  %2966 = vmatpush1.msra.mxu0 0.0
  %2967 = vmatprep.subr.mxu0 0.0
  %2968 = vmatpush1.msra.mxu0 0.0
  %2969 = vmatprep.subr.mxu0 0.0
  %2970 = vmatpush1.msra.mxu0 0.0
  %2971 = vmatprep.subr.mxu0 0.0
  %2972 = vmatpush1.msra.mxu0 0.0
  %2973 = vmatprep.subr.mxu0 0.0
  %2974 = vmatpush1.msra.mxu0 0.0
  %2975 = vmatprep.mubr.f32.mxu0 0.0
  %2976 = vmatmul.mubr.f32.gmra.mrb[0].mxu0 %v2909
  %v2977 = vpop.f32.mrb[0].mxu0
  %v2978 = vadd.f32 0.0, %v2977
  %v2979 = vpop.f32.mrb[0].mxu0
  %2980 = vdwg.mxu0
  %2981 = vrot.lane.b32.xlu0 %v1973, 104
  %v2982 = vpop.permute.xlu0 %2981
  %2983 = vrot.lane.b32.xlu0 %v1973, 72
  %v2984 = vpop.permute.xlu0 %2983
  %v2985 = vsel %vm158, %v2982, 0
  %v2987 = vsel %vm158, %v2984, 0
  %2989 = vmatprep.subr.mxu0 0.0
  %2990 = vmatpush1.xpose.msra.mxu0 %v2987
  %2991 = vmatprep.subr.mxu0 0.0
  %2992 = vmatpush1.xpose.msra.mxu0 0.0
  %2993 = vmatprep.subr.mxu0 0.0
  %2994 = vmatpush1.xpose.msra.mxu0 0.0
  %2995 = vmatprep.subr.mxu0 0.0
  %2996 = vmatpush1.xpose.msra.mxu0 0.0
  %2997 = vmatprep.subr.mxu0 0.0
  %2998 = vmatpush1.xpose.msra.mxu0 0.0
  %2999 = vmatprep.subr.mxu0 0.0
  %3000 = vmatpush1.xpose.msra.mxu0 0.0
  %3001 = vmatprep.subr.mxu0 0.0
  %3002 = vmatpush1.xpose.msra.mxu0 0.0
  %3003 = vmatprep.subr.mxu0 0.0
  %3004 = vmatpush1.xpose.msra.mxu0 0.0
  %3005 = vmatprep.subr.mxu0 0.0
  %3006 = vmatpush1.xpose.msra.mxu0 0.0
  %3007 = vmatprep.subr.mxu0 0.0
  %3008 = vmatpush1.xpose.msra.mxu0 0.0
  %3009 = vmatprep.subr.mxu0 0.0
  %3010 = vmatpush1.xpose.msra.mxu0 0.0
  %3011 = vmatprep.subr.mxu0 0.0
  %3012 = vmatpush1.xpose.msra.mxu0 0.0
  %3013 = vmatprep.subr.mxu0 0.0
  %3014 = vmatpush1.xpose.msra.mxu0 0.0
  %3015 = vmatprep.subr.mxu0 0.0
  %3016 = vmatpush1.xpose.msra.mxu0 0.0
  %3017 = vmatprep.subr.mxu0 0.0
  %3018 = vmatpush1.xpose.msra.mxu0 0.0
  %3019 = vmatprep.subr.mxu0 0.0
  %3020 = vmatpush1.xpose.msra.mxu0 0.0
  %3021 = vmatprep.subr.mxu0 0.0
  %3022 = vmatpush1.xpose.msra.mxu0 0.0
  %3023 = vmatprep.subr.mxu0 0.0
  %3024 = vmatpush1.xpose.msra.mxu0 0.0
  %3025 = vmatprep.subr.mxu0 0.0
  %3026 = vmatpush1.xpose.msra.mxu0 0.0
  %3027 = vmatprep.subr.mxu0 0.0
  %3028 = vmatpush1.xpose.msra.mxu0 0.0
  %3029 = vmatprep.subr.mxu0 0.0
  %3030 = vmatpush1.xpose.msra.mxu0 0.0
  %3031 = vmatprep.subr.mxu0 0.0
  %3032 = vmatpush1.xpose.msra.mxu0 0.0
  %3033 = vmatprep.subr.mxu0 0.0
  %3034 = vmatpush1.xpose.msra.mxu0 0.0
  %3035 = vmatprep.subr.mxu0 0.0
  %3036 = vmatpush1.xpose.msra.mxu0 0.0
  %3037 = vmatprep.subr.mxu0 0.0
  %3038 = vmatpush1.xpose.msra.mxu0 0.0
  %3039 = vmatprep.subr.mxu0 0.0
  %3040 = vmatpush1.xpose.msra.mxu0 0.0
  %3041 = vmatprep.subr.mxu0 0.0
  %3042 = vmatpush1.xpose.msra.mxu0 0.0
  %3043 = vmatprep.subr.mxu0 0.0
  %3044 = vmatpush1.xpose.msra.mxu0 0.0
  %3045 = vmatprep.subr.mxu0 0.0
  %3046 = vmatpush1.xpose.msra.mxu0 0.0
  %3047 = vmatprep.subr.mxu0 0.0
  %3048 = vmatpush1.xpose.msra.mxu0 0.0
  %3049 = vmatprep.subr.mxu0 0.0
  %3050 = vmatpush1.xpose.msra.mxu0 0.0
  %3051 = vmatprep.subr.mxu0 0.0
  %3052 = vmatpush1.xpose.msra.mxu0 0.0
  %3053 = vmatprep.mubr.f32.mxu0 0.0
  %3054 = vmatmul.mubr.f32.gmra.mrb[0].mxu0 %v2985
  %v3055 = vpop.f32.mrb[0].mxu0
  %v3056 = vadd.f32 0.0, %v3055
  %v3057 = vpop.f32.mrb[0].mxu0
  %3058 = vdwg.mxu0
  %3059 = vrot.lane.b32.xlu0 %v1978, 104
  %v3060 = vpop.permute.xlu0 %3059
  %3061 = vrot.lane.b32.xlu0 %v1978, 72
  %v3062 = vpop.permute.xlu0 %3061
  %v3063 = vsel %vm158, %v3060, 0
  %v3065 = vsel %vm158, %v3062, 0
  %3067 = vmatprep.subr.mxu0 0.0
  %3068 = vmatpush1.xpose.msra.mxu0 %v3065
  %3069 = vmatprep.subr.mxu0 0.0
  %3070 = vmatpush1.xpose.msra.mxu0 0.0
  %3071 = vmatprep.subr.mxu0 0.0
  %3072 = vmatpush1.xpose.msra.mxu0 0.0
  %3073 = vmatprep.subr.mxu0 0.0
  %3074 = vmatpush1.xpose.msra.mxu0 0.0
  %3075 = vmatprep.subr.mxu0 0.0
  %3076 = vmatpush1.xpose.msra.mxu0 0.0
  %3077 = vmatprep.subr.mxu0 0.0
  %3078 = vmatpush1.xpose.msra.mxu0 0.0
  %3079 = vmatprep.subr.mxu0 0.0
  %3080 = vmatpush1.xpose.msra.mxu0 0.0
  %3081 = vmatprep.subr.mxu0 0.0
  %3082 = vmatpush1.xpose.msra.mxu0 0.0
  %3083 = vmatprep.subr.mxu0 0.0
  %3084 = vmatpush1.xpose.msra.mxu0 0.0
  %3085 = vmatprep.subr.mxu0 0.0
  %3086 = vmatpush1.xpose.msra.mxu0 0.0
  %3087 = vmatprep.subr.mxu0 0.0
  %3088 = vmatpush1.xpose.msra.mxu0 0.0
  %3089 = vmatprep.subr.mxu0 0.0
  %3090 = vmatpush1.xpose.msra.mxu0 0.0
  %3091 = vmatprep.subr.mxu0 0.0
  %3092 = vmatpush1.xpose.msra.mxu0 0.0
  %3093 = vmatprep.subr.mxu0 0.0
  %3094 = vmatpush1.xpose.msra.mxu0 0.0
  %3095 = vmatprep.subr.mxu0 0.0
  %3096 = vmatpush1.xpose.msra.mxu0 0.0
  %3097 = vmatprep.subr.mxu0 0.0
  %3098 = vmatpush1.xpose.msra.mxu0 0.0
  %3099 = vmatprep.subr.mxu0 0.0
  %3100 = vmatpush1.xpose.msra.mxu0 0.0
  %3101 = vmatprep.subr.mxu0 0.0
  %3102 = vmatpush1.xpose.msra.mxu0 0.0
  %3103 = vmatprep.subr.mxu0 0.0
  %3104 = vmatpush1.xpose.msra.mxu0 0.0
  %3105 = vmatprep.subr.mxu0 0.0
  %3106 = vmatpush1.xpose.msra.mxu0 0.0
  %3107 = vmatprep.subr.mxu0 0.0
  %3108 = vmatpush1.xpose.msra.mxu0 0.0
  %3109 = vmatprep.subr.mxu0 0.0
  %3110 = vmatpush1.xpose.msra.mxu0 0.0
  %3111 = vmatprep.subr.mxu0 0.0
  %3112 = vmatpush1.xpose.msra.mxu0 0.0
  %3113 = vmatprep.subr.mxu0 0.0
  %3114 = vmatpush1.xpose.msra.mxu0 0.0
  %3115 = vmatprep.subr.mxu0 0.0
  %3116 = vmatpush1.xpose.msra.mxu0 0.0
  %3117 = vmatprep.subr.mxu0 0.0
  %3118 = vmatpush1.xpose.msra.mxu0 0.0
  %3119 = vmatprep.subr.mxu0 0.0
  %3120 = vmatpush1.xpose.msra.mxu0 0.0
  %3121 = vmatprep.subr.mxu0 0.0
  %3122 = vmatpush1.xpose.msra.mxu0 0.0
  %3123 = vmatprep.subr.mxu0 0.0
  %3124 = vmatpush1.xpose.msra.mxu0 0.0
  %3125 = vmatprep.subr.mxu0 0.0
  %3126 = vmatpush1.xpose.msra.mxu0 0.0
  %3127 = vmatprep.subr.mxu0 0.0
  %3128 = vmatpush1.xpose.msra.mxu0 0.0
  %3129 = vmatprep.subr.mxu0 0.0
  %3130 = vmatpush1.xpose.msra.mxu0 0.0
  %3131 = vmatprep.mubr.f32.mxu0 0.0
  %3132 = vmatmul.mubr.f32.gmra.mrb[0].mxu0 %v3063
  %v3133 = vpop.f32.mrb[0].mxu0
  %v3134 = vadd.f32 0.0, %v3133
  %v3135 = vpop.f32.mrb[0].mxu0
  %3136 = vdwg.mxu0
  %v3137 = vmul.f32 %v3056, 0.35355338
  %v3138 = vmul.f32 %v3134, 0.35355338
  %v3139 = vadd.f32 %v3137, %v60
  %v3140 = vadd.f32 %v3138, %v61
  %v3141 = vsel %vm158, %v3139, -inf
  %3142 = vmax.xlane.f32.xlu0 %v3141
  %v3143 = vpop.xlane.xlu0 %3142
  %v3144 = vsel %vm158, %v3140, -inf
  %3145 = vmax.xlane.f32.xlu0 %v3144
  %v3146 = vpop.xlane.xlu0 %3145
  %v3147 = vsub.f32 %v3139, %v3143
  %v3148 = vsub.f32 %v3140, %v3146
  %v3149 = vmul.f32 %v3147, 1.442695
  %v3150 = vpow.pop %v3149
  %v3151 = vmul.f32 %v3148, 1.442695
  %v3152 = vpow.pop %v3151
  %v3153 = vsel %vm158, %v3150, 0.0
  %3154 = vadd.xlane.f32.xlu0 %v3153
  %v3155 = vpop.xlane.xlu0 %3154
  %v3156 = vsel %vm158, %v3152, 0.0
  %3157 = vadd.xlane.f32.xlu0 %v3156
  %v3158 = vpop.xlane.xlu0 %3157
  %v3159 = vrcp.pop %v3155
  %v3160 = vrcp.pop %v3158
  %v3161 = vmul.f32 %v3150, %v3159
  %v3162 = vmul.f32 %v3152, %v3160
  %3163 = vrot.lane.b32.xlu0 %v1973, 40
  %v3164 = vpop.permute.xlu0 %3163
  %v3167 = vsel %vm158, %v3161, 0
  %3169 = vmatprep.subr.mxu0 0.0
  %3170 = vmatpush1.msra.mxu0 %v3164
  %3171 = vmatprep.subr.mxu0 0.0
  %3172 = vmatpush1.msra.mxu0 0.0
  %3173 = vmatprep.subr.mxu0 0.0
  %3174 = vmatpush1.msra.mxu0 0.0
  %3175 = vmatprep.subr.mxu0 0.0
  %3176 = vmatpush1.msra.mxu0 0.0
  %3177 = vmatprep.subr.mxu0 0.0
  %3178 = vmatpush1.msra.mxu0 0.0
  %3179 = vmatprep.subr.mxu0 0.0
  %3180 = vmatpush1.msra.mxu0 0.0
  %3181 = vmatprep.subr.mxu0 0.0
  %3182 = vmatpush1.msra.mxu0 0.0
  %3183 = vmatprep.subr.mxu0 0.0
  %3184 = vmatpush1.msra.mxu0 0.0
  %3185 = vmatprep.subr.mxu0 0.0
  %3186 = vmatpush1.msra.mxu0 0.0
  %3187 = vmatprep.subr.mxu0 0.0
  %3188 = vmatpush1.msra.mxu0 0.0
  %3189 = vmatprep.subr.mxu0 0.0
  %3190 = vmatpush1.msra.mxu0 0.0
  %3191 = vmatprep.subr.mxu0 0.0
  %3192 = vmatpush1.msra.mxu0 0.0
  %3193 = vmatprep.subr.mxu0 0.0
  %3194 = vmatpush1.msra.mxu0 0.0
  %3195 = vmatprep.subr.mxu0 0.0
  %3196 = vmatpush1.msra.mxu0 0.0
  %3197 = vmatprep.subr.mxu0 0.0
  %3198 = vmatpush1.msra.mxu0 0.0
  %3199 = vmatprep.subr.mxu0 0.0
  %3200 = vmatpush1.msra.mxu0 0.0
  %3201 = vmatprep.subr.mxu0 0.0
  %3202 = vmatpush1.msra.mxu0 0.0
  %3203 = vmatprep.subr.mxu0 0.0
  %3204 = vmatpush1.msra.mxu0 0.0
  %3205 = vmatprep.subr.mxu0 0.0
  %3206 = vmatpush1.msra.mxu0 0.0
  %3207 = vmatprep.subr.mxu0 0.0
  %3208 = vmatpush1.msra.mxu0 0.0
  %3209 = vmatprep.subr.mxu0 0.0
  %3210 = vmatpush1.msra.mxu0 0.0
  %3211 = vmatprep.subr.mxu0 0.0
  %3212 = vmatpush1.msra.mxu0 0.0
  %3213 = vmatprep.subr.mxu0 0.0
  %3214 = vmatpush1.msra.mxu0 0.0
  %3215 = vmatprep.subr.mxu0 0.0
  %3216 = vmatpush1.msra.mxu0 0.0
  %3217 = vmatprep.subr.mxu0 0.0
  %3218 = vmatpush1.msra.mxu0 0.0
  %3219 = vmatprep.subr.mxu0 0.0
  %3220 = vmatpush1.msra.mxu0 0.0
  %3221 = vmatprep.subr.mxu0 0.0
  %3222 = vmatpush1.msra.mxu0 0.0
  %3223 = vmatprep.subr.mxu0 0.0
  %3224 = vmatpush1.msra.mxu0 0.0
  %3225 = vmatprep.subr.mxu0 0.0
  %3226 = vmatpush1.msra.mxu0 0.0
  %3227 = vmatprep.subr.mxu0 0.0
  %3228 = vmatpush1.msra.mxu0 0.0
  %3229 = vmatprep.subr.mxu0 0.0
  %3230 = vmatpush1.msra.mxu0 0.0
  %3231 = vmatprep.subr.mxu0 0.0
  %3232 = vmatpush1.msra.mxu0 0.0
  %3233 = vmatprep.mubr.f32.mxu0 0.0
  %3234 = vmatmul.mubr.f32.gmra.mrb[0].mxu0 %v3167
  %v3235 = vpop.f32.mrb[0].mxu0
  %v3236 = vadd.f32 0.0, %v3235
  %v3237 = vpop.f32.mrb[0].mxu0
  %3238 = vdwg.mxu0
  %3239 = vrot.lane.b32.xlu0 %v1978, 40
  %v3240 = vpop.permute.xlu0 %3239
  %v3243 = vsel %vm158, %v3162, 0
  %3245 = vmatprep.subr.mxu0 0.0
  %3246 = vmatpush1.msra.mxu0 %v3240
  %3247 = vmatprep.subr.mxu0 0.0
  %3248 = vmatpush1.msra.mxu0 0.0
  %3249 = vmatprep.subr.mxu0 0.0
  %3250 = vmatpush1.msra.mxu0 0.0
  %3251 = vmatprep.subr.mxu0 0.0
  %3252 = vmatpush1.msra.mxu0 0.0
  %3253 = vmatprep.subr.mxu0 0.0
  %3254 = vmatpush1.msra.mxu0 0.0
  %3255 = vmatprep.subr.mxu0 0.0
  %3256 = vmatpush1.msra.mxu0 0.0
  %3257 = vmatprep.subr.mxu0 0.0
  %3258 = vmatpush1.msra.mxu0 0.0
  %3259 = vmatprep.subr.mxu0 0.0
  %3260 = vmatpush1.msra.mxu0 0.0
  %3261 = vmatprep.subr.mxu0 0.0
  %3262 = vmatpush1.msra.mxu0 0.0
  %3263 = vmatprep.subr.mxu0 0.0
  %3264 = vmatpush1.msra.mxu0 0.0
  %3265 = vmatprep.subr.mxu0 0.0
  %3266 = vmatpush1.msra.mxu0 0.0
  %3267 = vmatprep.subr.mxu0 0.0
  %3268 = vmatpush1.msra.mxu0 0.0
  %3269 = vmatprep.subr.mxu0 0.0
  %3270 = vmatpush1.msra.mxu0 0.0
  %3271 = vmatprep.subr.mxu0 0.0
  %3272 = vmatpush1.msra.mxu0 0.0
  %3273 = vmatprep.subr.mxu0 0.0
  %3274 = vmatpush1.msra.mxu0 0.0
  %3275 = vmatprep.subr.mxu0 0.0
  %3276 = vmatpush1.msra.mxu0 0.0
  %3277 = vmatprep.subr.mxu0 0.0
  %3278 = vmatpush1.msra.mxu0 0.0
  %3279 = vmatprep.subr.mxu0 0.0
  %3280 = vmatpush1.msra.mxu0 0.0
  %3281 = vmatprep.subr.mxu0 0.0
  %3282 = vmatpush1.msra.mxu0 0.0
  %3283 = vmatprep.subr.mxu0 0.0
  %3284 = vmatpush1.msra.mxu0 0.0
  %3285 = vmatprep.subr.mxu0 0.0
  %3286 = vmatpush1.msra.mxu0 0.0
  %3287 = vmatprep.subr.mxu0 0.0
  %3288 = vmatpush1.msra.mxu0 0.0
  %3289 = vmatprep.subr.mxu0 0.0
  %3290 = vmatpush1.msra.mxu0 0.0
  %3291 = vmatprep.subr.mxu0 0.0
  %3292 = vmatpush1.msra.mxu0 0.0
  %3293 = vmatprep.subr.mxu0 0.0
  %3294 = vmatpush1.msra.mxu0 0.0
  %3295 = vmatprep.subr.mxu0 0.0
  %3296 = vmatpush1.msra.mxu0 0.0
  %3297 = vmatprep.subr.mxu0 0.0
  %3298 = vmatpush1.msra.mxu0 0.0
  %3299 = vmatprep.subr.mxu0 0.0
  %3300 = vmatpush1.msra.mxu0 0.0
  %3301 = vmatprep.subr.mxu0 0.0
  %3302 = vmatpush1.msra.mxu0 0.0
  %3303 = vmatprep.subr.mxu0 0.0
  %3304 = vmatpush1.msra.mxu0 0.0
  %3305 = vmatprep.subr.mxu0 0.0
  %3306 = vmatpush1.msra.mxu0 0.0
  %3307 = vmatprep.subr.mxu0 0.0
  %3308 = vmatpush1.msra.mxu0 0.0
  %3309 = vmatprep.mubr.f32.mxu0 0.0
  %3310 = vmatmul.mubr.f32.gmra.mrb[0].mxu0 %v3243
  %v3311 = vpop.f32.mrb[0].mxu0
  %v3312 = vadd.f32 0.0, %v3311
  %v3313 = vpop.f32.mrb[0].mxu0
  %3314 = vdwg.mxu0
  %3317 = vrot.lane.b32.xlu0 %v2568, 8
  %v3318 = vpop.permute.xlu0 %3317
  %3319 = vrot.lane.b32.xlu0 %v2644, 8
  %v3320 = vpop.permute.xlu0 %3319
  %3325 = vrot.lane.b32.xlu0 %v2902, 16
  %v3326 = vpop.permute.xlu0 %3325
  %3327 = vrot.lane.b32.xlu0 %v2978, 16
  %v3328 = vpop.permute.xlu0 %3327
  %3333 = vrot.lane.b32.xlu0 %v3236, 24
  %v3334 = vpop.permute.xlu0 %3333
  %3335 = vrot.lane.b32.xlu0 %v3312, 24
  %v3336 = vpop.permute.xlu0 %3335
  %v3339 = vsel %vm158, %v2234, %v3318
  %v3340 = vsel %vm158, %v2310, %v3320
  %v3341 = vsel %vm1516, %v3339, %v3326
  %v3342 = vsel %vm1516, %v3340, %v3328
  %v3343 = vsel %vm1519, %v3341, %v3334
  %v3344 = vsel %vm1519, %v3342, %v3336
  %s3345 = scalar_lea.vmem %s5, 32
  %v3346 = vld [vmem:[%s3345] sm:$0xff]
  %v3347 = vld [vmem:[%s3345 + $0x8] sm:$0xff]
  %v3348 = vld [vmem:[%s3345 + $0x10] sm:$0xff]
  %v3349 = vld [vmem:[%s3345 + $0x18] sm:$0xff]
  %s3350 = scalar_lea.vmem %s6, 1
  %v3351 = vld [vmem:[%s3350] sm:$0x1]
  %v3353 = vlaneseq
  %v3354 = vshrl.u32 %v3353, 7
  %v3355 = vsub.s32 0, %v3354
  %v3356 = vrot.slane %v3351, %v3355
  %v3359 = vsel %vm73, %v3343, 0
  %v3362 = vsel %vm73, %v3344, 0
  %3364 = vmatprep.subr.mxu0 0.0
  %3365 = vmatpush1.msra.mxu0 %v3346
  %3366 = vmatprep.subr.mxu0 0.0
  %3367 = vmatpush1.msra.mxu0 %v3347
  %3368 = vmatprep.subr.mxu0 0.0
  %3369 = vmatpush1.msra.mxu0 %v3348
  %3370 = vmatprep.subr.mxu0 0.0
  %3371 = vmatpush1.msra.mxu0 %v3349
  %3372 = vmatprep.subr.mxu0 0.0
  %3373 = vmatpush1.msra.mxu0 0.0
  %3374 = vmatprep.subr.mxu0 0.0
  %3375 = vmatpush1.msra.mxu0 0.0
  %3376 = vmatprep.subr.mxu0 0.0
  %3377 = vmatpush1.msra.mxu0 0.0
  %3378 = vmatprep.subr.mxu0 0.0
  %3379 = vmatpush1.msra.mxu0 0.0
  %3380 = vmatprep.subr.mxu0 0.0
  %3381 = vmatpush1.msra.mxu0 0.0
  %3382 = vmatprep.subr.mxu0 0.0
  %3383 = vmatpush1.msra.mxu0 0.0
  %3384 = vmatprep.subr.mxu0 0.0
  %3385 = vmatpush1.msra.mxu0 0.0
  %3386 = vmatprep.subr.mxu0 0.0
  %3387 = vmatpush1.msra.mxu0 0.0
  %3388 = vmatprep.subr.mxu0 0.0
  %3389 = vmatpush1.msra.mxu0 0.0
  %3390 = vmatprep.subr.mxu0 0.0
  %3391 = vmatpush1.msra.mxu0 0.0
  %3392 = vmatprep.subr.mxu0 0.0
  %3393 = vmatpush1.msra.mxu0 0.0
  %3394 = vmatprep.subr.mxu0 0.0
  %3395 = vmatpush1.msra.mxu0 0.0
  %3396 = vmatprep.subr.mxu0 0.0
  %3397 = vmatpush1.msra.mxu0 0.0
  %3398 = vmatprep.subr.mxu0 0.0
  %3399 = vmatpush1.msra.mxu0 0.0
  %3400 = vmatprep.subr.mxu0 0.0
  %3401 = vmatpush1.msra.mxu0 0.0
  %3402 = vmatprep.subr.mxu0 0.0
  %3403 = vmatpush1.msra.mxu0 0.0
  %3404 = vmatprep.subr.mxu0 0.0
  %3405 = vmatpush1.msra.mxu0 0.0
  %3406 = vmatprep.subr.mxu0 0.0
  %3407 = vmatpush1.msra.mxu0 0.0
  %3408 = vmatprep.subr.mxu0 0.0
  %3409 = vmatpush1.msra.mxu0 0.0
  %3410 = vmatprep.subr.mxu0 0.0
  %3411 = vmatpush1.msra.mxu0 0.0
  %3412 = vmatprep.subr.mxu0 0.0
  %3413 = vmatpush1.msra.mxu0 0.0
  %3414 = vmatprep.subr.mxu0 0.0
  %3415 = vmatpush1.msra.mxu0 0.0
  %3416 = vmatprep.subr.mxu0 0.0
  %3417 = vmatpush1.msra.mxu0 0.0
  %3418 = vmatprep.subr.mxu0 0.0
  %3419 = vmatpush1.msra.mxu0 0.0
  %3420 = vmatprep.subr.mxu0 0.0
  %3421 = vmatpush1.msra.mxu0 0.0
  %3422 = vmatprep.subr.mxu0 0.0
  %3423 = vmatpush1.msra.mxu0 0.0
  %3424 = vmatprep.subr.mxu0 0.0
  %3425 = vmatpush1.msra.mxu0 0.0
  %3426 = vmatprep.subr.mxu0 0.0
  %3427 = vmatpush1.msra.mxu0 0.0
  %3428 = vmatprep.mubr.f32.mxu0 0.0
  %3429 = vmatmul.mubr.f32.gmra.mrb[0].mxu0 %v3359
  %v3430 = vpop.f32.mrb[0].mxu0
  %v3431 = vadd.f32 %v3356, %v3430
  %v3432 = vpop.f32.mrb[0].mxu0
  %3433 = vmatprep.mubr.f32.mxu0 0.0
  %3434 = vmatmul.mubr.f32.gmra.mrb[0].mxu0 %v3362
  %v3435 = vpop.f32.mrb[0].mxu0
  %v3436 = vadd.f32 %v3356, %v3435
  %v3437 = vpop.f32.mrb[0].mxu0
  %3438 = vdwg.mxu0
  %s3439 = scalar_lea.vmem %s7, 4
  %v3440 = vld [vmem:[%s3439] sm:$0xf]
  %v3441 = vadd.f32 %v1885, %v3431
  %v3442 = vadd.f32 %v1886, %v3436
  %v3443 = vsel %vm73, %v3441, 0.0
  %3444 = vadd.xlane.f32.xlu0 %v3443
  %v3445 = vpop.xlane.xlu0 %3444
  %v3446 = vsel %vm73, %v3442, 0.0
  %3447 = vadd.xlane.f32.xlu0 %v3446
  %v3448 = vpop.xlane.xlu0 %3447
  %v3449 = vmul.f32 %v3445, %v1623
  %v3450 = vmul.f32 %v3448, %v1623
  %v3451 = vsub.f32 %v3441, %v3449
  %v3452 = vsub.f32 %v3442, %v3450
  %v3453 = vmul.f32 %v3451, %v3451
  %v3454 = vmul.f32 %v3452, %v3452
  %v3455 = vsel %vm73, %v3453, 0.0
  %3456 = vadd.xlane.f32.xlu0 %v3455
  %v3457 = vpop.xlane.xlu0 %3456
  %v3458 = vsel %vm73, %v3454, 0.0
  %3459 = vadd.xlane.f32.xlu0 %v3458
  %v3460 = vpop.xlane.xlu0 %3459
  %v3461 = vmul.f32 %v3457, %v1623
  %v3462 = vmul.f32 %v3460, %v1623
  %v3463 = vadd.f32 %v3461, 1e-05
  %v3464 = vadd.f32 %v3462, 1e-05
  %v3465 = vrsqrt.pop %v3463
  %v3466 = vrsqrt.pop %v3464
  %v3467 = vmul.f32 %v3451, %v3465
  %v3468 = vmul.f32 %v3452, %v3466
  %v3469 = vlaneseq
  %v3470 = vshrl.u32 %v3469, 7
  %v3471 = vsub.s32 0, %v3470
  %v3472 = vrot.slane %v3440, %v3471
  %v3473 = vmul.f32 %v3467, %v3472
  %v3474 = vmul.f32 %v3468, %v3472
  %v3475 = vlaneseq
  %v3476 = vshrl.u32 %v3475, 7
  %v3477 = vsub.s32 1, %v3476
  %v3478 = vrot.slane %v3440, %v3477
  %v3479 = vadd.f32 %v3473, %v3478
  %v3480 = vadd.f32 %v3474, %v3478
  %s3481 = scalar_lea.vmem %s8, 32
  %v3482 = vld [vmem:[%s3481] sm:$0xff]
  %v3483 = vld [vmem:[%s3481 + $0x8] sm:$0xff]
  %v3484 = vld [vmem:[%s3481 + $0x10] sm:$0xff]
  %v3485 = vld [vmem:[%s3481 + $0x18] sm:$0xff]
  %s3486 = scalar_lea.vmem %s9, 1
  %v3487 = vld [vmem:[%s3486] sm:$0x1]
  %v3489 = vlaneseq
  %v3490 = vshrl.u32 %v3489, 7
  %v3491 = vsub.s32 0, %v3490
  %v3492 = vrot.slane %v3487, %v3491
  %v3495 = vsel %vm73, %v3479, 0
  %v3498 = vsel %vm73, %v3480, 0
  %3500 = vmatprep.subr.mxu0 0.0
  %3501 = vmatpush1.msra.mxu0 %v3482
  %3502 = vmatprep.subr.mxu0 0.0
  %3503 = vmatpush1.msra.mxu0 %v3483
  %3504 = vmatprep.subr.mxu0 0.0
  %3505 = vmatpush1.msra.mxu0 %v3484
  %3506 = vmatprep.subr.mxu0 0.0
  %3507 = vmatpush1.msra.mxu0 %v3485
  %3508 = vmatprep.subr.mxu0 0.0
  %3509 = vmatpush1.msra.mxu0 0.0
  %3510 = vmatprep.subr.mxu0 0.0
  %3511 = vmatpush1.msra.mxu0 0.0
  %3512 = vmatprep.subr.mxu0 0.0
  %3513 = vmatpush1.msra.mxu0 0.0
  %3514 = vmatprep.subr.mxu0 0.0
  %3515 = vmatpush1.msra.mxu0 0.0
  %3516 = vmatprep.subr.mxu0 0.0
  %3517 = vmatpush1.msra.mxu0 0.0
  %3518 = vmatprep.subr.mxu0 0.0
  %3519 = vmatpush1.msra.mxu0 0.0
  %3520 = vmatprep.subr.mxu0 0.0
  %3521 = vmatpush1.msra.mxu0 0.0
  %3522 = vmatprep.subr.mxu0 0.0
  %3523 = vmatpush1.msra.mxu0 0.0
  %3524 = vmatprep.subr.mxu0 0.0
  %3525 = vmatpush1.msra.mxu0 0.0
  %3526 = vmatprep.subr.mxu0 0.0
  %3527 = vmatpush1.msra.mxu0 0.0
  %3528 = vmatprep.subr.mxu0 0.0
  %3529 = vmatpush1.msra.mxu0 0.0
  %3530 = vmatprep.subr.mxu0 0.0
  %3531 = vmatpush1.msra.mxu0 0.0
  %3532 = vmatprep.subr.mxu0 0.0
  %3533 = vmatpush1.msra.mxu0 0.0
  %3534 = vmatprep.subr.mxu0 0.0
  %3535 = vmatpush1.msra.mxu0 0.0
  %3536 = vmatprep.subr.mxu0 0.0
  %3537 = vmatpush1.msra.mxu0 0.0
  %3538 = vmatprep.subr.mxu0 0.0
  %3539 = vmatpush1.msra.mxu0 0.0
  %3540 = vmatprep.subr.mxu0 0.0
  %3541 = vmatpush1.msra.mxu0 0.0
  %3542 = vmatprep.subr.mxu0 0.0
  %3543 = vmatpush1.msra.mxu0 0.0
  %3544 = vmatprep.subr.mxu0 0.0
  %3545 = vmatpush1.msra.mxu0 0.0
  %3546 = vmatprep.subr.mxu0 0.0
  %3547 = vmatpush1.msra.mxu0 0.0
  %3548 = vmatprep.subr.mxu0 0.0
  %3549 = vmatpush1.msra.mxu0 0.0
  %3550 = vmatprep.subr.mxu0 0.0
  %3551 = vmatpush1.msra.mxu0 0.0
  %3552 = vmatprep.subr.mxu0 0.0
  %3553 = vmatpush1.msra.mxu0 0.0
  %3554 = vmatprep.subr.mxu0 0.0
  %3555 = vmatpush1.msra.mxu0 0.0
  %3556 = vmatprep.subr.mxu0 0.0
  %3557 = vmatpush1.msra.mxu0 0.0
  %3558 = vmatprep.subr.mxu0 0.0
  %3559 = vmatpush1.msra.mxu0 0.0
  %3560 = vmatprep.subr.mxu0 0.0
  %3561 = vmatpush1.msra.mxu0 0.0
  %3562 = vmatprep.subr.mxu0 0.0
  %3563 = vmatpush1.msra.mxu0 0.0
  %3564 = vmatprep.mubr.f32.mxu0 0.0
  %3565 = vmatmul.mubr.f32.gmra.mrb[0].mxu0 %v3495
  %v3566 = vpop.f32.mrb[0].mxu0
  %v3567 = vadd.f32 %v3492, %v3566
  %v3568 = vpop.f32.mrb[0].mxu0
  %3569 = vmatprep.mubr.f32.mxu0 0.0
  %3570 = vmatmul.mubr.f32.gmra.mrb[0].mxu0 %v3498
  %v3571 = vpop.f32.mrb[0].mxu0
  %v3572 = vadd.f32 %v3492, %v3571
  %v3573 = vpop.f32.mrb[0].mxu0
  %3574 = vdwg.mxu0
  %v3575 = vmax.f32 %v3567, 0.0
  %v3576 = vmax.f32 %v3572, 0.0
  %s3577 = scalar_lea.vmem %s10, 64
  %v3578 = vld [vmem:[%s3577] sm:$0xff]
  %v3579 = vld [vmem:[%s3577 + $0x8] sm:$0xff]
  %v3580 = vld [vmem:[%s3577 + $0x10] sm:$0xff]
  %v3581 = vld [vmem:[%s3577 + $0x18] sm:$0xff]
  %v3582 = vld [vmem:[%s3577 + $0x20] sm:$0xff]
  %v3583 = vld [vmem:[%s3577 + $0x28] sm:$0xff]
  %v3584 = vld [vmem:[%s3577 + $0x30] sm:$0xff]
  %v3585 = vld [vmem:[%s3577 + $0x38] sm:$0xff]
  %s3586 = scalar_lea.vmem %s11, 1
  %v3587 = vld [vmem:[%s3586] sm:$0x1]
  %v3589 = vlaneseq
  %v3590 = vshrl.u32 %v3589, 7
  %v3591 = vsub.s32 0, %v3590
  %v3592 = vrot.slane %v3587, %v3591
  %v3595 = vsel %vm1765, %v3575, 0
  %v3598 = vsel %vm1765, %v3576, 0
  %3600 = vmatprep.subr.mxu0 0.0
  %3601 = vmatpush1.msra.mxu0 %v3578
  %3602 = vmatprep.subr.mxu0 0.0
  %3603 = vmatpush1.msra.mxu0 %v3579
  %3604 = vmatprep.subr.mxu0 0.0
  %3605 = vmatpush1.msra.mxu0 %v3580
  %3606 = vmatprep.subr.mxu0 0.0
  %3607 = vmatpush1.msra.mxu0 %v3581
  %3608 = vmatprep.subr.mxu0 0.0
  %3609 = vmatpush1.msra.mxu0 %v3582
  %3610 = vmatprep.subr.mxu0 0.0
  %3611 = vmatpush1.msra.mxu0 %v3583
  %3612 = vmatprep.subr.mxu0 0.0
  %3613 = vmatpush1.msra.mxu0 %v3584
  %3614 = vmatprep.subr.mxu0 0.0
  %3615 = vmatpush1.msra.mxu0 %v3585
  %3616 = vmatprep.subr.mxu0 0.0
  %3617 = vmatpush1.msra.mxu0 0.0
  %3618 = vmatprep.subr.mxu0 0.0
  %3619 = vmatpush1.msra.mxu0 0.0
  %3620 = vmatprep.subr.mxu0 0.0
  %3621 = vmatpush1.msra.mxu0 0.0
  %3622 = vmatprep.subr.mxu0 0.0
  %3623 = vmatpush1.msra.mxu0 0.0
  %3624 = vmatprep.subr.mxu0 0.0
  %3625 = vmatpush1.msra.mxu0 0.0
  %3626 = vmatprep.subr.mxu0 0.0
  %3627 = vmatpush1.msra.mxu0 0.0
  %3628 = vmatprep.subr.mxu0 0.0
  %3629 = vmatpush1.msra.mxu0 0.0
  %3630 = vmatprep.subr.mxu0 0.0
  %3631 = vmatpush1.msra.mxu0 0.0
  %3632 = vmatprep.subr.mxu0 0.0
  %3633 = vmatpush1.msra.mxu0 0.0
  %3634 = vmatprep.subr.mxu0 0.0
  %3635 = vmatpush1.msra.mxu0 0.0
  %3636 = vmatprep.subr.mxu0 0.0
  %3637 = vmatpush1.msra.mxu0 0.0
  %3638 = vmatprep.subr.mxu0 0.0
  %3639 = vmatpush1.msra.mxu0 0.0
  %3640 = vmatprep.subr.mxu0 0.0
  %3641 = vmatpush1.msra.mxu0 0.0
  %3642 = vmatprep.subr.mxu0 0.0
  %3643 = vmatpush1.msra.mxu0 0.0
  %3644 = vmatprep.subr.mxu0 0.0
  %3645 = vmatpush1.msra.mxu0 0.0
  %3646 = vmatprep.subr.mxu0 0.0
  %3647 = vmatpush1.msra.mxu0 0.0
  %3648 = vmatprep.subr.mxu0 0.0
  %3649 = vmatpush1.msra.mxu0 0.0
  %3650 = vmatprep.subr.mxu0 0.0
  %3651 = vmatpush1.msra.mxu0 0.0
  %3652 = vmatprep.subr.mxu0 0.0
  %3653 = vmatpush1.msra.mxu0 0.0
  %3654 = vmatprep.subr.mxu0 0.0
  %3655 = vmatpush1.msra.mxu0 0.0
  %3656 = vmatprep.subr.mxu0 0.0
  %3657 = vmatpush1.msra.mxu0 0.0
  %3658 = vmatprep.subr.mxu0 0.0
  %3659 = vmatpush1.msra.mxu0 0.0
  %3660 = vmatprep.subr.mxu0 0.0
  %3661 = vmatpush1.msra.mxu0 0.0
  %3662 = vmatprep.subr.mxu0 0.0
  %3663 = vmatpush1.msra.mxu0 0.0
  %3664 = vmatprep.mubr.f32.mxu0 0.0
  %3665 = vmatmul.mubr.f32.gmra.mrb[0].mxu0 %v3595
  %v3666 = vpop.f32.mrb[0].mxu0
  %v3667 = vadd.f32 %v3592, %v3666
  %v3668 = vpop.f32.mrb[0].mxu0
  %3669 = vmatprep.mubr.f32.mxu0 0.0
  %3670 = vmatmul.mubr.f32.gmra.mrb[0].mxu0 %v3598
  %v3671 = vpop.f32.mrb[0].mxu0
  %v3672 = vadd.f32 %v3592, %v3671
  %v3673 = vpop.f32.mrb[0].mxu0
  %3674 = vdwg.mxu0
  %v3675 = vadd.f32 %v3479, %v3667
  %v3676 = vadd.f32 %v3480, %v3672
  %v3677 = vsel %vm73, %v3675, 0.0
  %3678 = vadd.xlane.f32.xlu0 %v3677
  %v3679 = vpop.xlane.xlu0 %3678
  %v3680 = vsel %vm73, %v3676, 0.0
  %3681 = vadd.xlane.f32.xlu0 %v3680
  %v3682 = vpop.xlane.xlu0 %3681
  %v3683 = vmul.f32 %v3679, %v1623
  %v3684 = vmul.f32 %v3682, %v1623
  %v3685 = vsub.f32 %v3675, %v3683
  %v3686 = vsub.f32 %v3676, %v3684
  %v3687 = vmul.f32 %v3685, %v3685
  %v3688 = vmul.f32 %v3686, %v3686
  %v3689 = vsel %vm73, %v3687, 0.0
  %3690 = vadd.xlane.f32.xlu0 %v3689
  %v3691 = vpop.xlane.xlu0 %3690
  %v3692 = vsel %vm73, %v3688, 0.0
  %3693 = vadd.xlane.f32.xlu0 %v3692
  %v3694 = vpop.xlane.xlu0 %3693
  %v3695 = vmul.f32 %v3691, %v1623
  %v3696 = vmul.f32 %v3694, %v1623
  %v3697 = vadd.f32 %v3695, 1e-05
  %v3698 = vadd.f32 %v3696, 1e-05
  %v3699 = vrsqrt.pop %v3697
  %v3700 = vrsqrt.pop %v3698
  %v3701 = vmul.f32 %v3685, %v3699
  %v3702 = vmul.f32 %v3686, %v3700
  %v3703 = vlaneseq
  %v3704 = vshrl.u32 %v3703, 7
  %v3705 = vsub.s32 2, %v3704
  %v3706 = vrot.slane %v3440, %v3705
  %v3707 = vmul.f32 %v3701, %v3706
  %v3708 = vmul.f32 %v3702, %v3706
  %v3709 = vlaneseq
  %v3710 = vshrl.u32 %v3709, 7
  %v3711 = vsub.s32 3, %v3710
  %v3712 = vrot.slane %v3440, %v3711
  %v3713 = vadd.f32 %v3707, %v3712
  %v3714 = vadd.f32 %v3708, %v3712
  %v3715 = vld [vmem:[%s12] sm:$0xff]
  %v3716 = vld [vmem:[%s12 + $0x8] sm:$0xff]
  %v3717 = vld [vmem:[%s12 + $0x10] sm:$0xff]
  %v3718 = vld [vmem:[%s12 + $0x18] sm:$0xff]
  %v3719 = vld [vmem:[%s2] sm:$0xff]
  %v3720 = vld [vmem:[%s2 + $0x8] sm:$0xff]
  %v3721 = vld [vmem:[%s13] sm:$0x1f]
  %vm3722 = vcmask 39936
  %v3724 = vsel %vm3722, %v3719, 0
  %v3727 = vsel %vm3722, %v3720, 0
  %vm3729 = vcmask 1044480
  %v3731 = vsel %vm3729, %v3721, 0
  %3733 = vmatprep.subr.mxu0 0.0
  %3734 = vmatpush1.msra.mxu0 %v3731
  %3735 = vmatprep.subr.mxu0 0.0
  %3736 = vmatpush1.msra.mxu0 0.0
  %3737 = vmatprep.subr.mxu0 0.0
  %3738 = vmatpush1.msra.mxu0 0.0
  %3739 = vmatprep.subr.mxu0 0.0
  %3740 = vmatpush1.msra.mxu0 0.0
  %3741 = vmatprep.subr.mxu0 0.0
  %3742 = vmatpush1.msra.mxu0 0.0
  %3743 = vmatprep.subr.mxu0 0.0
  %3744 = vmatpush1.msra.mxu0 0.0
  %3745 = vmatprep.subr.mxu0 0.0
  %3746 = vmatpush1.msra.mxu0 0.0
  %3747 = vmatprep.subr.mxu0 0.0
  %3748 = vmatpush1.msra.mxu0 0.0
  %3749 = vmatprep.subr.mxu0 0.0
  %3750 = vmatpush1.msra.mxu0 0.0
  %3751 = vmatprep.subr.mxu0 0.0
  %3752 = vmatpush1.msra.mxu0 0.0
  %3753 = vmatprep.subr.mxu0 0.0
  %3754 = vmatpush1.msra.mxu0 0.0
  %3755 = vmatprep.subr.mxu0 0.0
  %3756 = vmatpush1.msra.mxu0 0.0
  %3757 = vmatprep.subr.mxu0 0.0
  %3758 = vmatpush1.msra.mxu0 0.0
  %3759 = vmatprep.subr.mxu0 0.0
  %3760 = vmatpush1.msra.mxu0 0.0
  %3761 = vmatprep.subr.mxu0 0.0
  %3762 = vmatpush1.msra.mxu0 0.0
  %3763 = vmatprep.subr.mxu0 0.0
  %3764 = vmatpush1.msra.mxu0 0.0
  %3765 = vmatprep.subr.mxu0 0.0
  %3766 = vmatpush1.msra.mxu0 0.0
  %3767 = vmatprep.subr.mxu0 0.0
  %3768 = vmatpush1.msra.mxu0 0.0
  %3769 = vmatprep.subr.mxu0 0.0
  %3770 = vmatpush1.msra.mxu0 0.0
  %3771 = vmatprep.subr.mxu0 0.0
  %3772 = vmatpush1.msra.mxu0 0.0
  %3773 = vmatprep.subr.mxu0 0.0
  %3774 = vmatpush1.msra.mxu0 0.0
  %3775 = vmatprep.subr.mxu0 0.0
  %3776 = vmatpush1.msra.mxu0 0.0
  %3777 = vmatprep.subr.mxu0 0.0
  %3778 = vmatpush1.msra.mxu0 0.0
  %3779 = vmatprep.subr.mxu0 0.0
  %3780 = vmatpush1.msra.mxu0 0.0
  %3781 = vmatprep.subr.mxu0 0.0
  %3782 = vmatpush1.msra.mxu0 0.0
  %3783 = vmatprep.subr.mxu0 0.0
  %3784 = vmatpush1.msra.mxu0 0.0
  %3785 = vmatprep.subr.mxu0 0.0
  %3786 = vmatpush1.msra.mxu0 0.0
  %3787 = vmatprep.subr.mxu0 0.0
  %3788 = vmatpush1.msra.mxu0 0.0
  %3789 = vmatprep.subr.mxu0 0.0
  %3790 = vmatpush1.msra.mxu0 0.0
  %3791 = vmatprep.subr.mxu0 0.0
  %3792 = vmatpush1.msra.mxu0 0.0
  %3793 = vmatprep.subr.mxu0 0.0
  %3794 = vmatpush1.msra.mxu0 0.0
  %3795 = vmatprep.subr.mxu0 0.0
  %3796 = vmatpush1.msra.mxu0 0.0
  %3797 = vmatprep.mubr.f32.mxu0 0.0
  %3798 = vmatmul.mubr.f32.gmra.mrb[0].mxu0 %v3724
  %v3799 = vpop.f32.mrb[0].mxu0
  %v3800 = vadd.f32 0.0, %v3799
  %v3801 = vpop.f32.mrb[0].mxu0
  %3802 = vmatprep.mubr.f32.mxu0 0.0
  %3803 = vmatmul.mubr.f32.gmra.mrb[0].mxu0 %v3727
  %v3804 = vpop.f32.mrb[0].mxu0
  %v3805 = vadd.f32 0.0, %v3804
  %v3806 = vpop.f32.mrb[0].mxu0
  %3807 = vdwg.mxu0
  %v3809 = vsel %vm73, %v3713, 0
  %v3812 = vsel %vm73, %v3714, 0
  %3814 = vmatprep.subr.mxu0 0.0
  %3815 = vmatpush1.msra.mxu0 %v3715
  %3816 = vmatprep.subr.mxu0 0.0
  %3817 = vmatpush1.msra.mxu0 %v3716
  %3818 = vmatprep.subr.mxu0 0.0
  %3819 = vmatpush1.msra.mxu0 %v3717
  %3820 = vmatprep.subr.mxu0 0.0
  %3821 = vmatpush1.msra.mxu0 %v3718
  %3822 = vmatprep.subr.mxu0 0.0
  %3823 = vmatpush1.msra.mxu0 0.0
  %3824 = vmatprep.subr.mxu0 0.0
  %3825 = vmatpush1.msra.mxu0 0.0
  %3826 = vmatprep.subr.mxu0 0.0
  %3827 = vmatpush1.msra.mxu0 0.0
  %3828 = vmatprep.subr.mxu0 0.0
  %3829 = vmatpush1.msra.mxu0 0.0
  %3830 = vmatprep.subr.mxu0 0.0
  %3831 = vmatpush1.msra.mxu0 0.0
  %3832 = vmatprep.subr.mxu0 0.0
  %3833 = vmatpush1.msra.mxu0 0.0
  %3834 = vmatprep.subr.mxu0 0.0
  %3835 = vmatpush1.msra.mxu0 0.0
  %3836 = vmatprep.subr.mxu0 0.0
  %3837 = vmatpush1.msra.mxu0 0.0
  %3838 = vmatprep.subr.mxu0 0.0
  %3839 = vmatpush1.msra.mxu0 0.0
  %3840 = vmatprep.subr.mxu0 0.0
  %3841 = vmatpush1.msra.mxu0 0.0
  %3842 = vmatprep.subr.mxu0 0.0
  %3843 = vmatpush1.msra.mxu0 0.0
  %3844 = vmatprep.subr.mxu0 0.0
  %3845 = vmatpush1.msra.mxu0 0.0
  %3846 = vmatprep.subr.mxu0 0.0
  %3847 = vmatpush1.msra.mxu0 0.0
  %3848 = vmatprep.subr.mxu0 0.0
  %3849 = vmatpush1.msra.mxu0 0.0
  %3850 = vmatprep.subr.mxu0 0.0
  %3851 = vmatpush1.msra.mxu0 0.0
  %3852 = vmatprep.subr.mxu0 0.0
  %3853 = vmatpush1.msra.mxu0 0.0
  %3854 = vmatprep.subr.mxu0 0.0
  %3855 = vmatpush1.msra.mxu0 0.0
  %3856 = vmatprep.subr.mxu0 0.0
  %3857 = vmatpush1.msra.mxu0 0.0
  %3858 = vmatprep.subr.mxu0 0.0
  %3859 = vmatpush1.msra.mxu0 0.0
  %3860 = vmatprep.subr.mxu0 0.0
  %3861 = vmatpush1.msra.mxu0 0.0
  %3862 = vmatprep.subr.mxu0 0.0
  %3863 = vmatpush1.msra.mxu0 0.0
  %3864 = vmatprep.subr.mxu0 0.0
  %3865 = vmatpush1.msra.mxu0 0.0
  %3866 = vmatprep.subr.mxu0 0.0
  %3867 = vmatpush1.msra.mxu0 0.0
  %3868 = vmatprep.subr.mxu0 0.0
  %3869 = vmatpush1.msra.mxu0 0.0
  %3870 = vmatprep.subr.mxu0 0.0
  %3871 = vmatpush1.msra.mxu0 0.0
  %3872 = vmatprep.subr.mxu0 0.0
  %3873 = vmatpush1.msra.mxu0 0.0
  %3874 = vmatprep.subr.mxu0 0.0
  %3875 = vmatpush1.msra.mxu0 0.0
  %3876 = vmatprep.subr.mxu0 0.0
  %3877 = vmatpush1.msra.mxu0 0.0
  %3878 = vmatprep.mubr.f32.mxu0 0.0
  %3879 = vmatmul.mubr.f32.gmra.mrb[0].mxu0 %v3809
  %v3880 = vpop.f32.mrb[0].mxu0
  %v3881 = vadd.f32 %v3800, %v3880
  %v3882 = vpop.f32.mrb[0].mxu0
  %3883 = vmatprep.mubr.f32.mxu0 0.0
  %3884 = vmatmul.mubr.f32.gmra.mrb[0].mxu0 %v3812
  %v3885 = vpop.f32.mrb[0].mxu0
  %v3886 = vadd.f32 %v3805, %v3885
  %v3887 = vpop.f32.mrb[0].mxu0
  %3888 = vdwg.mxu0
  %v3889 = vld [vmem:[%s14] sm:$0x1]
  %v3891 = vlaneseq
  %v3892 = vshrl.u32 %v3891, 7
  %v3893 = vsub.s32 0, %v3892
  %v3894 = vrot.slane %v3889, %v3893
  %v3896 = vadd.f32 %v3881, %v3894
  %v3897 = vadd.f32 %v3886, %v3894
  %3898 = vst.msk [vmem:[%s17] sm:$0xff] %vm1516, %v3896
  %3899 = vst.msk [vmem:[%s17 + $0x8] sm:$0xff] %vm1516, %v3897
  %v3900 = vsel %vm73, %v3713, 0.0
  %v3901 = vrot.slane %v3900, 4
  %v3902 = vadd.f32 %v3900, %v3901
  %v3903 = vrot.slane %v3902, 2
  %v3904 = vadd.f32 %v3902, %v3903
  %v3905 = vrot.slane %v3904, 1
  %v3906 = vadd.f32 %v3904, %v3905
  %v3907 = vsel %vm73, %v3714, 0.0
  %v3908 = vrot.slane %v3907, 4
  %v3909 = vadd.f32 %v3907, %v3908
  %v3910 = vrot.slane %v3909, 2
  %v3911 = vadd.f32 %v3909, %v3910
  %v3912 = vrot.slane %v3911, 1
  %v3913 = vadd.f32 %v3911, %v3912
  %v3914 = vrcp.pop 8.0
  %v3915 = vmul.f32 %v3906, %v3914
  %v3916 = vmul.f32 %v3913, %v3914
  %v3917 = vld [vmem:[%s15] sm:$0xff]
  %v3918 = vld [vmem:[%s15 + $0x8] sm:$0xff]
  %v3919 = vld [vmem:[%s15 + $0x10] sm:$0xff]
  %v3920 = vld [vmem:[%s15 + $0x18] sm:$0xff]
  %v3921 = vld [vmem:[%s16] sm:$0x1]
  %v3923 = vlaneseq
  %v3924 = vshrl.u32 %v3923, 7
  %v3925 = vsub.s32 0, %v3924
  %v3926 = vrot.slane %v3921, %v3925
  %vm3930 = vcmask 1041409
  %v3931 = vsel %vm3930, %v3916, %v3915
  %v3932 = vsel %vm73, %v3931, 0
  %3934 = vmatprep.subr.mxu0 0.0
  %3935 = vmatpush1.msra.mxu0 %v3917
  %3936 = vmatprep.subr.mxu0 0.0
  %3937 = vmatpush1.msra.mxu0 %v3918
  %3938 = vmatprep.subr.mxu0 0.0
  %3939 = vmatpush1.msra.mxu0 %v3919
  %3940 = vmatprep.subr.mxu0 0.0
  %3941 = vmatpush1.msra.mxu0 %v3920
  %3942 = vmatprep.subr.mxu0 0.0
  %3943 = vmatpush1.msra.mxu0 0.0
  %3944 = vmatprep.subr.mxu0 0.0
  %3945 = vmatpush1.msra.mxu0 0.0
  %3946 = vmatprep.subr.mxu0 0.0
  %3947 = vmatpush1.msra.mxu0 0.0
  %3948 = vmatprep.subr.mxu0 0.0
  %3949 = vmatpush1.msra.mxu0 0.0
  %3950 = vmatprep.subr.mxu0 0.0
  %3951 = vmatpush1.msra.mxu0 0.0
  %3952 = vmatprep.subr.mxu0 0.0
  %3953 = vmatpush1.msra.mxu0 0.0
  %3954 = vmatprep.subr.mxu0 0.0
  %3955 = vmatpush1.msra.mxu0 0.0
  %3956 = vmatprep.subr.mxu0 0.0
  %3957 = vmatpush1.msra.mxu0 0.0
  %3958 = vmatprep.subr.mxu0 0.0
  %3959 = vmatpush1.msra.mxu0 0.0
  %3960 = vmatprep.subr.mxu0 0.0
  %3961 = vmatpush1.msra.mxu0 0.0
  %3962 = vmatprep.subr.mxu0 0.0
  %3963 = vmatpush1.msra.mxu0 0.0
  %3964 = vmatprep.subr.mxu0 0.0
  %3965 = vmatpush1.msra.mxu0 0.0
  %3966 = vmatprep.subr.mxu0 0.0
  %3967 = vmatpush1.msra.mxu0 0.0
  %3968 = vmatprep.subr.mxu0 0.0
  %3969 = vmatpush1.msra.mxu0 0.0
  %3970 = vmatprep.subr.mxu0 0.0
  %3971 = vmatpush1.msra.mxu0 0.0
  %3972 = vmatprep.subr.mxu0 0.0
  %3973 = vmatpush1.msra.mxu0 0.0
  %3974 = vmatprep.subr.mxu0 0.0
  %3975 = vmatpush1.msra.mxu0 0.0
  %3976 = vmatprep.subr.mxu0 0.0
  %3977 = vmatpush1.msra.mxu0 0.0
  %3978 = vmatprep.subr.mxu0 0.0
  %3979 = vmatpush1.msra.mxu0 0.0
  %3980 = vmatprep.subr.mxu0 0.0
  %3981 = vmatpush1.msra.mxu0 0.0
  %3982 = vmatprep.subr.mxu0 0.0
  %3983 = vmatpush1.msra.mxu0 0.0
  %3984 = vmatprep.subr.mxu0 0.0
  %3985 = vmatpush1.msra.mxu0 0.0
  %3986 = vmatprep.subr.mxu0 0.0
  %3987 = vmatpush1.msra.mxu0 0.0
  %3988 = vmatprep.subr.mxu0 0.0
  %3989 = vmatpush1.msra.mxu0 0.0
  %3990 = vmatprep.subr.mxu0 0.0
  %3991 = vmatpush1.msra.mxu0 0.0
  %3992 = vmatprep.subr.mxu0 0.0
  %3993 = vmatpush1.msra.mxu0 0.0
  %3994 = vmatprep.subr.mxu0 0.0
  %3995 = vmatpush1.msra.mxu0 0.0
  %3996 = vmatprep.subr.mxu0 0.0
  %3997 = vmatpush1.msra.mxu0 0.0
  %3998 = vmatprep.mubr.f32.mxu0 0.0
  %3999 = vmatmul.mubr.f32.gmra.mrb[0].mxu0 %v3932
  %v4000 = vpop.f32.mrb[0].mxu0
  %v4001 = vadd.f32 %v3926, %v4000
  %v4002 = vpop.f32.mrb[0].mxu0
  %4003 = vdwg.mxu0
  %vm4004 = vcmask 25600
  %4005 = vst.msk [vmem:[%s18] sm:$0x3] %vm4004, %v4001
  // Predicated region
  $region70: #{atom_transformer_forward.1} parent=0 // pred_check
    _
  $region71: #{atom_transformer_forward.1} parent=0 // pred_check_branch
    %4007 = sbr.rel (0) target = $region73
  $region72: #{atom_transformer_forward.1} parent=0 // pred_region
    _
  $region73: #{atom_transformer_forward.1} parent=0 // pred_fallthru
    _
  // Predicated region
  $region74: #{atom_transformer_forward.1} parent=0 // pred_check
    _
  $region75: #{atom_transformer_forward.1} parent=0 // pred_check_branch
    %4009 = sbr.rel (0) target = $region77
  $region76: #{atom_transformer_forward.1} parent=0 // pred_region
    _
  $region77: #{atom_transformer_forward.1} parent=0 // pred_fallthru
    _
  // Predicated region
  $region78: #{atom_transformer_forward.1} parent=0 // pred_check
    _
  $region79: #{atom_transformer_forward.1} parent=0 // pred_check_branch
    %4011 = sbr.rel (0) target = $region81
  $region80: #{atom_transformer_forward.1} parent=0 // pred_region
    _
  $region81: #{atom_transformer_forward.1} parent=0 // pred_fallthru
    _
  // Predicated region
  $region82: #{atom_transformer_forward.1} parent=0 // pred_check
    _
  $region83: #{atom_transformer_forward.1} parent=0 // pred_check_branch
    %4013 = sbr.rel (0) target = $region85
  $region84: #{atom_transformer_forward.1} parent=0 // pred_region
    _
  $region85: #{atom_transformer_forward.1} parent=0 // pred_fallthru
    _

</llo_original>
